<compile_context>
chip_gen: v7x
topology: tpu7x:2x2x1
jax: 0.10.0
libtpu: 0.0.40
codegen_flags: <defaults>
</compile_context>

<pallas_src>
import functools

import jax
import jax.numpy as jnp
from jax.experimental import pallas as pl
from jax.experimental.pallas import tpu as pltpu

NEG_SLOPE = 0.01  # torch.nn.LeakyReLU default
LANE = 128


def _round_up(n, m):
    return ((n + m - 1) // m) * m


def _leaky(x):
    return jnp.where(x >= 0, x, NEG_SLOPE * x)


# ---------------------------------------------------------------------------
# In-kernel helpers
# ---------------------------------------------------------------------------
def _causal_tap_slab(h_bf, ksize, dilation):
    """im2col slab (TB, L, K*C): tap j is the input shifted (K-1-j)*d steps back,
    zero-filled where the shift runs off the start (causal left padding)."""
    tb, L, C = h_bf.shape
    taps = []
    for j in range(ksize):
        shift = (ksize - 1 - j) * dilation
        if shift == 0:
            taps.append(h_bf)
        elif shift >= L:
            taps.append(jnp.zeros_like(h_bf))
        else:
            taps.append(jnp.concatenate(
                [jnp.zeros((tb, shift, C), h_bf.dtype), h_bf[:, :L - shift, :]],
                axis=1))
    return jnp.concatenate(taps, axis=-1)  # lane-aligned: C is a multiple of 128


def _causal_conv(h_f32, w_ref, b_ref, ksize, dilation):
    """One dilated causal conv = ONE MXU matmul: (TB*L, K*C) @ (K*C, Cout)."""
    tb, L, C = h_f32.shape
    slab = _causal_tap_slab(h_f32.astype(jnp.bfloat16), ksize, dilation)
    y = jnp.dot(slab.reshape(tb * L, ksize * C), w_ref[...],
                preferred_element_type=jnp.float32)
    return y + b_ref[...]  # bias added once, broadcast from (1, Cout)


# ---------------------------------------------------------------------------
# Fused kernel: all CausalConvolutionBlocks + AdaptiveMaxPool1d(1)
#               + SqueezeChannels + Linear, for one batch tile.
# ---------------------------------------------------------------------------
def fused_encoder_kernel(*refs, metas):
    """refs = (x, <per-block packed weights...>, lin_w, lin_b, out).

    metas: tuple of (ksize, dilation, cin_padded, cout_padded, has_res), static.
    """
    x_ref = refs[0]
    out_ref = refs[-1]
    tb, L, _ = x_ref.shape

    h = x_ref[...].astype(jnp.float32)                      # (TB, L, C0p) f32 carry
    widx = 1
    for (ksize, dilation, cinp, coutp, has_res) in metas:
        w1, b1, w2, b2 = refs[widx:widx + 4]
        widx += 4
        if has_res:
            wres, bres = refs[widx:widx + 2]
            widx += 2

        h1 = _leaky(_causal_conv(h, w1, b1, ksize, dilation))               # (TB*L, Cp)
        out = _leaky(_causal_conv(h1.reshape(tb, L, coutp), w2, b2,
                                  ksize, dilation))

        if has_res:                                         # 1x1 conv residual
            res = (jnp.dot(h.astype(jnp.bfloat16).reshape(tb * L, cinp), wres[...],
                           preferred_element_type=jnp.float32) + bres[...])
        else:                                               # identity residual: plain add
            res = h.reshape(tb * L, cinp)
        h = (out + res).reshape(tb, L, coutp)

    # ---- AdaptiveMaxPool1d(1) + SqueezeChannels + Linear ----
    lin_w, lin_b = refs[widx], refs[widx + 1]
    pooled = jnp.max(h, axis=1)                             # (TB, Cr_p)
    out_ref[...] = (jnp.dot(pooled.astype(jnp.bfloat16), lin_w[...],
                            preferred_element_type=jnp.float32)
                    + lin_b[...]).astype(out_ref.dtype)


# ---------------------------------------------------------------------------
# Wrapper: lane-dense packing, batch-tiled grid, resident weights
# ---------------------------------------------------------------------------
def causal_cnn_encoder(x_ncl, params, *, batch_tile=8):
    """x_ncl: (B, C, L) like PyTorch. Returns (B, out_channels) float32."""
    x = jnp.transpose(x_ncl, (0, 2, 1)).astype(jnp.float32)  # -> (B, L, C0)
    B, L, c0 = x.shape
    tb = batch_tile
    bp = _round_up(max(B, 1), tb)
    c0p = _round_up(c0, LANE)

    # Lane-dense, batch-padded, bf16 input tile.
    x_pad = jnp.zeros((bp, L, c0p), jnp.bfloat16)
    x_pad = x_pad.at[:B, :, :c0].set(x.astype(jnp.bfloat16))

    inputs = [x_pad]
    in_specs = [pl.BlockSpec((tb, L, c0p), lambda b: (b, 0, 0))]

    metas = []
    cinp = c0p
    for p in params["blocks"]:
        K, d = p["ksize"], p["dilation"]
        cin, cout = p["w1"].shape[1], p["w1"].shape[2]
        coutp = _round_up(cout, LANE)
        has_res = p["wres"] is not None
        metas.append((K, d, cinp, coutp, has_res))

        # Conv weights packed for the im2col slab: rows [j*Cp, (j+1)*Cp) = tap j.
        w1p = jnp.zeros((K * cinp, coutp), jnp.bfloat16)
        w2p = jnp.zeros((K * coutp, coutp), jnp.bfloat16)
        for j in range(K):
            w1p = w1p.at[j * cinp:j * cinp + cin, :cout].set(
                p["w1"][j].astype(jnp.bfloat16))
            w2p = w2p.at[j * coutp:j * coutp + cout, :cout].set(
                p["w2"][j].astype(jnp.bfloat16))
        b1p = jnp.zeros((1, coutp), jnp.float32).at[0, :cout].set(p["b1"])
        b2p = jnp.zeros((1, coutp), jnp.float32).at[0, :cout].set(p["b2"])
        inputs += [w1p, b1p, w2p, b2p]
        if has_res:
            wresp = jnp.zeros((cinp, coutp), jnp.bfloat16).at[:cin, :cout].set(
                p["wres"].astype(jnp.bfloat16))
            bresp = jnp.zeros((1, coutp), jnp.float32).at[0, :cout].set(p["bres"])
            inputs += [wresp, bresp]
        cinp = coutp

    reduced = params["lin_w_t"].shape[0]
    n_out = params["lin_w_t"].shape[1]
    noutp = _round_up(n_out, LANE)
    lin_wp = jnp.zeros((cinp, noutp), jnp.bfloat16).at[:reduced, :n_out].set(
        params["lin_w_t"].astype(jnp.bfloat16))
    lin_bp = jnp.zeros((1, noutp), jnp.float32).at[0, :n_out].set(params["lin_b"])
    inputs += [lin_wp, lin_bp]

    # Weights/biases: full-array block, same block index every grid step
    # -> stay resident in VMEM across batch tiles.
    in_specs += [pl.BlockSpec(a.shape, lambda b: (0, 0)) for a in inputs[1:]]
    out_specs = pl.BlockSpec((tb, noutp), lambda b: (b, 0))
    grid = (bp // tb,)

    # Scoped-VMEM budget sized from the per-tile footprint (+headroom).
    weight_bytes = sum(int(a.size) * a.dtype.itemsize for a in inputs[1:])
    max_cp = max([c0p] + [m[3] for m in metas])
    max_k = max([1] + [m[0] for m in metas])
    act_bytes = tb * L * max_cp * (6 * 4 + (max_k + 1) * 2)   # f32 carries + bf16 slabs
    io_bytes = 2 * (tb * L * c0p * 2) + 2 * (tb * noutp * 4)  # double-buffered x / out
    vmem_limit = int(min(100 * 2 ** 20,
                         max(32 * 2 ** 20,
                             2 * (weight_bytes + act_bytes + io_bytes))))

    kern = functools.partial(fused_encoder_kernel, metas=tuple(metas))
    out = pl.pallas_call(
        kern,
        out_shape=jax.ShapeDtypeStruct((bp, noutp), jnp.float32),
        grid=grid,
        in_specs=in_specs,
        out_specs=out_specs,
        compiler_params=pltpu.CompilerParams(
            dimension_semantics=("parallel",),
            vmem_limit_bytes=vmem_limit),
    )(*inputs)
    return out[:B, :n_out]


# ---------------------------------------------------------------------------
# Parameter init (deterministic, torch-style shapes)
# ---------------------------------------------------------------------------
def init_params(key, in_channels, channels, depth, reduced_size, out_channels,
                kernel_size):
    """Returns (kernel_params, torch_params). weight_norm only reparameterizes
    the conv weight, so sampling the effective weight directly is equivalent."""
    blocks_k, blocks_t = [], []
    n_blocks = depth + 1
    keys = jax.random.split(key, 4 * n_blocks + 2)
    ki = 0
    for i in range(n_blocks):
        cin = in_channels if i == 0 else channels
        cout = channels if i < depth else reduced_size
        dilation = 2 ** i
        w1 = 0.2 * jax.random.normal(keys[ki], (cout, cin, kernel_size), jnp.float32); ki += 1
        b1 = 0.1 * jax.random.normal(keys[ki], (cout,), jnp.float32); ki += 1
        w2 = 0.2 * jax.random.normal(keys[ki], (cout, cout, kernel_size), jnp.float32); ki += 1
        b2 = 0.1 * jax.random.normal(keys[ki], (cout,), jnp.float32); ki += 1
        if cin != cout:
            wres_t = 0.2 * jax.random.normal(jax.random.fold_in(keys[ki - 1], 7),
                                             (cout, cin, 1), jnp.float32)
            bres = 0.1 * jax.random.normal(jax.random.fold_in(keys[ki - 1], 11),
                                           (cout,), jnp.float32)
            wres_k = jnp.transpose(wres_t[:, :, 0], (1, 0))    # (Cin, Cout)
        else:
            wres_t, bres, wres_k = None, None, None            # identity residual
        blocks_k.append(dict(
            w1=jnp.transpose(w1, (2, 1, 0)),                   # (K, Cin, Cout)
            b1=b1,
            w2=jnp.transpose(w2, (2, 1, 0)),                   # (K, Cout, Cout)
            b2=b2,
            wres=wres_k, bres=bres,
            dilation=dilation, ksize=kernel_size))
        blocks_t.append(dict(w1=w1, b1=b1, w2=w2, b2=b2, wres=wres_t, bres=bres,
                             dilation=dilation))
    lin_w = 0.2 * jax.random.normal(keys[ki], (out_channels, reduced_size), jnp.float32); ki += 1
    lin_b = 0.1 * jax.random.normal(keys[ki], (out_channels,), jnp.float32)
    params_k = dict(blocks=blocks_k, lin_w_t=jnp.transpose(lin_w), lin_b=lin_b)
    params_t = dict(blocks=blocks_t, lin_w=lin_w, lin_b=lin_b)
    return params_k, params_t


# ---------------------------------------------------------------------------
# Pure-JAX reference (correctness checking only)
# ---------------------------------------------------------------------------
def _ref_causal_conv(x, w, b, dilation, pad):
    y = jax.lax.conv_general_dilated(
        x, w, window_strides=(1,), padding=[(pad, pad)],
        rhs_dilation=(dilation,), dimension_numbers=('NCH', 'OIH', 'NCH'))
    y = y + b[None, :, None]
    return y[:, :, :x.shape[2]]                                # Chomp1d(pad)


def ref_encoder(x, params_t, kernel_size):
    for p in params_t["blocks"]:
        pad = (kernel_size - 1) * p["dilation"]
        h = _leaky(_ref_causal_conv(x, p["w1"], p["b1"], p["dilation"], pad))
        out = _leaky(_ref_causal_conv(h, p["w2"], p["b2"], p["dilation"], pad))
        if p["wres"] is None:
            res = x
        else:
            res = jax.lax.conv_general_dilated(
                x, p["wres"], (1,), [(0, 0)],
                dimension_numbers=('NCH', 'OIH', 'NCH')) + p["bres"][None, :, None]
        x = out + res
    pooled = jnp.max(x, axis=2)                                # MaxPool1d(1) + squeeze
    return pooled @ params_t["lin_w"].T + params_t["lin_b"]


if __name__ == "__main__":
    # Small config: B=2, in_channels=4, channels=8, depth=2, reduced_size=16,
    # out_channels=8, kernel_size=3, L=16.
    B, C_IN, L = 2, 4, 16
    CHANNELS, DEPTH, REDUCED, C_OUT, KSIZE = 8, 2, 16, 8, 3

    key = jax.random.PRNGKey(0)
    k_x, k_p = jax.random.split(key)
    x = jax.random.normal(k_x, (B, C_IN, L), jnp.float32)

    params_k, params_t = init_params(k_p, C_IN, CHANNELS, DEPTH, REDUCED,
                                     C_OUT, KSIZE)

    out = causal_cnn_encoder(x, params_k)
    out = jax.block_until_ready(out)

    ref = ref_encoder(x, params_t, KSIZE)
    assert out.shape == (B, C_OUT)
    # bf16 matmul operands (f32 accumulation) -> loosened tolerance vs f32 ref.
    err = float(jnp.max(jnp.abs(out - ref)))
    scale = float(jnp.max(jnp.abs(ref))) + 1e-6
    assert err <= 0.05 * max(1.0, scale), (err, scale, out, ref)

    print("KERNEL_OK")
</pallas_src>

<mosaic_0001>
module attributes {stable_mosaic.version = 11 : i64} {
  func.func @fused_encoder_kernel(%arg0: i32, %arg1: memref<8x16x128xbf16, #tpu.memory_space<vmem>>, %arg2: memref<384x128xbf16, #tpu.memory_space<vmem>>, %arg3: memref<1x128xf32, #tpu.memory_space<vmem>>, %arg4: memref<384x128xbf16, #tpu.memory_space<vmem>>, %arg5: memref<1x128xf32, #tpu.memory_space<vmem>>, %arg6: memref<128x128xbf16, #tpu.memory_space<vmem>>, %arg7: memref<1x128xf32, #tpu.memory_space<vmem>>, %arg8: memref<384x128xbf16, #tpu.memory_space<vmem>>, %arg9: memref<1x128xf32, #tpu.memory_space<vmem>>, %arg10: memref<384x128xbf16, #tpu.memory_space<vmem>>, %arg11: memref<1x128xf32, #tpu.memory_space<vmem>>, %arg12: memref<384x128xbf16, #tpu.memory_space<vmem>>, %arg13: memref<1x128xf32, #tpu.memory_space<vmem>>, %arg14: memref<384x128xbf16, #tpu.memory_space<vmem>>, %arg15: memref<1x128xf32, #tpu.memory_space<vmem>>, %arg16: memref<128x128xbf16, #tpu.memory_space<vmem>>, %arg17: memref<1x128xf32, #tpu.memory_space<vmem>>, %arg18: memref<128x128xbf16, #tpu.memory_space<vmem>>, %arg19: memref<1x128xf32, #tpu.memory_space<vmem>>, %arg20: memref<8x128xf32, #tpu.memory_space<vmem>>) attributes {dimension_semantics = [#tpu.dimension_semantics<parallel>], iteration_bounds = array<i64: 1>, scalar_prefetch = 0 : i64, scratch_operands = 0 : i64, tpu.core_type = #tpu.core_type<tc>, window_params = [{transform_indices = @transform_0, window_bounds = array<i64: 8, 16, 128>}, {pipeline_mode = #tpu.pipeline_mode<synchronous>, transform_indices = @transform_1, window_bounds = array<i64: 384, 128>}, {pipeline_mode = #tpu.pipeline_mode<synchronous>, transform_indices = @transform_2, window_bounds = array<i64: 1, 128>}, {pipeline_mode = #tpu.pipeline_mode<synchronous>, transform_indices = @transform_3, window_bounds = array<i64: 384, 128>}, {pipeline_mode = #tpu.pipeline_mode<synchronous>, transform_indices = @transform_4, window_bounds = array<i64: 1, 128>}, {pipeline_mode = #tpu.pipeline_mode<synchronous>, transform_indices = @transform_5, window_bounds = array<i64: 128, 128>}, {pipeline_mode = #tpu.pipeline_mode<synchronous>, transform_indices = @transform_6, window_bounds = array<i64: 1, 128>}, {pipeline_mode = #tpu.pipeline_mode<synchronous>, transform_indices = @transform_7, window_bounds = array<i64: 384, 128>}, {pipeline_mode = #tpu.pipeline_mode<synchronous>, transform_indices = @transform_8, window_bounds = array<i64: 1, 128>}, {pipeline_mode = #tpu.pipeline_mode<synchronous>, transform_indices = @transform_9, window_bounds = array<i64: 384, 128>}, {pipeline_mode = #tpu.pipeline_mode<synchronous>, transform_indices = @transform_10, window_bounds = array<i64: 1, 128>}, {pipeline_mode = #tpu.pipeline_mode<synchronous>, transform_indices = @transform_11, window_bounds = array<i64: 384, 128>}, {pipeline_mode = #tpu.pipeline_mode<synchronous>, transform_indices = @transform_12, window_bounds = array<i64: 1, 128>}, {pipeline_mode = #tpu.pipeline_mode<synchronous>, transform_indices = @transform_13, window_bounds = array<i64: 384, 128>}, {pipeline_mode = #tpu.pipeline_mode<synchronous>, transform_indices = @transform_14, window_bounds = array<i64: 1, 128>}, {pipeline_mode = #tpu.pipeline_mode<synchronous>, transform_indices = @transform_15, window_bounds = array<i64: 128, 128>}, {pipeline_mode = #tpu.pipeline_mode<synchronous>, transform_indices = @transform_16, window_bounds = array<i64: 1, 128>}, {pipeline_mode = #tpu.pipeline_mode<synchronous>, transform_indices = @transform_17, window_bounds = array<i64: 128, 128>}, {pipeline_mode = #tpu.pipeline_mode<synchronous>, transform_indices = @transform_18, window_bounds = array<i64: 1, 128>}, {transform_indices = @transform_19, window_bounds = array<i64: 8, 128>}]} {
    %c0 = arith.constant 0 : index
    %c0_0 = arith.constant 0 : index
    %c0_1 = arith.constant 0 : index
    %0 = vector.load %arg1[%c0, %c0_0, %c0_1] : memref<8x16x128xbf16, #tpu.memory_space<vmem>>, vector<8x16x128xbf16>
    %1 = arith.extf %0 : vector<8x16x128xbf16> to vector<8x16x128xf32>
    %2 = arith.truncf %1 : vector<8x16x128xf32> to vector<8x16x128xbf16>
    %cst = arith.constant 0.000000e+00 : bf16
    %3 = vector.broadcast %cst : bf16 to vector<8x2x128xbf16>
    %4 = vector.extract_strided_slice %2 {offsets = [0, 0, 0], sizes = [8, 14, 128], strides = [1, 1, 1]} : vector<8x16x128xbf16> to vector<8x14x128xbf16>
    %5 = tpu.concatenate %3, %4 in 1 : vector<8x2x128xbf16>, vector<8x14x128xbf16> -> vector<8x16x128xbf16>
    %cst_2 = arith.constant 0.000000e+00 : bf16
    %6 = vector.broadcast %cst_2 : bf16 to vector<8x1x128xbf16>
    %7 = vector.extract_strided_slice %2 {offsets = [0, 0, 0], sizes = [8, 15, 128], strides = [1, 1, 1]} : vector<8x16x128xbf16> to vector<8x15x128xbf16>
    %8 = tpu.concatenate %6, %7 in 1 : vector<8x1x128xbf16>, vector<8x15x128xbf16> -> vector<8x16x128xbf16>
    %9 = tpu.concatenate %5, %8, %2 in 2 : vector<8x16x128xbf16>, vector<8x16x128xbf16>, vector<8x16x128xbf16> -> vector<8x16x384xbf16>
    %10 = vector.shape_cast %9 : vector<8x16x384xbf16> to vector<128x384xbf16>
    %c0_3 = arith.constant 0 : index
    %c0_4 = arith.constant 0 : index
    %11 = vector.load %arg2[%c0_3, %c0_4] : memref<384x128xbf16, #tpu.memory_space<vmem>>, vector<384x128xbf16>
    %cst_5 = arith.constant dense<0.000000e+00> : vector<128x128xf32>
    %12 = tpu.matmul %10, %11, %cst_5 {dimension_numbers = #tpu.dot_dimension_numbers<[1], [0], [0], [1], [0, 0, 1, 1], [], []>} : vector<128x384xbf16>, vector<384x128xbf16>, vector<128x128xf32> -> vector<128x128xf32>
    %c0_6 = arith.constant 0 : index
    %c0_7 = arith.constant 0 : index
    %13 = vector.load %arg3[%c0_6, %c0_7] : memref<1x128xf32, #tpu.memory_space<vmem>>, vector<1x128xf32>
    %14 = vector.broadcast %13 : vector<1x128xf32> to vector<128x128xf32>
    %15 = arith.addf %12, %14 : vector<128x128xf32>
    %cst_8 = arith.constant 0.000000e+00 : f32
    %16 = vector.broadcast %cst_8 : f32 to vector<128x128xf32>
    %17 = arith.cmpf oge, %15, %16 : vector<128x128xf32>
    %cst_9 = arith.constant 0.00999999977 : f32
    %18 = vector.broadcast %cst_9 : f32 to vector<128x128xf32>
    %19 = arith.mulf %18, %15 : vector<128x128xf32>
    %20 = arith.select %17, %15, %19 : vector<128x128xi1>, vector<128x128xf32>
    %21 = vector.shape_cast %20 : vector<128x128xf32> to vector<8x16x128xf32>
    %22 = arith.truncf %21 : vector<8x16x128xf32> to vector<8x16x128xbf16>
    %cst_10 = arith.constant 0.000000e+00 : bf16
    %23 = vector.broadcast %cst_10 : bf16 to vector<8x2x128xbf16>
    %24 = vector.extract_strided_slice %22 {offsets = [0, 0, 0], sizes = [8, 14, 128], strides = [1, 1, 1]} : vector<8x16x128xbf16> to vector<8x14x128xbf16>
    %25 = tpu.concatenate %23, %24 in 1 : vector<8x2x128xbf16>, vector<8x14x128xbf16> -> vector<8x16x128xbf16>
    %cst_11 = arith.constant 0.000000e+00 : bf16
    %26 = vector.broadcast %cst_11 : bf16 to vector<8x1x128xbf16>
    %27 = vector.extract_strided_slice %22 {offsets = [0, 0, 0], sizes = [8, 15, 128], strides = [1, 1, 1]} : vector<8x16x128xbf16> to vector<8x15x128xbf16>
    %28 = tpu.concatenate %26, %27 in 1 : vector<8x1x128xbf16>, vector<8x15x128xbf16> -> vector<8x16x128xbf16>
    %29 = tpu.concatenate %25, %28, %22 in 2 : vector<8x16x128xbf16>, vector<8x16x128xbf16>, vector<8x16x128xbf16> -> vector<8x16x384xbf16>
    %30 = vector.shape_cast %29 : vector<8x16x384xbf16> to vector<128x384xbf16>
    %c0_12 = arith.constant 0 : index
    %c0_13 = arith.constant 0 : index
    %31 = vector.load %arg4[%c0_12, %c0_13] : memref<384x128xbf16, #tpu.memory_space<vmem>>, vector<384x128xbf16>
    %cst_14 = arith.constant dense<0.000000e+00> : vector<128x128xf32>
    %32 = tpu.matmul %30, %31, %cst_14 {dimension_numbers = #tpu.dot_dimension_numbers<[1], [0], [0], [1], [0, 0, 1, 1], [], []>} : vector<128x384xbf16>, vector<384x128xbf16>, vector<128x128xf32> -> vector<128x128xf32>
    %c0_15 = arith.constant 0 : index
    %c0_16 = arith.constant 0 : index
    %33 = vector.load %arg5[%c0_15, %c0_16] : memref<1x128xf32, #tpu.memory_space<vmem>>, vector<1x128xf32>
    %34 = vector.broadcast %33 : vector<1x128xf32> to vector<128x128xf32>
    %35 = arith.addf %32, %34 : vector<128x128xf32>
    %cst_17 = arith.constant 0.000000e+00 : f32
    %36 = vector.broadcast %cst_17 : f32 to vector<128x128xf32>
    %37 = arith.cmpf oge, %35, %36 : vector<128x128xf32>
    %cst_18 = arith.constant 0.00999999977 : f32
    %38 = vector.broadcast %cst_18 : f32 to vector<128x128xf32>
    %39 = arith.mulf %38, %35 : vector<128x128xf32>
    %40 = arith.select %37, %35, %39 : vector<128x128xi1>, vector<128x128xf32>
    %41 = arith.truncf %1 : vector<8x16x128xf32> to vector<8x16x128xbf16>
    %42 = vector.shape_cast %41 : vector<8x16x128xbf16> to vector<128x128xbf16>
    %c0_19 = arith.constant 0 : index
    %c0_20 = arith.constant 0 : index
    %43 = vector.load %arg6[%c0_19, %c0_20] : memref<128x128xbf16, #tpu.memory_space<vmem>>, vector<128x128xbf16>
    %cst_21 = arith.constant dense<0.000000e+00> : vector<128x128xf32>
    %44 = tpu.matmul %42, %43, %cst_21 {dimension_numbers = #tpu.dot_dimension_numbers<[1], [0], [0], [1], [0, 0, 1, 1], [], []>} : vector<128x128xbf16>, vector<128x128xbf16>, vector<128x128xf32> -> vector<128x128xf32>
    %c0_22 = arith.constant 0 : index
    %c0_23 = arith.constant 0 : index
    %45 = vector.load %arg7[%c0_22, %c0_23] : memref<1x128xf32, #tpu.memory_space<vmem>>, vector<1x128xf32>
    %46 = vector.broadcast %45 : vector<1x128xf32> to vector<128x128xf32>
    %47 = arith.addf %44, %46 : vector<128x128xf32>
    %48 = arith.addf %40, %47 : vector<128x128xf32>
    %49 = vector.shape_cast %48 : vector<128x128xf32> to vector<8x16x128xf32>
    %50 = arith.truncf %49 : vector<8x16x128xf32> to vector<8x16x128xbf16>
    %cst_24 = arith.constant 0.000000e+00 : bf16
    %51 = vector.broadcast %cst_24 : bf16 to vector<8x4x128xbf16>
    %52 = vector.extract_strided_slice %50 {offsets = [0, 0, 0], sizes = [8, 12, 128], strides = [1, 1, 1]} : vector<8x16x128xbf16> to vector<8x12x128xbf16>
    %53 = tpu.concatenate %51, %52 in 1 : vector<8x4x128xbf16>, vector<8x12x128xbf16> -> vector<8x16x128xbf16>
    %cst_25 = arith.constant 0.000000e+00 : bf16
    %54 = vector.broadcast %cst_25 : bf16 to vector<8x2x128xbf16>
    %55 = vector.extract_strided_slice %50 {offsets = [0, 0, 0], sizes = [8, 14, 128], strides = [1, 1, 1]} : vector<8x16x128xbf16> to vector<8x14x128xbf16>
    %56 = tpu.concatenate %54, %55 in 1 : vector<8x2x128xbf16>, vector<8x14x128xbf16> -> vector<8x16x128xbf16>
    %57 = tpu.concatenate %53, %56, %50 in 2 : vector<8x16x128xbf16>, vector<8x16x128xbf16>, vector<8x16x128xbf16> -> vector<8x16x384xbf16>
    %58 = vector.shape_cast %57 : vector<8x16x384xbf16> to vector<128x384xbf16>
    %c0_26 = arith.constant 0 : index
    %c0_27 = arith.constant 0 : index
    %59 = vector.load %arg8[%c0_26, %c0_27] : memref<384x128xbf16, #tpu.memory_space<vmem>>, vector<384x128xbf16>
    %cst_28 = arith.constant dense<0.000000e+00> : vector<128x128xf32>
    %60 = tpu.matmul %58, %59, %cst_28 {dimension_numbers = #tpu.dot_dimension_numbers<[1], [0], [0], [1], [0, 0, 1, 1], [], []>} : vector<128x384xbf16>, vector<384x128xbf16>, vector<128x128xf32> -> vector<128x128xf32>
    %c0_29 = arith.constant 0 : index
    %c0_30 = arith.constant 0 : index
    %61 = vector.load %arg9[%c0_29, %c0_30] : memref<1x128xf32, #tpu.memory_space<vmem>>, vector<1x128xf32>
    %62 = vector.broadcast %61 : vector<1x128xf32> to vector<128x128xf32>
    %63 = arith.addf %60, %62 : vector<128x128xf32>
    %cst_31 = arith.constant 0.000000e+00 : f32
    %64 = vector.broadcast %cst_31 : f32 to vector<128x128xf32>
    %65 = arith.cmpf oge, %63, %64 : vector<128x128xf32>
    %cst_32 = arith.constant 0.00999999977 : f32
    %66 = vector.broadcast %cst_32 : f32 to vector<128x128xf32>
    %67 = arith.mulf %66, %63 : vector<128x128xf32>
    %68 = arith.select %65, %63, %67 : vector<128x128xi1>, vector<128x128xf32>
    %69 = vector.shape_cast %68 : vector<128x128xf32> to vector<8x16x128xf32>
    %70 = arith.truncf %69 : vector<8x16x128xf32> to vector<8x16x128xbf16>
    %cst_33 = arith.constant 0.000000e+00 : bf16
    %71 = vector.broadcast %cst_33 : bf16 to vector<8x4x128xbf16>
    %72 = vector.extract_strided_slice %70 {offsets = [0, 0, 0], sizes = [8, 12, 128], strides = [1, 1, 1]} : vector<8x16x128xbf16> to vector<8x12x128xbf16>
    %73 = tpu.concatenate %71, %72 in 1 : vector<8x4x128xbf16>, vector<8x12x128xbf16> -> vector<8x16x128xbf16>
    %cst_34 = arith.constant 0.000000e+00 : bf16
    %74 = vector.broadcast %cst_34 : bf16 to vector<8x2x128xbf16>
    %75 = vector.extract_strided_slice %70 {offsets = [0, 0, 0], sizes = [8, 14, 128], strides = [1, 1, 1]} : vector<8x16x128xbf16> to vector<8x14x128xbf16>
    %76 = tpu.concatenate %74, %75 in 1 : vector<8x2x128xbf16>, vector<8x14x128xbf16> -> vector<8x16x128xbf16>
    %77 = tpu.concatenate %73, %76, %70 in 2 : vector<8x16x128xbf16>, vector<8x16x128xbf16>, vector<8x16x128xbf16> -> vector<8x16x384xbf16>
    %78 = vector.shape_cast %77 : vector<8x16x384xbf16> to vector<128x384xbf16>
    %c0_35 = arith.constant 0 : index
    %c0_36 = arith.constant 0 : index
    %79 = vector.load %arg10[%c0_35, %c0_36] : memref<384x128xbf16, #tpu.memory_space<vmem>>, vector<384x128xbf16>
    %cst_37 = arith.constant dense<0.000000e+00> : vector<128x128xf32>
    %80 = tpu.matmul %78, %79, %cst_37 {dimension_numbers = #tpu.dot_dimension_numbers<[1], [0], [0], [1], [0, 0, 1, 1], [], []>} : vector<128x384xbf16>, vector<384x128xbf16>, vector<128x128xf32> -> vector<128x128xf32>
    %c0_38 = arith.constant 0 : index
    %c0_39 = arith.constant 0 : index
    %81 = vector.load %arg11[%c0_38, %c0_39] : memref<1x128xf32, #tpu.memory_space<vmem>>, vector<1x128xf32>
    %82 = vector.broadcast %81 : vector<1x128xf32> to vector<128x128xf32>
    %83 = arith.addf %80, %82 : vector<128x128xf32>
    %cst_40 = arith.constant 0.000000e+00 : f32
    %84 = vector.broadcast %cst_40 : f32 to vector<128x128xf32>
    %85 = arith.cmpf oge, %83, %84 : vector<128x128xf32>
    %cst_41 = arith.constant 0.00999999977 : f32
    %86 = vector.broadcast %cst_41 : f32 to vector<128x128xf32>
    %87 = arith.mulf %86, %83 : vector<128x128xf32>
    %88 = arith.select %85, %83, %87 : vector<128x128xi1>, vector<128x128xf32>
    %89 = vector.shape_cast %49 : vector<8x16x128xf32> to vector<128x128xf32>
    %90 = arith.addf %88, %89 : vector<128x128xf32>
    %91 = vector.shape_cast %90 : vector<128x128xf32> to vector<8x16x128xf32>
    %92 = arith.truncf %91 : vector<8x16x128xf32> to vector<8x16x128xbf16>
    %cst_42 = arith.constant 0.000000e+00 : bf16
    %93 = vector.broadcast %cst_42 : bf16 to vector<8x8x128xbf16>
    %94 = vector.extract_strided_slice %92 {offsets = [0, 0, 0], sizes = [8, 8, 128], strides = [1, 1, 1]} : vector<8x16x128xbf16> to vector<8x8x128xbf16>
    %95 = tpu.concatenate %93, %94 in 1 : vector<8x8x128xbf16>, vector<8x8x128xbf16> -> vector<8x16x128xbf16>
    %cst_43 = arith.constant 0.000000e+00 : bf16
    %96 = vector.broadcast %cst_43 : bf16 to vector<8x4x128xbf16>
    %97 = vector.extract_strided_slice %92 {offsets = [0, 0, 0], sizes = [8, 12, 128], strides = [1, 1, 1]} : vector<8x16x128xbf16> to vector<8x12x128xbf16>
    %98 = tpu.concatenate %96, %97 in 1 : vector<8x4x128xbf16>, vector<8x12x128xbf16> -> vector<8x16x128xbf16>
    %99 = tpu.concatenate %95, %98, %92 in 2 : vector<8x16x128xbf16>, vector<8x16x128xbf16>, vector<8x16x128xbf16> -> vector<8x16x384xbf16>
    %100 = vector.shape_cast %99 : vector<8x16x384xbf16> to vector<128x384xbf16>
    %c0_44 = arith.constant 0 : index
    %c0_45 = arith.constant 0 : index
    %101 = vector.load %arg12[%c0_44, %c0_45] : memref<384x128xbf16, #tpu.memory_space<vmem>>, vector<384x128xbf16>
    %cst_46 = arith.constant dense<0.000000e+00> : vector<128x128xf32>
    %102 = tpu.matmul %100, %101, %cst_46 {dimension_numbers = #tpu.dot_dimension_numbers<[1], [0], [0], [1], [0, 0, 1, 1], [], []>} : vector<128x384xbf16>, vector<384x128xbf16>, vector<128x128xf32> -> vector<128x128xf32>
    %c0_47 = arith.constant 0 : index
    %c0_48 = arith.constant 0 : index
    %103 = vector.load %arg13[%c0_47, %c0_48] : memref<1x128xf32, #tpu.memory_space<vmem>>, vector<1x128xf32>
    %104 = vector.broadcast %103 : vector<1x128xf32> to vector<128x128xf32>
    %105 = arith.addf %102, %104 : vector<128x128xf32>
    %cst_49 = arith.constant 0.000000e+00 : f32
    %106 = vector.broadcast %cst_49 : f32 to vector<128x128xf32>
    %107 = arith.cmpf oge, %105, %106 : vector<128x128xf32>
    %cst_50 = arith.constant 0.00999999977 : f32
    %108 = vector.broadcast %cst_50 : f32 to vector<128x128xf32>
    %109 = arith.mulf %108, %105 : vector<128x128xf32>
    %110 = arith.select %107, %105, %109 : vector<128x128xi1>, vector<128x128xf32>
    %111 = vector.shape_cast %110 : vector<128x128xf32> to vector<8x16x128xf32>
    %112 = arith.truncf %111 : vector<8x16x128xf32> to vector<8x16x128xbf16>
    %cst_51 = arith.constant 0.000000e+00 : bf16
    %113 = vector.broadcast %cst_51 : bf16 to vector<8x8x128xbf16>
    %114 = vector.extract_strided_slice %112 {offsets = [0, 0, 0], sizes = [8, 8, 128], strides = [1, 1, 1]} : vector<8x16x128xbf16> to vector<8x8x128xbf16>
    %115 = tpu.concatenate %113, %114 in 1 : vector<8x8x128xbf16>, vector<8x8x128xbf16> -> vector<8x16x128xbf16>
    %cst_52 = arith.constant 0.000000e+00 : bf16
    %116 = vector.broadcast %cst_52 : bf16 to vector<8x4x128xbf16>
    %117 = vector.extract_strided_slice %112 {offsets = [0, 0, 0], sizes = [8, 12, 128], strides = [1, 1, 1]} : vector<8x16x128xbf16> to vector<8x12x128xbf16>
    %118 = tpu.concatenate %116, %117 in 1 : vector<8x4x128xbf16>, vector<8x12x128xbf16> -> vector<8x16x128xbf16>
    %119 = tpu.concatenate %115, %118, %112 in 2 : vector<8x16x128xbf16>, vector<8x16x128xbf16>, vector<8x16x128xbf16> -> vector<8x16x384xbf16>
    %120 = vector.shape_cast %119 : vector<8x16x384xbf16> to vector<128x384xbf16>
    %c0_53 = arith.constant 0 : index
    %c0_54 = arith.constant 0 : index
    %121 = vector.load %arg14[%c0_53, %c0_54] : memref<384x128xbf16, #tpu.memory_space<vmem>>, vector<384x128xbf16>
    %cst_55 = arith.constant dense<0.000000e+00> : vector<128x128xf32>
    %122 = tpu.matmul %120, %121, %cst_55 {dimension_numbers = #tpu.dot_dimension_numbers<[1], [0], [0], [1], [0, 0, 1, 1], [], []>} : vector<128x384xbf16>, vector<384x128xbf16>, vector<128x128xf32> -> vector<128x128xf32>
    %c0_56 = arith.constant 0 : index
    %c0_57 = arith.constant 0 : index
    %123 = vector.load %arg15[%c0_56, %c0_57] : memref<1x128xf32, #tpu.memory_space<vmem>>, vector<1x128xf32>
    %124 = vector.broadcast %123 : vector<1x128xf32> to vector<128x128xf32>
    %125 = arith.addf %122, %124 : vector<128x128xf32>
    %cst_58 = arith.constant 0.000000e+00 : f32
    %126 = vector.broadcast %cst_58 : f32 to vector<128x128xf32>
    %127 = arith.cmpf oge, %125, %126 : vector<128x128xf32>
    %cst_59 = arith.constant 0.00999999977 : f32
    %128 = vector.broadcast %cst_59 : f32 to vector<128x128xf32>
    %129 = arith.mulf %128, %125 : vector<128x128xf32>
    %130 = arith.select %127, %125, %129 : vector<128x128xi1>, vector<128x128xf32>
    %131 = arith.truncf %91 : vector<8x16x128xf32> to vector<8x16x128xbf16>
    %132 = vector.shape_cast %131 : vector<8x16x128xbf16> to vector<128x128xbf16>
    %c0_60 = arith.constant 0 : index
    %c0_61 = arith.constant 0 : index
    %133 = vector.load %arg16[%c0_60, %c0_61] : memref<128x128xbf16, #tpu.memory_space<vmem>>, vector<128x128xbf16>
    %cst_62 = arith.constant dense<0.000000e+00> : vector<128x128xf32>
    %134 = tpu.matmul %132, %133, %cst_62 {dimension_numbers = #tpu.dot_dimension_numbers<[1], [0], [0], [1], [0, 0, 1, 1], [], []>} : vector<128x128xbf16>, vector<128x128xbf16>, vector<128x128xf32> -> vector<128x128xf32>
    %c0_63 = arith.constant 0 : index
    %c0_64 = arith.constant 0 : index
    %135 = vector.load %arg17[%c0_63, %c0_64] : memref<1x128xf32, #tpu.memory_space<vmem>>, vector<1x128xf32>
    %136 = vector.broadcast %135 : vector<1x128xf32> to vector<128x128xf32>
    %137 = arith.addf %134, %136 : vector<128x128xf32>
    %138 = arith.addf %130, %137 : vector<128x128xf32>
    %139 = vector.shape_cast %138 : vector<128x128xf32> to vector<8x16x128xf32>
    %cst_65 = arith.constant dense<0xFF800000> : vector<8x128xf32>
    %140 = vector.multi_reduction <maximumf>, %139, %cst_65 [1] : vector<8x16x128xf32> to vector<8x128xf32>
    %141 = arith.truncf %140 : vector<8x128xf32> to vector<8x128xbf16>
    %c0_66 = arith.constant 0 : index
    %c0_67 = arith.constant 0 : index
    %142 = vector.load %arg18[%c0_66, %c0_67] : memref<128x128xbf16, #tpu.memory_space<vmem>>, vector<128x128xbf16>
    %cst_68 = arith.constant dense<0.000000e+00> : vector<8x128xf32>
    %143 = tpu.matmul %141, %142, %cst_68 {dimension_numbers = #tpu.dot_dimension_numbers<[1], [0], [0], [1], [0, 0, 1, 1], [], []>} : vector<8x128xbf16>, vector<128x128xbf16>, vector<8x128xf32> -> vector<8x128xf32>
    %c0_69 = arith.constant 0 : index
    %c0_70 = arith.constant 0 : index
    %144 = vector.load %arg19[%c0_69, %c0_70] : memref<1x128xf32, #tpu.memory_space<vmem>>, vector<1x128xf32>
    %145 = vector.broadcast %144 : vector<1x128xf32> to vector<8x128xf32>
    %146 = arith.addf %143, %145 : vector<8x128xf32>
    %c0_71 = arith.constant 0 : index
    %c0_72 = arith.constant 0 : index
    %147 = vector.load %arg20[%c0_71, %c0_72] : memref<8x128xf32, #tpu.memory_space<vmem>>, vector<8x128xf32>
    tpu.vector_store %arg20[%c0_71, %c0_72], %146 {strides = array<i32>} : memref<8x128xf32, #tpu.memory_space<vmem>>, vector<8x128xf32>,
    return
  }
  func.func @transform_0(%arg0: i32) -> (i32, i32, i32) {
    %c0_i32 = arith.constant 0 : i32
    %c0_i32_0 = arith.constant 0 : i32
    %c0_i32_1 = arith.constant 0 : i32
    return %arg0, %c0_i32, %c0_i32_0 : i32, i32, i32
  }
  func.func @transform_1(%arg0: i32) -> (i32, i32) {
    %c0_i32 = arith.constant 0 : i32
    %c0_i32_0 = arith.constant 0 : i32
    %c0_i32_1 = arith.constant 0 : i32
    return %c0_i32, %c0_i32_0 : i32, i32
  }
  func.func @transform_2(%arg0: i32) -> (i32, i32) {
    %c0_i32 = arith.constant 0 : i32
    %c0_i32_0 = arith.constant 0 : i32
    %c0_i32_1 = arith.constant 0 : i32
    return %c0_i32, %c0_i32_0 : i32, i32
  }
  func.func @transform_3(%arg0: i32) -> (i32, i32) {
    %c0_i32 = arith.constant 0 : i32
    %c0_i32_0 = arith.constant 0 : i32
    %c0_i32_1 = arith.constant 0 : i32
    return %c0_i32, %c0_i32_0 : i32, i32
  }
  func.func @transform_4(%arg0: i32) -> (i32, i32) {
    %c0_i32 = arith.constant 0 : i32
    %c0_i32_0 = arith.constant 0 : i32
    %c0_i32_1 = arith.constant 0 : i32
    return %c0_i32, %c0_i32_0 : i32, i32
  }
  func.func @transform_5(%arg0: i32) -> (i32, i32) {
    %c0_i32 = arith.constant 0 : i32
    %c0_i32_0 = arith.constant 0 : i32
    %c0_i32_1 = arith.constant 0 : i32
    return %c0_i32, %c0_i32_0 : i32, i32
  }
  func.func @transform_6(%arg0: i32) -> (i32, i32) {
    %c0_i32 = arith.constant 0 : i32
    %c0_i32_0 = arith.constant 0 : i32
    %c0_i32_1 = arith.constant 0 : i32
    return %c0_i32, %c0_i32_0 : i32, i32
  }
  func.func @transform_7(%arg0: i32) -> (i32, i32) {
    %c0_i32 = arith.constant 0 : i32
    %c0_i32_0 = arith.constant 0 : i32
    %c0_i32_1 = arith.constant 0 : i32
    return %c0_i32, %c0_i32_0 : i32, i32
  }
  func.func @transform_8(%arg0: i32) -> (i32, i32) {
    %c0_i32 = arith.constant 0 : i32
    %c0_i32_0 = arith.constant 0 : i32
    %c0_i32_1 = arith.constant 0 : i32
    return %c0_i32, %c0_i32_0 : i32, i32
  }
  func.func @transform_9(%arg0: i32) -> (i32, i32) {
    %c0_i32 = arith.constant 0 : i32
    %c0_i32_0 = arith.constant 0 : i32
    %c0_i32_1 = arith.constant 0 : i32
    return %c0_i32, %c0_i32_0 : i32, i32
  }
  func.func @transform_10(%arg0: i32) -> (i32, i32) {
    %c0_i32 = arith.constant 0 : i32
    %c0_i32_0 = arith.constant 0 : i32
    %c0_i32_1 = arith.constant 0 : i32
    return %c0_i32, %c0_i32_0 : i32, i32
  }
  func.func @transform_11(%arg0: i32) -> (i32, i32) {
    %c0_i32 = arith.constant 0 : i32
    %c0_i32_0 = arith.constant 0 : i32
    %c0_i32_1 = arith.constant 0 : i32
    return %c0_i32, %c0_i32_0 : i32, i32
  }
  func.func @transform_12(%arg0: i32) -> (i32, i32) {
    %c0_i32 = arith.constant 0 : i32
    %c0_i32_0 = arith.constant 0 : i32
    %c0_i32_1 = arith.constant 0 : i32
    return %c0_i32, %c0_i32_0 : i32, i32
  }
  func.func @transform_13(%arg0: i32) -> (i32, i32) {
    %c0_i32 = arith.constant 0 : i32
    %c0_i32_0 = arith.constant 0 : i32
    %c0_i32_1 = arith.constant 0 : i32
    return %c0_i32, %c0_i32_0 : i32, i32
  }
  func.func @transform_14(%arg0: i32) -> (i32, i32) {
    %c0_i32 = arith.constant 0 : i32
    %c0_i32_0 = arith.constant 0 : i32
    %c0_i32_1 = arith.constant 0 : i32
    return %c0_i32, %c0_i32_0 : i32, i32
  }
  func.func @transform_15(%arg0: i32) -> (i32, i32) {
    %c0_i32 = arith.constant 0 : i32
    %c0_i32_0 = arith.constant 0 : i32
    %c0_i32_1 = arith.constant 0 : i32
    return %c0_i32, %c0_i32_0 : i32, i32
  }
  func.func @transform_16(%arg0: i32) -> (i32, i32) {
    %c0_i32 = arith.constant 0 : i32
    %c0_i32_0 = arith.constant 0 : i32
    %c0_i32_1 = arith.constant 0 : i32
    return %c0_i32, %c0_i32_0 : i32, i32
  }
  func.func @transform_17(%arg0: i32) -> (i32, i32) {
    %c0_i32 = arith.constant 0 : i32
    %c0_i32_0 = arith.constant 0 : i32
    %c0_i32_1 = arith.constant 0 : i32
    return %c0_i32, %c0_i32_0 : i32, i32
  }
  func.func @transform_18(%arg0: i32) -> (i32, i32) {
    %c0_i32 = arith.constant 0 : i32
    %c0_i32_0 = arith.constant 0 : i32
    %c0_i32_1 = arith.constant 0 : i32
    return %c0_i32, %c0_i32_0 : i32, i32
  }
  func.func @transform_19(%arg0: i32) -> (i32, i32) {
    %c0_i32 = arith.constant 0 : i32
    %c0_i32_0 = arith.constant 0 : i32
    return %arg0, %c0_i32 : i32, i32
  }
}

</mosaic_0001>

<llo_original>
// kernel: tpu_custom_call.1
$region0: #{tpu_custom_call.1}
  #allocation0 [shape = 'u32[]', space=smem, size = 0x4, offset = 0x4, fixed_abs, tag = 'smem constant byte address 0x4 - core index']
  #allocation1 [shape = 'u32[144,128]{1,0:T(1,128)}', space=vmem, size = 0x12000, scoped, tag = 'internal scratch']
  %s0 = inlined_call_operand.hbm [shape: bf16[8,16,128], index: 0, kind: input, shape index: {}]
  %s1 = inlined_call_operand.hbm [shape: bf16[384,128], index: 1, kind: input, shape index: {}]
  %s2 = inlined_call_operand.hbm [shape: f32[1,128], index: 2, kind: input, shape index: {}]
  %s3 = inlined_call_operand.hbm [shape: bf16[384,128], index: 3, kind: input, shape index: {}]
  %s4 = inlined_call_operand.hbm [shape: f32[1,128], index: 4, kind: input, shape index: {}]
  %s5 = inlined_call_operand.hbm [shape: bf16[128,128], index: 5, kind: input, shape index: {}]
  %s6 = inlined_call_operand.hbm [shape: f32[1,128], index: 6, kind: input, shape index: {}]
  %s7 = inlined_call_operand.hbm [shape: bf16[384,128], index: 7, kind: input, shape index: {}]
  %s8 = inlined_call_operand.hbm [shape: f32[1,128], index: 8, kind: input, shape index: {}]
  %s9 = inlined_call_operand.hbm [shape: bf16[384,128], index: 9, kind: input, shape index: {}]
  %s10 = inlined_call_operand.hbm [shape: f32[1,128], index: 10, kind: input, shape index: {}]
  %s11 = inlined_call_operand.hbm [shape: bf16[384,128], index: 11, kind: input, shape index: {}]
  %s12 = inlined_call_operand.hbm [shape: f32[1,128], index: 12, kind: input, shape index: {}]
  %s13 = inlined_call_operand.hbm [shape: bf16[384,128], index: 13, kind: input, shape index: {}]
  %s14 = inlined_call_operand.hbm [shape: f32[1,128], index: 14, kind: input, shape index: {}]
  %s15 = inlined_call_operand.hbm [shape: bf16[128,128], index: 15, kind: input, shape index: {}]
  %s16 = inlined_call_operand.hbm [shape: f32[1,128], index: 16, kind: input, shape index: {}]
  %s17 = inlined_call_operand.vmem [shape: bf16[128,128], index: 17, kind: input, shape index: {}]
  %s18 = inlined_call_operand.vmem [shape: f32[1,128], index: 18, kind: input, shape index: {}]
  %s19 = inlined_call_operand.hbm [shape: f32[8,128], index: 19, kind: output, shape index: {}]
  %s20 = sld [smem:[#allocation0]]
  $region154: #{tpu_custom_call.1} parent=0
    _
  %s22 = ssub.s32 1, %s20
  %s23 = scalar_select 0, %s22, %s20
  $region1: #{tpu_custom_call.1} parent=0
    #allocation2 [shape = 'u8[32768]{0}', space=vmem, size = 0x8000, scoped, tag = 'input window, operand 0, single buffered']
    #allocation3 [shape = 's32[1]{0}', space=sflag, size = 0x4, scoped, tag = 'scoped memory for tpu_custom_call.1']
    #allocation4 [shape = 's32[1]{0}', space=sflag, size = 0x4, scoped, tag = 'scoped memory for tpu_custom_call.1']
    #allocation5 [shape = 'u8[98304]{0}', space=vmem, size = 0x18000, scoped, tag = 'input window, operand 1, single buffered']
    #allocation6 [shape = 's32[1]{0}', space=sflag, size = 0x4, scoped, tag = 'scoped memory for tpu_custom_call.1']
    #allocation7 [shape = 'u8[512]{0}', space=vmem, size = 0x400, scoped, tag = 'input window, operand 2, single buffered']
    #allocation8 [shape = 'u8[98304]{0}', space=vmem, size = 0x18000, scoped, tag = 'input window, operand 3, single buffered']
    #allocation9 [shape = 's32[1]{0}', space=sflag, size = 0x4, scoped, tag = 'scoped memory for tpu_custom_call.1']
    #allocation10 [shape = 'u8[512]{0}', space=vmem, size = 0x400, scoped, tag = 'input window, operand 4, single buffered']
    #allocation11 [shape = 'u8[32768]{0}', space=vmem, size = 0x8000, scoped, tag = 'input window, operand 5, single buffered']
    #allocation12 [shape = 's32[1]{0}', space=sflag, size = 0x4, scoped, tag = 'scoped memory for tpu_custom_call.1']
    #allocation13 [shape = 'u8[512]{0}', space=vmem, size = 0x400, scoped, tag = 'input window, operand 6, single buffered']
    #allocation14 [shape = 'u8[98304]{0}', space=vmem, size = 0x18000, scoped, tag = 'input window, operand 7, single buffered']
    #allocation15 [shape = 's32[1]{0}', space=sflag, size = 0x4, scoped, tag = 'scoped memory for tpu_custom_call.1']
    #allocation16 [shape = 'u8[512]{0}', space=vmem, size = 0x400, scoped, tag = 'input window, operand 8, single buffered']
    #allocation17 [shape = 'u8[98304]{0}', space=vmem, size = 0x18000, scoped, tag = 'input window, operand 9, single buffered']
    #allocation18 [shape = 's32[1]{0}', space=sflag, size = 0x4, scoped, tag = 'scoped memory for tpu_custom_call.1']
    #allocation19 [shape = 'u8[512]{0}', space=vmem, size = 0x400, scoped, tag = 'input window, operand 10, single buffered']
    #allocation20 [shape = 'u8[98304]{0}', space=vmem, size = 0x18000, scoped, tag = 'input window, operand 11, single buffered']
    #allocation21 [shape = 's32[1]{0}', space=sflag, size = 0x4, scoped, tag = 'scoped memory for tpu_custom_call.1']
    #allocation22 [shape = 'u8[512]{0}', space=vmem, size = 0x400, scoped, tag = 'input window, operand 12, single buffered']
    #allocation23 [shape = 'u8[98304]{0}', space=vmem, size = 0x18000, scoped, tag = 'input window, operand 13, single buffered']
    #allocation24 [shape = 's32[1]{0}', space=sflag, size = 0x4, scoped, tag = 'scoped memory for tpu_custom_call.1']
    #allocation25 [shape = 'u8[512]{0}', space=vmem, size = 0x400, scoped, tag = 'input window, operand 14, single buffered']
    #allocation26 [shape = 'u8[32768]{0}', space=vmem, size = 0x8000, scoped, tag = 'input window, operand 15, single buffered']
    #allocation27 [shape = 's32[1]{0}', space=sflag, size = 0x4, scoped, tag = 'scoped memory for tpu_custom_call.1']
    #allocation28 [shape = 'u8[512]{0}', space=vmem, size = 0x400, scoped, tag = 'input window, operand 16, single buffered']
    #allocation29 [shape = 'u8[4096]{0}', space=vmem, size = 0x1000, scoped, tag = 'output window, operand 0, single buffered']
    %24 = vsyncpa [#allocation3], 0
    %25 = vsyncpa [#allocation6], 0
    %26 = vsyncpa [#allocation9], 0
    %27 = vsyncpa [#allocation12], 0
    %28 = vsyncpa [#allocation15], 0
    %29 = vsyncpa [#allocation18], 0
    %30 = vsyncpa [#allocation21], 0
    %31 = vsyncpa [#allocation24], 0
    %32 = vsyncpa [#allocation27], 0
    %33 = vsyncpa [#allocation4], 0
    // Predicated region
    $region2: #{tpu_custom_call.1} parent=1 // pred_check
      _
    $region3: #{tpu_custom_call.1} parent=1 // pred_check_branch
      %35 = sbr.rel (0) target = $region5
    $region4: #{tpu_custom_call.1} parent=1 // pred_region
      %s37 = ssub.s32 1024, 1024
      %38 = vsyncadd [#allocation3], %s37
      %s39 = sshll.u32 [#allocation2], 4
      %s40 = int_to_ptr.vmem [resolvable:$true] %s39
      %45 = dma.hbm_to_vmem [thread:$0]  %s0, 1024, %s40, [#allocation3], 64, 64, 4
    $region5: #{tpu_custom_call.1} parent=1 // pred_fallthru
      _
    // Predicated region
    $region6: #{tpu_custom_call.1} parent=1 // pred_check
      _
    $region7: #{tpu_custom_call.1} parent=1 // pred_check_branch
      %47 = sbr.rel (0) target = $region9
    $region8: #{tpu_custom_call.1} parent=1 // pred_region
      %s49 = ssub.s32 3072, 3072
      %50 = vsyncadd [#allocation6], %s49
      %s51 = sshll.u32 [#allocation5], 4
      %s52 = int_to_ptr.vmem [resolvable:$true] %s51
      %57 = dma.hbm_to_vmem [thread:$0]  %s1, 3072, %s52, [#allocation6], 64, 64, 4
    $region9: #{tpu_custom_call.1} parent=1 // pred_fallthru
      _
    // Predicated region
    $region10: #{tpu_custom_call.1} parent=1 // pred_check
      _
    $region11: #{tpu_custom_call.1} parent=1 // pred_check_branch
      %59 = sbr.rel (0) target = $region13
    $region12: #{tpu_custom_call.1} parent=1 // pred_region
      %s61 = ssub.s32 16, 16
      %62 = vsyncadd [#allocation6], %s61
      %s64 = sshll.u32 [#allocation7], 4
      %s65 = int_to_ptr.vmem [resolvable:$true] %s64
      %67 = dma.hbm_to_vmem [thread:$0]  %s2, 16, %s65, [#allocation6]
    $region13: #{tpu_custom_call.1} parent=1 // pred_fallthru
      _
    // Predicated region
    $region14: #{tpu_custom_call.1} parent=1 // pred_check
      _
    $region15: #{tpu_custom_call.1} parent=1 // pred_check_branch
      %69 = sbr.rel (0) target = $region17
    $region16: #{tpu_custom_call.1} parent=1 // pred_region
      %s71 = ssub.s32 3072, 3072
      %72 = vsyncadd [#allocation9], %s71
      %s73 = sshll.u32 [#allocation8], 4
      %s74 = int_to_ptr.vmem [resolvable:$true] %s73
      %79 = dma.hbm_to_vmem [thread:$0]  %s3, 3072, %s74, [#allocation9], 64, 64, 4
    $region17: #{tpu_custom_call.1} parent=1 // pred_fallthru
      _
    // Predicated region
    $region18: #{tpu_custom_call.1} parent=1 // pred_check
      _
    $region19: #{tpu_custom_call.1} parent=1 // pred_check_branch
      %81 = sbr.rel (0) target = $region21
    $region20: #{tpu_custom_call.1} parent=1 // pred_region
      %s83 = ssub.s32 16, 16
      %84 = vsyncadd [#allocation9], %s83
      %s86 = sshll.u32 [#allocation10], 4
      %s87 = int_to_ptr.vmem [resolvable:$true] %s86
      %89 = dma.hbm_to_vmem [thread:$0]  %s4, 16, %s87, [#allocation9]
    $region21: #{tpu_custom_call.1} parent=1 // pred_fallthru
      _
    // Predicated region
    $region22: #{tpu_custom_call.1} parent=1 // pred_check
      _
    $region23: #{tpu_custom_call.1} parent=1 // pred_check_branch
      %91 = sbr.rel (0) target = $region25
    $region24: #{tpu_custom_call.1} parent=1 // pred_region
      %s93 = ssub.s32 1024, 1024
      %94 = vsyncadd [#allocation12], %s93
      %s95 = sshll.u32 [#allocation11], 4
      %s96 = int_to_ptr.vmem [resolvable:$true] %s95
      %101 = dma.hbm_to_vmem [thread:$0]  %s5, 1024, %s96, [#allocation12], 64, 64, 4
    $region25: #{tpu_custom_call.1} parent=1 // pred_fallthru
      _
    // Predicated region
    $region26: #{tpu_custom_call.1} parent=1 // pred_check
      _
    $region27: #{tpu_custom_call.1} parent=1 // pred_check_branch
      %103 = sbr.rel (0) target = $region29
    $region28: #{tpu_custom_call.1} parent=1 // pred_region
      %s105 = ssub.s32 16, 16
      %106 = vsyncadd [#allocation12], %s105
      %s108 = sshll.u32 [#allocation13], 4
      %s109 = int_to_ptr.vmem [resolvable:$true] %s108
      %111 = dma.hbm_to_vmem [thread:$0]  %s6, 16, %s109, [#allocation12]
    $region29: #{tpu_custom_call.1} parent=1 // pred_fallthru
      _
    // Predicated region
    $region30: #{tpu_custom_call.1} parent=1 // pred_check
      _
    $region31: #{tpu_custom_call.1} parent=1 // pred_check_branch
      %113 = sbr.rel (0) target = $region33
    $region32: #{tpu_custom_call.1} parent=1 // pred_region
      %s115 = ssub.s32 3072, 3072
      %116 = vsyncadd [#allocation15], %s115
      %s117 = sshll.u32 [#allocation14], 4
      %s118 = int_to_ptr.vmem [resolvable:$true] %s117
      %123 = dma.hbm_to_vmem [thread:$0]  %s7, 3072, %s118, [#allocation15], 64, 64, 4
    $region33: #{tpu_custom_call.1} parent=1 // pred_fallthru
      _
    // Predicated region
    $region34: #{tpu_custom_call.1} parent=1 // pred_check
      _
    $region35: #{tpu_custom_call.1} parent=1 // pred_check_branch
      %125 = sbr.rel (0) target = $region37
    $region36: #{tpu_custom_call.1} parent=1 // pred_region
      %s127 = ssub.s32 16, 16
      %128 = vsyncadd [#allocation15], %s127
      %s130 = sshll.u32 [#allocation16], 4
      %s131 = int_to_ptr.vmem [resolvable:$true] %s130
      %133 = dma.hbm_to_vmem [thread:$0]  %s8, 16, %s131, [#allocation15]
    $region37: #{tpu_custom_call.1} parent=1 // pred_fallthru
      _
    // Predicated region
    $region38: #{tpu_custom_call.1} parent=1 // pred_check
      _
    $region39: #{tpu_custom_call.1} parent=1 // pred_check_branch
      %135 = sbr.rel (0) target = $region41
    $region40: #{tpu_custom_call.1} parent=1 // pred_region
      %s137 = ssub.s32 3072, 3072
      %138 = vsyncadd [#allocation18], %s137
      %s139 = sshll.u32 [#allocation17], 4
      %s140 = int_to_ptr.vmem [resolvable:$true] %s139
      %145 = dma.hbm_to_vmem [thread:$0]  %s9, 3072, %s140, [#allocation18], 64, 64, 4
    $region41: #{tpu_custom_call.1} parent=1 // pred_fallthru
      _
    // Predicated region
    $region42: #{tpu_custom_call.1} parent=1 // pred_check
      _
    $region43: #{tpu_custom_call.1} parent=1 // pred_check_branch
      %147 = sbr.rel (0) target = $region45
    $region44: #{tpu_custom_call.1} parent=1 // pred_region
      %s149 = ssub.s32 16, 16
      %150 = vsyncadd [#allocation18], %s149
      %s152 = sshll.u32 [#allocation19], 4
      %s153 = int_to_ptr.vmem [resolvable:$true] %s152
      %155 = dma.hbm_to_vmem [thread:$0]  %s10, 16, %s153, [#allocation18]
    $region45: #{tpu_custom_call.1} parent=1 // pred_fallthru
      _
    // Predicated region
    $region46: #{tpu_custom_call.1} parent=1 // pred_check
      _
    $region47: #{tpu_custom_call.1} parent=1 // pred_check_branch
      %157 = sbr.rel (0) target = $region49
    $region48: #{tpu_custom_call.1} parent=1 // pred_region
      %s159 = ssub.s32 3072, 3072
      %160 = vsyncadd [#allocation21], %s159
      %s161 = sshll.u32 [#allocation20], 4
      %s162 = int_to_ptr.vmem [resolvable:$true] %s161
      %167 = dma.hbm_to_vmem [thread:$0]  %s11, 3072, %s162, [#allocation21], 64, 64, 4
    $region49: #{tpu_custom_call.1} parent=1 // pred_fallthru
      _
    // Predicated region
    $region50: #{tpu_custom_call.1} parent=1 // pred_check
      _
    $region51: #{tpu_custom_call.1} parent=1 // pred_check_branch
      %169 = sbr.rel (0) target = $region53
    $region52: #{tpu_custom_call.1} parent=1 // pred_region
      %s171 = ssub.s32 16, 16
      %172 = vsyncadd [#allocation21], %s171
      %s174 = sshll.u32 [#allocation22], 4
      %s175 = int_to_ptr.vmem [resolvable:$true] %s174
      %177 = dma.hbm_to_vmem [thread:$0]  %s12, 16, %s175, [#allocation21]
    $region53: #{tpu_custom_call.1} parent=1 // pred_fallthru
      _
    // Predicated region
    $region54: #{tpu_custom_call.1} parent=1 // pred_check
      _
    $region55: #{tpu_custom_call.1} parent=1 // pred_check_branch
      %179 = sbr.rel (0) target = $region57
    $region56: #{tpu_custom_call.1} parent=1 // pred_region
      %s181 = ssub.s32 3072, 3072
      %182 = vsyncadd [#allocation24], %s181
      %s183 = sshll.u32 [#allocation23], 4
      %s184 = int_to_ptr.vmem [resolvable:$true] %s183
      %189 = dma.hbm_to_vmem [thread:$0]  %s13, 3072, %s184, [#allocation24], 64, 64, 4
    $region57: #{tpu_custom_call.1} parent=1 // pred_fallthru
      _
    // Predicated region
    $region58: #{tpu_custom_call.1} parent=1 // pred_check
      _
    $region59: #{tpu_custom_call.1} parent=1 // pred_check_branch
      %191 = sbr.rel (0) target = $region61
    $region60: #{tpu_custom_call.1} parent=1 // pred_region
      %s193 = ssub.s32 16, 16
      %194 = vsyncadd [#allocation24], %s193
      %s196 = sshll.u32 [#allocation25], 4
      %s197 = int_to_ptr.vmem [resolvable:$true] %s196
      %199 = dma.hbm_to_vmem [thread:$0]  %s14, 16, %s197, [#allocation24]
    $region61: #{tpu_custom_call.1} parent=1 // pred_fallthru
      _
    // Predicated region
    $region62: #{tpu_custom_call.1} parent=1 // pred_check
      _
    $region63: #{tpu_custom_call.1} parent=1 // pred_check_branch
      %201 = sbr.rel (0) target = $region65
    $region64: #{tpu_custom_call.1} parent=1 // pred_region
      %s203 = ssub.s32 1024, 1024
      %204 = vsyncadd [#allocation27], %s203
      %s205 = sshll.u32 [#allocation26], 4
      %s206 = int_to_ptr.vmem [resolvable:$true] %s205
      %211 = dma.hbm_to_vmem [thread:$0]  %s15, 1024, %s206, [#allocation27], 64, 64, 4
    $region65: #{tpu_custom_call.1} parent=1 // pred_fallthru
      _
    // Predicated region
    $region66: #{tpu_custom_call.1} parent=1 // pred_check
      _
    $region67: #{tpu_custom_call.1} parent=1 // pred_check_branch
      %213 = sbr.rel (0) target = $region69
    $region68: #{tpu_custom_call.1} parent=1 // pred_region
      %s215 = ssub.s32 16, 16
      %216 = vsyncadd [#allocation27], %s215
      %s218 = sshll.u32 [#allocation28], 4
      %s219 = int_to_ptr.vmem [resolvable:$true] %s218
      %221 = dma.hbm_to_vmem [thread:$0]  %s16, 16, %s219, [#allocation27]
    $region69: #{tpu_custom_call.1} parent=1 // pred_fallthru
      _
    // Predicated region
    $region70: #{tpu_custom_call.1} parent=1 // pred_check
      _
    $region71: #{tpu_custom_call.1} parent=1 // pred_check_branch
      %223 = sbr.rel (0) target = $region73
    $region72: #{tpu_custom_call.1} parent=1 // pred_region
      _
    $region73: #{tpu_custom_call.1} parent=1 // pred_fallthru
      _
    // Predicated region
    $region74: #{tpu_custom_call.1} parent=1 // pred_check
      _
    $region75: #{tpu_custom_call.1} parent=1 // pred_check_branch
      %225 = sbr.rel (0) target = $region77
    $region76: #{tpu_custom_call.1} parent=1 // pred_region
      _
    $region77: #{tpu_custom_call.1} parent=1 // pred_fallthru
      _
    // Predicated region
    $region78: #{tpu_custom_call.1} parent=1 // pred_check
      _
    $region79: #{tpu_custom_call.1} parent=1 // pred_check_branch
      %227 = sbr.rel (0) target = $region81
    $region80: #{tpu_custom_call.1} parent=1 // pred_region
      %228 = dma.done [#allocation3], 1024
    $region81: #{tpu_custom_call.1} parent=1 // pred_fallthru
      _
    // Predicated region
    $region82: #{tpu_custom_call.1} parent=1 // pred_check
      _
    $region83: #{tpu_custom_call.1} parent=1 // pred_check_branch
      %230 = sbr.rel (0) target = $region85
    $region84: #{tpu_custom_call.1} parent=1 // pred_region
      %231 = dma.done [#allocation6], 3072
    $region85: #{tpu_custom_call.1} parent=1 // pred_fallthru
      _
    // Predicated region
    $region86: #{tpu_custom_call.1} parent=1 // pred_check
      _
    $region87: #{tpu_custom_call.1} parent=1 // pred_check_branch
      %233 = sbr.rel (0) target = $region89
    $region88: #{tpu_custom_call.1} parent=1 // pred_region
      %234 = dma.done [#allocation6], 16
    $region89: #{tpu_custom_call.1} parent=1 // pred_fallthru
      _
    // Predicated region
    $region90: #{tpu_custom_call.1} parent=1 // pred_check
      _
    $region91: #{tpu_custom_call.1} parent=1 // pred_check_branch
      %236 = sbr.rel (0) target = $region93
    $region92: #{tpu_custom_call.1} parent=1 // pred_region
      %237 = dma.done [#allocation9], 3072
    $region93: #{tpu_custom_call.1} parent=1 // pred_fallthru
      _
    // Predicated region
    $region94: #{tpu_custom_call.1} parent=1 // pred_check
      _
    $region95: #{tpu_custom_call.1} parent=1 // pred_check_branch
      %239 = sbr.rel (0) target = $region97
    $region96: #{tpu_custom_call.1} parent=1 // pred_region
      %240 = dma.done [#allocation9], 16
    $region97: #{tpu_custom_call.1} parent=1 // pred_fallthru
      _
    // Predicated region
    $region98: #{tpu_custom_call.1} parent=1 // pred_check
      _
    $region99: #{tpu_custom_call.1} parent=1 // pred_check_branch
      %242 = sbr.rel (0) target = $region101
    $region100: #{tpu_custom_call.1} parent=1 // pred_region
      %243 = dma.done [#allocation12], 1024
    $region101: #{tpu_custom_call.1} parent=1 // pred_fallthru
      _
    // Predicated region
    $region102: #{tpu_custom_call.1} parent=1 // pred_check
      _
    $region103: #{tpu_custom_call.1} parent=1 // pred_check_branch
      %245 = sbr.rel (0) target = $region105
    $region104: #{tpu_custom_call.1} parent=1 // pred_region
      %246 = dma.done [#allocation12], 16
    $region105: #{tpu_custom_call.1} parent=1 // pred_fallthru
      _
    // Predicated region
    $region106: #{tpu_custom_call.1} parent=1 // pred_check
      _
    $region107: #{tpu_custom_call.1} parent=1 // pred_check_branch
      %248 = sbr.rel (0) target = $region109
    $region108: #{tpu_custom_call.1} parent=1 // pred_region
      %249 = dma.done [#allocation15], 3072
    $region109: #{tpu_custom_call.1} parent=1 // pred_fallthru
      _
    // Predicated region
    $region110: #{tpu_custom_call.1} parent=1 // pred_check
      _
    $region111: #{tpu_custom_call.1} parent=1 // pred_check_branch
      %251 = sbr.rel (0) target = $region113
    $region112: #{tpu_custom_call.1} parent=1 // pred_region
      %252 = dma.done [#allocation15], 16
    $region113: #{tpu_custom_call.1} parent=1 // pred_fallthru
      _
    // Predicated region
    $region114: #{tpu_custom_call.1} parent=1 // pred_check
      _
    $region115: #{tpu_custom_call.1} parent=1 // pred_check_branch
      %254 = sbr.rel (0) target = $region117
    $region116: #{tpu_custom_call.1} parent=1 // pred_region
      %255 = dma.done [#allocation18], 3072
    $region117: #{tpu_custom_call.1} parent=1 // pred_fallthru
      _
    // Predicated region
    $region118: #{tpu_custom_call.1} parent=1 // pred_check
      _
    $region119: #{tpu_custom_call.1} parent=1 // pred_check_branch
      %257 = sbr.rel (0) target = $region121
    $region120: #{tpu_custom_call.1} parent=1 // pred_region
      %258 = dma.done [#allocation18], 16
    $region121: #{tpu_custom_call.1} parent=1 // pred_fallthru
      _
    // Predicated region
    $region122: #{tpu_custom_call.1} parent=1 // pred_check
      _
    $region123: #{tpu_custom_call.1} parent=1 // pred_check_branch
      %260 = sbr.rel (0) target = $region125
    $region124: #{tpu_custom_call.1} parent=1 // pred_region
      %261 = dma.done [#allocation21], 3072
    $region125: #{tpu_custom_call.1} parent=1 // pred_fallthru
      _
    // Predicated region
    $region126: #{tpu_custom_call.1} parent=1 // pred_check
      _
    $region127: #{tpu_custom_call.1} parent=1 // pred_check_branch
      %263 = sbr.rel (0) target = $region129
    $region128: #{tpu_custom_call.1} parent=1 // pred_region
      %264 = dma.done [#allocation21], 16
    $region129: #{tpu_custom_call.1} parent=1 // pred_fallthru
      _
    // Predicated region
    $region130: #{tpu_custom_call.1} parent=1 // pred_check
      _
    $region131: #{tpu_custom_call.1} parent=1 // pred_check_branch
      %266 = sbr.rel (0) target = $region133
    $region132: #{tpu_custom_call.1} parent=1 // pred_region
      %267 = dma.done [#allocation24], 3072
    $region133: #{tpu_custom_call.1} parent=1 // pred_fallthru
      _
    // Predicated region
    $region134: #{tpu_custom_call.1} parent=1 // pred_check
      _
    $region135: #{tpu_custom_call.1} parent=1 // pred_check_branch
      %269 = sbr.rel (0) target = $region137
    $region136: #{tpu_custom_call.1} parent=1 // pred_region
      %270 = dma.done [#allocation24], 16
    $region137: #{tpu_custom_call.1} parent=1 // pred_fallthru
      _
    // Predicated region
    $region138: #{tpu_custom_call.1} parent=1 // pred_check
      _
    $region139: #{tpu_custom_call.1} parent=1 // pred_check_branch
      %272 = sbr.rel (0) target = $region141
    $region140: #{tpu_custom_call.1} parent=1 // pred_region
      %273 = dma.done [#allocation27], 1024
    $region141: #{tpu_custom_call.1} parent=1 // pred_fallthru
      _
    // Predicated region
    $region142: #{tpu_custom_call.1} parent=1 // pred_check
      _
    $region143: #{tpu_custom_call.1} parent=1 // pred_check_branch
      %275 = sbr.rel (0) target = $region145
    $region144: #{tpu_custom_call.1} parent=1 // pred_region
      %276 = dma.done [#allocation27], 16
    $region145: #{tpu_custom_call.1} parent=1 // pred_fallthru
      _
    %v278 = vld [vmem:[#allocation2] sm:$0xf]
    %v279 = vld [vmem:[#allocation2 + $0x4] sm:$0xf]
    %v280 = vld [vmem:[#allocation2 + $0x8] sm:$0xf]
    %v281 = vld [vmem:[#allocation2 + $0xc] sm:$0xf]
    %v282 = vld [vmem:[#allocation2 + $0x10] sm:$0xf]
    %v283 = vld [vmem:[#allocation2 + $0x14] sm:$0xf]
    %v284 = vld [vmem:[#allocation2 + $0x18] sm:$0xf]
    %v285 = vld [vmem:[#allocation2 + $0x1c] sm:$0xf]
    %v286 = vld [vmem:[#allocation2 + $0x20] sm:$0xf]
    %v287 = vld [vmem:[#allocation2 + $0x24] sm:$0xf]
    %v288 = vld [vmem:[#allocation2 + $0x28] sm:$0xf]
    %v289 = vld [vmem:[#allocation2 + $0x2c] sm:$0xf]
    %v290 = vld [vmem:[#allocation2 + $0x30] sm:$0xf]
    %v291 = vld [vmem:[#allocation2 + $0x34] sm:$0xf]
    %v292 = vld [vmem:[#allocation2 + $0x38] sm:$0xf]
    %v293 = vld [vmem:[#allocation2 + $0x3c] sm:$0xf]
    %v310 = vunpack.c.l.b16 %v278
    %v311 = vunpack.c.l.b16 %v279
    %v312 = vunpack.c.l.b16 %v280
    %v313 = vunpack.c.l.b16 %v281
    %v314 = vunpack.c.l.b16 %v282
    %v315 = vunpack.c.l.b16 %v283
    %v316 = vunpack.c.l.b16 %v284
    %v317 = vunpack.c.l.b16 %v285
    %v318 = vunpack.c.l.b16 %v286
    %v319 = vunpack.c.l.b16 %v287
    %v320 = vunpack.c.l.b16 %v288
    %v321 = vunpack.c.l.b16 %v289
    %v322 = vunpack.c.l.b16 %v290
    %v323 = vunpack.c.l.b16 %v291
    %v324 = vunpack.c.l.b16 %v292
    %v325 = vunpack.c.l.b16 %v293
    %v326 = vpack.c.b16 %v311, %v310
    %v327 = vpack.c.b16 %v313, %v312
    %v328 = vpack.c.b16 %v315, %v314
    %v329 = vpack.c.b16 %v317, %v316
    %v330 = vpack.c.b16 %v319, %v318
    %v331 = vpack.c.b16 %v321, %v320
    %v332 = vpack.c.b16 %v323, %v322
    %v333 = vpack.c.b16 %v325, %v324
    %v334 = vrot.slane %v326, 7
    %v335 = vrot.slane %v327, 7
    %v336 = vrot.slane %v328, 7
    %v337 = vrot.slane %v329, 7
    %v338 = vrot.slane %v330, 7
    %v339 = vrot.slane %v331, 7
    %v340 = vrot.slane %v332, 7
    %v341 = vrot.slane %v333, 7
    %vm342 = vcmask 1040384
    %v345 = vsel %vm342, 0, %v334
    %v348 = vsel %vm342, 0, %v335
    %v351 = vsel %vm342, 0, %v336
    %v354 = vsel %vm342, 0, %v337
    %v357 = vsel %vm342, 0, %v338
    %v360 = vsel %vm342, 0, %v339
    %v363 = vsel %vm342, 0, %v340
    %v366 = vsel %vm342, 0, %v341
    %v369 = vshrl.u32 %v326, 16
    %v371 = vrot.slane %v369, 7
    %v372 = vshll.u32 %v326, 16
    %v374 = vor.u32 %v371, %v372
    %v376 = vshrl.u32 %v327, 16
    %v378 = vrot.slane %v376, 7
    %v379 = vshll.u32 %v327, 16
    %v381 = vor.u32 %v378, %v379
    %v383 = vshrl.u32 %v328, 16
    %v385 = vrot.slane %v383, 7
    %v386 = vshll.u32 %v328, 16
    %v388 = vor.u32 %v385, %v386
    %v390 = vshrl.u32 %v329, 16
    %v392 = vrot.slane %v390, 7
    %v393 = vshll.u32 %v329, 16
    %v395 = vor.u32 %v392, %v393
    %v397 = vshrl.u32 %v330, 16
    %v399 = vrot.slane %v397, 7
    %v400 = vshll.u32 %v330, 16
    %v402 = vor.u32 %v399, %v400
    %v404 = vshrl.u32 %v331, 16
    %v406 = vrot.slane %v404, 7
    %v407 = vshll.u32 %v331, 16
    %v409 = vor.u32 %v406, %v407
    %v411 = vshrl.u32 %v332, 16
    %v413 = vrot.slane %v411, 7
    %v414 = vshll.u32 %v332, 16
    %v416 = vor.u32 %v413, %v414
    %v418 = vshrl.u32 %v333, 16
    %v420 = vrot.slane %v418, 7
    %v421 = vshll.u32 %v333, 16
    %v423 = vor.u32 %v420, %v421
    %vm432 = vcmask 1040384
    %vm433 = vsmask.f32 256
    %vm434 = vmand %vm432, %vm433
    %v435 = vsel %vm434, 0, %v374
    %v436 = vsel %vm434, 0, %v381
    %v437 = vsel %vm434, 0, %v388
    %v438 = vsel %vm434, 0, %v395
    %v439 = vsel %vm434, 0, %v402
    %v440 = vsel %vm434, 0, %v409
    %v441 = vsel %vm434, 0, %v416
    %v442 = vsel %vm434, 0, %v423
    %v451 = vld [vmem:[#allocation5] sm:$0xf]
    %v452 = vld [vmem:[#allocation5 + $0x4] sm:$0xf]
    %v453 = vld [vmem:[#allocation5 + $0x8] sm:$0xf]
    %v454 = vld [vmem:[#allocation5 + $0xc] sm:$0xf]
    %v455 = vld [vmem:[#allocation5 + $0x10] sm:$0xf]
    %v456 = vld [vmem:[#allocation5 + $0x14] sm:$0xf]
    %v457 = vld [vmem:[#allocation5 + $0x18] sm:$0xf]
    %v458 = vld [vmem:[#allocation5 + $0x1c] sm:$0xf]
    %v459 = vld [vmem:[#allocation5 + $0x20] sm:$0xf]
    %v460 = vld [vmem:[#allocation5 + $0x24] sm:$0xf]
    %v461 = vld [vmem:[#allocation5 + $0x28] sm:$0xf]
    %v462 = vld [vmem:[#allocation5 + $0x2c] sm:$0xf]
    %v463 = vld [vmem:[#allocation5 + $0x30] sm:$0xf]
    %v464 = vld [vmem:[#allocation5 + $0x34] sm:$0xf]
    %v465 = vld [vmem:[#allocation5 + $0x38] sm:$0xf]
    %v466 = vld [vmem:[#allocation5 + $0x3c] sm:$0xf]
    %v467 = vld [vmem:[#allocation5 + $0x40] sm:$0xf]
    %v468 = vld [vmem:[#allocation5 + $0x44] sm:$0xf]
    %v469 = vld [vmem:[#allocation5 + $0x48] sm:$0xf]
    %v470 = vld [vmem:[#allocation5 + $0x4c] sm:$0xf]
    %v471 = vld [vmem:[#allocation5 + $0x50] sm:$0xf]
    %v472 = vld [vmem:[#allocation5 + $0x54] sm:$0xf]
    %v473 = vld [vmem:[#allocation5 + $0x58] sm:$0xf]
    %v474 = vld [vmem:[#allocation5 + $0x5c] sm:$0xf]
    %v475 = vld [vmem:[#allocation5 + $0x60] sm:$0xf]
    %v476 = vld [vmem:[#allocation5 + $0x64] sm:$0xf]
    %v477 = vld [vmem:[#allocation5 + $0x68] sm:$0xf]
    %v478 = vld [vmem:[#allocation5 + $0x6c] sm:$0xf]
    %v479 = vld [vmem:[#allocation5 + $0x70] sm:$0xf]
    %v480 = vld [vmem:[#allocation5 + $0x74] sm:$0xf]
    %v481 = vld [vmem:[#allocation5 + $0x78] sm:$0xf]
    %v482 = vld [vmem:[#allocation5 + $0x7c] sm:$0xf]
    %v483 = vld [vmem:[#allocation5 + $0x80] sm:$0xf]
    %v484 = vld [vmem:[#allocation5 + $0x84] sm:$0xf]
    %v485 = vld [vmem:[#allocation5 + $0x88] sm:$0xf]
    %v486 = vld [vmem:[#allocation5 + $0x8c] sm:$0xf]
    %v487 = vld [vmem:[#allocation5 + $0x90] sm:$0xf]
    %v488 = vld [vmem:[#allocation5 + $0x94] sm:$0xf]
    %v489 = vld [vmem:[#allocation5 + $0x98] sm:$0xf]
    %v490 = vld [vmem:[#allocation5 + $0x9c] sm:$0xf]
    %v491 = vld [vmem:[#allocation5 + $0xa0] sm:$0xf]
    %v492 = vld [vmem:[#allocation5 + $0xa4] sm:$0xf]
    %v493 = vld [vmem:[#allocation5 + $0xa8] sm:$0xf]
    %v494 = vld [vmem:[#allocation5 + $0xac] sm:$0xf]
    %v495 = vld [vmem:[#allocation5 + $0xb0] sm:$0xf]
    %v496 = vld [vmem:[#allocation5 + $0xb4] sm:$0xf]
    %v497 = vld [vmem:[#allocation5 + $0xb8] sm:$0xf]
    %v498 = vld [vmem:[#allocation5 + $0xbc] sm:$0xf]
    %v499 = vld [vmem:[#allocation7] sm:$0x1]
    %v501 = vlaneseq
    %v502 = vshrl.u32 %v501, 7
    %v503 = vsub.s32 0, %v502
    %v504 = vrot.slane %v499, %v503
    %v554 = vunpack.c.l.b16 %v451
    %v555 = vunpack.c.l.b16 %v452
    %v556 = vunpack.c.l.b16 %v453
    %v557 = vunpack.c.l.b16 %v454
    %v558 = vunpack.c.l.b16 %v455
    %v559 = vunpack.c.l.b16 %v456
    %v560 = vunpack.c.l.b16 %v457
    %v561 = vunpack.c.l.b16 %v458
    %v562 = vunpack.c.l.b16 %v459
    %v563 = vunpack.c.l.b16 %v460
    %v564 = vunpack.c.l.b16 %v461
    %v565 = vunpack.c.l.b16 %v462
    %v566 = vunpack.c.l.b16 %v463
    %v567 = vunpack.c.l.b16 %v464
    %v568 = vunpack.c.l.b16 %v465
    %v569 = vunpack.c.l.b16 %v466
    %v570 = vunpack.c.l.b16 %v467
    %v571 = vunpack.c.l.b16 %v468
    %v572 = vunpack.c.l.b16 %v469
    %v573 = vunpack.c.l.b16 %v470
    %v574 = vunpack.c.l.b16 %v471
    %v575 = vunpack.c.l.b16 %v472
    %v576 = vunpack.c.l.b16 %v473
    %v577 = vunpack.c.l.b16 %v474
    %v578 = vunpack.c.l.b16 %v475
    %v579 = vunpack.c.l.b16 %v476
    %v580 = vunpack.c.l.b16 %v477
    %v581 = vunpack.c.l.b16 %v478
    %v582 = vunpack.c.l.b16 %v479
    %v583 = vunpack.c.l.b16 %v480
    %v584 = vunpack.c.l.b16 %v481
    %v585 = vunpack.c.l.b16 %v482
    %v586 = vunpack.c.l.b16 %v483
    %v587 = vunpack.c.l.b16 %v484
    %v588 = vunpack.c.l.b16 %v485
    %v589 = vunpack.c.l.b16 %v486
    %v590 = vunpack.c.l.b16 %v487
    %v591 = vunpack.c.l.b16 %v488
    %v592 = vunpack.c.l.b16 %v489
    %v593 = vunpack.c.l.b16 %v490
    %v594 = vunpack.c.l.b16 %v491
    %v595 = vunpack.c.l.b16 %v492
    %v596 = vunpack.c.l.b16 %v493
    %v597 = vunpack.c.l.b16 %v494
    %v598 = vunpack.c.l.b16 %v495
    %v599 = vunpack.c.l.b16 %v496
    %v600 = vunpack.c.l.b16 %v497
    %v601 = vunpack.c.l.b16 %v498
    %v602 = vpack.c.b16 %v555, %v554
    %v603 = vpack.c.b16 %v557, %v556
    %v604 = vpack.c.b16 %v559, %v558
    %v605 = vpack.c.b16 %v561, %v560
    %v606 = vpack.c.b16 %v563, %v562
    %v607 = vpack.c.b16 %v565, %v564
    %v608 = vpack.c.b16 %v567, %v566
    %v609 = vpack.c.b16 %v569, %v568
    %v610 = vpack.c.b16 %v571, %v570
    %v611 = vpack.c.b16 %v573, %v572
    %v612 = vpack.c.b16 %v575, %v574
    %v613 = vpack.c.b16 %v577, %v576
    %v614 = vpack.c.b16 %v579, %v578
    %v615 = vpack.c.b16 %v581, %v580
    %v616 = vpack.c.b16 %v583, %v582
    %v617 = vpack.c.b16 %v585, %v584
    %v618 = vpack.c.b16 %v587, %v586
    %v619 = vpack.c.b16 %v589, %v588
    %v620 = vpack.c.b16 %v591, %v590
    %v621 = vpack.c.b16 %v593, %v592
    %v622 = vpack.c.b16 %v595, %v594
    %v623 = vpack.c.b16 %v597, %v596
    %v624 = vpack.c.b16 %v599, %v598
    %v625 = vpack.c.b16 %v601, %v600
    %650 = vmatprep.subr.bf16.mxu0 0
    %651 = vmatpush1.bf16.msra.mxu0 %v602
    %652 = vmatprep.subr.bf16.mxu0 0
    %653 = vmatpush1.bf16.msra.mxu0 %v603
    %654 = vmatprep.subr.bf16.mxu0 0
    %655 = vmatpush1.bf16.msra.mxu0 %v604
    %656 = vmatprep.subr.bf16.mxu0 0
    %657 = vmatpush1.bf16.msra.mxu0 %v605
    %658 = vmatprep.subr.bf16.mxu0 0
    %659 = vmatpush1.bf16.msra.mxu0 %v606
    %660 = vmatprep.subr.bf16.mxu0 0
    %661 = vmatpush1.bf16.msra.mxu0 %v607
    %662 = vmatprep.subr.bf16.mxu0 0
    %663 = vmatpush1.bf16.msra.mxu0 %v608
    %664 = vmatprep.subr.bf16.mxu0 0
    %665 = vmatpush1.bf16.msra.mxu0 %v609
    %666 = vmatprep.subr.bf16.mxu0 0
    %667 = vmatpush1.bf16.msra.mxu0 %v610
    %668 = vmatprep.subr.bf16.mxu0 0
    %669 = vmatpush1.bf16.msra.mxu0 %v611
    %670 = vmatprep.subr.bf16.mxu0 0
    %671 = vmatpush1.bf16.msra.mxu0 %v612
    %672 = vmatprep.subr.bf16.mxu0 0
    %673 = vmatpush1.bf16.msra.mxu0 %v613
    %674 = vmatprep.subr.bf16.mxu0 0
    %675 = vmatpush1.bf16.msra.mxu0 %v614
    %676 = vmatprep.subr.bf16.mxu0 0
    %677 = vmatpush1.bf16.msra.mxu0 %v615
    %678 = vmatprep.subr.bf16.mxu0 0
    %679 = vmatpush1.bf16.msra.mxu0 %v616
    %680 = vmatprep.subr.bf16.mxu0 0
    %681 = vmatpush1.bf16.msra.mxu0 %v617
    %682 = vmatprep.mubr.bf16.mxu0 %v435
    %683 = vmatmul.mubr.bf16.gmra.mrb[0].mxu0 %v345
    %v684 = vpop.f32.mrb[0].mxu0
    %v685 = vadd.f32 %v504, %v684
    %v686 = vpop.f32.mrb[0].mxu0
    %v687 = vpop.f32.mrb[0].mxu0
    %v688 = vadd.f32 %v504, %v687
    %v689 = vpop.f32.mrb[0].mxu0
    %690 = vmatprep.mubr.bf16.mxu0 %v436
    %691 = vmatmul.mubr.bf16.gmra.mrb[0].mxu0 %v348
    %v692 = vpop.f32.mrb[0].mxu0
    %v693 = vadd.f32 %v504, %v692
    %v694 = vpop.f32.mrb[0].mxu0
    %v695 = vpop.f32.mrb[0].mxu0
    %v696 = vadd.f32 %v504, %v695
    %v697 = vpop.f32.mrb[0].mxu0
    %698 = vmatprep.mubr.bf16.mxu0 %v437
    %699 = vmatmul.mubr.bf16.gmra.mrb[0].mxu0 %v351
    %v700 = vpop.f32.mrb[0].mxu0
    %v701 = vadd.f32 %v504, %v700
    %v702 = vpop.f32.mrb[0].mxu0
    %v703 = vpop.f32.mrb[0].mxu0
    %v704 = vadd.f32 %v504, %v703
    %v705 = vpop.f32.mrb[0].mxu0
    %706 = vmatprep.mubr.bf16.mxu0 %v438
    %707 = vmatmul.mubr.bf16.gmra.mrb[0].mxu0 %v354
    %v708 = vpop.f32.mrb[0].mxu0
    %v709 = vadd.f32 %v504, %v708
    %v710 = vpop.f32.mrb[0].mxu0
    %v711 = vpop.f32.mrb[0].mxu0
    %v712 = vadd.f32 %v504, %v711
    %v713 = vpop.f32.mrb[0].mxu0
    %714 = vmatprep.mubr.bf16.mxu0 %v439
    %715 = vmatmul.mubr.bf16.gmra.mrb[0].mxu0 %v357
    %v716 = vpop.f32.mrb[0].mxu0
    %v717 = vadd.f32 %v504, %v716
    %v718 = vpop.f32.mrb[0].mxu0
    %v719 = vpop.f32.mrb[0].mxu0
    %v720 = vadd.f32 %v504, %v719
    %v721 = vpop.f32.mrb[0].mxu0
    %722 = vmatprep.mubr.bf16.mxu0 %v440
    %723 = vmatmul.mubr.bf16.gmra.mrb[0].mxu0 %v360
    %v724 = vpop.f32.mrb[0].mxu0
    %v725 = vadd.f32 %v504, %v724
    %v726 = vpop.f32.mrb[0].mxu0
    %v727 = vpop.f32.mrb[0].mxu0
    %v728 = vadd.f32 %v504, %v727
    %v729 = vpop.f32.mrb[0].mxu0
    %730 = vmatprep.mubr.bf16.mxu0 %v441
    %731 = vmatmul.mubr.bf16.gmra.mrb[0].mxu0 %v363
    %v732 = vpop.f32.mrb[0].mxu0
    %v733 = vadd.f32 %v504, %v732
    %v734 = vpop.f32.mrb[0].mxu0
    %v735 = vpop.f32.mrb[0].mxu0
    %v736 = vadd.f32 %v504, %v735
    %v737 = vpop.f32.mrb[0].mxu0
    %738 = vmatprep.mubr.bf16.mxu0 %v442
    %739 = vmatmul.mubr.bf16.gmra.mrb[0].mxu0 %v366
    %v740 = vpop.f32.mrb[0].mxu0
    %v741 = vadd.f32 %v504, %v740
    %v742 = vpop.f32.mrb[0].mxu0
    %v743 = vpop.f32.mrb[0].mxu0
    %v744 = vadd.f32 %v504, %v743
    %v745 = vpop.f32.mrb[0].mxu0
    %746 = vdwg.mxu0
    %747 = vmatprep.subr.bf16.mxu0 0
    %748 = vmatpush1.bf16.msra.mxu0 %v618
    %749 = vmatprep.subr.bf16.mxu0 0
    %750 = vmatpush1.bf16.msra.mxu0 %v619
    %751 = vmatprep.subr.bf16.mxu0 0
    %752 = vmatpush1.bf16.msra.mxu0 %v620
    %753 = vmatprep.subr.bf16.mxu0 0
    %754 = vmatpush1.bf16.msra.mxu0 %v621
    %755 = vmatprep.subr.bf16.mxu0 0
    %756 = vmatpush1.bf16.msra.mxu0 %v622
    %757 = vmatprep.subr.bf16.mxu0 0
    %758 = vmatpush1.bf16.msra.mxu0 %v623
    %759 = vmatprep.subr.bf16.mxu0 0
    %760 = vmatpush1.bf16.msra.mxu0 %v624
    %761 = vmatprep.subr.bf16.mxu0 0
    %762 = vmatpush1.bf16.msra.mxu0 %v625
    %763 = vmatprep.subr.bf16.mxu0 0
    %764 = vmatpush1.bf16.msra.mxu0 0
    %765 = vmatprep.subr.bf16.mxu0 0
    %766 = vmatpush1.bf16.msra.mxu0 0
    %767 = vmatprep.subr.bf16.mxu0 0
    %768 = vmatpush1.bf16.msra.mxu0 0
    %769 = vmatprep.subr.bf16.mxu0 0
    %770 = vmatpush1.bf16.msra.mxu0 0
    %771 = vmatprep.subr.bf16.mxu0 0
    %772 = vmatpush1.bf16.msra.mxu0 0
    %773 = vmatprep.subr.bf16.mxu0 0
    %774 = vmatpush1.bf16.msra.mxu0 0
    %775 = vmatprep.subr.bf16.mxu0 0
    %776 = vmatpush1.bf16.msra.mxu0 0
    %777 = vmatprep.subr.bf16.mxu0 0
    %778 = vmatpush1.bf16.msra.mxu0 0
    %779 = vmatprep.mubr.bf16.mxu0 0
    %780 = vmatmul.mubr.bf16.gmra.mrb[0].mxu0 %v326
    %v781 = vpop.f32.mrb[0].mxu0
    %v782 = vadd.f32 %v685, %v781
    %v783 = vpop.f32.mrb[0].mxu0
    %v784 = vpop.f32.mrb[0].mxu0
    %v785 = vadd.f32 %v688, %v784
    %v786 = vpop.f32.mrb[0].mxu0
    %787 = vmatprep.mubr.bf16.mxu0 0
    %788 = vmatmul.mubr.bf16.gmra.mrb[0].mxu0 %v327
    %v789 = vpop.f32.mrb[0].mxu0
    %v790 = vadd.f32 %v693, %v789
    %v791 = vpop.f32.mrb[0].mxu0
    %v792 = vpop.f32.mrb[0].mxu0
    %v793 = vadd.f32 %v696, %v792
    %v794 = vpop.f32.mrb[0].mxu0
    %795 = vmatprep.mubr.bf16.mxu0 0
    %796 = vmatmul.mubr.bf16.gmra.mrb[0].mxu0 %v328
    %v797 = vpop.f32.mrb[0].mxu0
    %v798 = vadd.f32 %v701, %v797
    %v799 = vpop.f32.mrb[0].mxu0
    %v800 = vpop.f32.mrb[0].mxu0
    %v801 = vadd.f32 %v704, %v800
    %v802 = vpop.f32.mrb[0].mxu0
    %803 = vmatprep.mubr.bf16.mxu0 0
    %804 = vmatmul.mubr.bf16.gmra.mrb[0].mxu0 %v329
    %v805 = vpop.f32.mrb[0].mxu0
    %v806 = vadd.f32 %v709, %v805
    %v807 = vpop.f32.mrb[0].mxu0
    %v808 = vpop.f32.mrb[0].mxu0
    %v809 = vadd.f32 %v712, %v808
    %v810 = vpop.f32.mrb[0].mxu0
    %811 = vmatprep.mubr.bf16.mxu0 0
    %812 = vmatmul.mubr.bf16.gmra.mrb[0].mxu0 %v330
    %v813 = vpop.f32.mrb[0].mxu0
    %v814 = vadd.f32 %v717, %v813
    %v815 = vpop.f32.mrb[0].mxu0
    %v816 = vpop.f32.mrb[0].mxu0
    %v817 = vadd.f32 %v720, %v816
    %v818 = vpop.f32.mrb[0].mxu0
    %819 = vmatprep.mubr.bf16.mxu0 0
    %820 = vmatmul.mubr.bf16.gmra.mrb[0].mxu0 %v331
    %v821 = vpop.f32.mrb[0].mxu0
    %v822 = vadd.f32 %v725, %v821
    %v823 = vpop.f32.mrb[0].mxu0
    %v824 = vpop.f32.mrb[0].mxu0
    %v825 = vadd.f32 %v728, %v824
    %v826 = vpop.f32.mrb[0].mxu0
    %827 = vmatprep.mubr.bf16.mxu0 0
    %828 = vmatmul.mubr.bf16.gmra.mrb[0].mxu0 %v332
    %v829 = vpop.f32.mrb[0].mxu0
    %v830 = vadd.f32 %v733, %v829
    %v831 = vpop.f32.mrb[0].mxu0
    %v832 = vpop.f32.mrb[0].mxu0
    %v833 = vadd.f32 %v736, %v832
    %v834 = vpop.f32.mrb[0].mxu0
    %835 = vmatprep.mubr.bf16.mxu0 0
    %836 = vmatmul.mubr.bf16.gmra.mrb[0].mxu0 %v333
    %v837 = vpop.f32.mrb[0].mxu0
    %v838 = vadd.f32 %v741, %v837
    %v839 = vpop.f32.mrb[0].mxu0
    %v840 = vpop.f32.mrb[0].mxu0
    %v841 = vadd.f32 %v744, %v840
    %v842 = vpop.f32.mrb[0].mxu0
    %843 = vdwg.mxu0
    %vm844 = vcmp.ge.f32.partialorder %v782, 0.0
    %vm845 = vcmp.ge.f32.partialorder %v785, 0.0
    %vm846 = vcmp.ge.f32.partialorder %v790, 0.0
    %vm847 = vcmp.ge.f32.partialorder %v793, 0.0
    %vm848 = vcmp.ge.f32.partialorder %v798, 0.0
    %vm849 = vcmp.ge.f32.partialorder %v801, 0.0
    %vm850 = vcmp.ge.f32.partialorder %v806, 0.0
    %vm851 = vcmp.ge.f32.partialorder %v809, 0.0
    %vm852 = vcmp.ge.f32.partialorder %v814, 0.0
    %vm853 = vcmp.ge.f32.partialorder %v817, 0.0
    %vm854 = vcmp.ge.f32.partialorder %v822, 0.0
    %vm855 = vcmp.ge.f32.partialorder %v825, 0.0
    %vm856 = vcmp.ge.f32.partialorder %v830, 0.0
    %vm857 = vcmp.ge.f32.partialorder %v833, 0.0
    %vm858 = vcmp.ge.f32.partialorder %v838, 0.0
    %vm859 = vcmp.ge.f32.partialorder %v841, 0.0
    %v860 = vmul.f32 %v782, 0.01
    %v861 = vmul.f32 %v785, 0.01
    %v862 = vmul.f32 %v790, 0.01
    %v863 = vmul.f32 %v793, 0.01
    %v864 = vmul.f32 %v798, 0.01
    %v865 = vmul.f32 %v801, 0.01
    %v866 = vmul.f32 %v806, 0.01
    %v867 = vmul.f32 %v809, 0.01
    %v868 = vmul.f32 %v814, 0.01
    %v869 = vmul.f32 %v817, 0.01
    %v870 = vmul.f32 %v822, 0.01
    %v871 = vmul.f32 %v825, 0.01
    %v872 = vmul.f32 %v830, 0.01
    %v873 = vmul.f32 %v833, 0.01
    %v874 = vmul.f32 %v838, 0.01
    %v875 = vmul.f32 %v841, 0.01
    %v876 = vsel %vm844, %v782, %v860
    %v877 = vsel %vm845, %v785, %v861
    %v878 = vsel %vm846, %v790, %v862
    %v879 = vsel %vm847, %v793, %v863
    %v880 = vsel %vm848, %v798, %v864
    %v881 = vsel %vm849, %v801, %v865
    %v882 = vsel %vm850, %v806, %v866
    %v883 = vsel %vm851, %v809, %v867
    %v884 = vsel %vm852, %v814, %v868
    %v885 = vsel %vm853, %v817, %v869
    %v886 = vsel %vm854, %v822, %v870
    %v887 = vsel %vm855, %v825, %v871
    %v888 = vsel %vm856, %v830, %v872
    %v889 = vsel %vm857, %v833, %v873
    %v890 = vsel %vm858, %v838, %v874
    %v891 = vsel %vm859, %v841, %v875
    %v892 = vpack.c.bf16 %v877, %v876
    %v893 = vpack.c.bf16 %v879, %v878
    %v894 = vpack.c.bf16 %v881, %v880
    %v895 = vpack.c.bf16 %v883, %v882
    %v896 = vpack.c.bf16 %v885, %v884
    %v897 = vpack.c.bf16 %v887, %v886
    %v898 = vpack.c.bf16 %v889, %v888
    %v899 = vpack.c.bf16 %v891, %v890
    %v908 = vrot.slane %v892, 7
    %v909 = vrot.slane %v893, 7
    %v910 = vrot.slane %v894, 7
    %v911 = vrot.slane %v895, 7
    %v912 = vrot.slane %v896, 7
    %v913 = vrot.slane %v897, 7
    %v914 = vrot.slane %v898, 7
    %v915 = vrot.slane %v899, 7
    %v917 = vsel %vm342, 0, %v908
    %v920 = vsel %vm342, 0, %v909
    %v923 = vsel %vm342, 0, %v910
    %v926 = vsel %vm342, 0, %v911
    %v929 = vsel %vm342, 0, %v912
    %v932 = vsel %vm342, 0, %v913
    %v935 = vsel %vm342, 0, %v914
    %v938 = vsel %vm342, 0, %v915
    %v941 = vshrl.u32 %v892, 16
    %v943 = vrot.slane %v941, 7
    %v944 = vshll.u32 %v892, 16
    %v946 = vor.u32 %v943, %v944
    %v948 = vshrl.u32 %v893, 16
    %v950 = vrot.slane %v948, 7
    %v951 = vshll.u32 %v893, 16
    %v953 = vor.u32 %v950, %v951
    %v955 = vshrl.u32 %v894, 16
    %v957 = vrot.slane %v955, 7
    %v958 = vshll.u32 %v894, 16
    %v960 = vor.u32 %v957, %v958
    %v962 = vshrl.u32 %v895, 16
    %v964 = vrot.slane %v962, 7
    %v965 = vshll.u32 %v895, 16
    %v967 = vor.u32 %v964, %v965
    %v969 = vshrl.u32 %v896, 16
    %v971 = vrot.slane %v969, 7
    %v972 = vshll.u32 %v896, 16
    %v974 = vor.u32 %v971, %v972
    %v976 = vshrl.u32 %v897, 16
    %v978 = vrot.slane %v976, 7
    %v979 = vshll.u32 %v897, 16
    %v981 = vor.u32 %v978, %v979
    %v983 = vshrl.u32 %v898, 16
    %v985 = vrot.slane %v983, 7
    %v986 = vshll.u32 %v898, 16
    %v988 = vor.u32 %v985, %v986
    %v990 = vshrl.u32 %v899, 16
    %v992 = vrot.slane %v990, 7
    %v993 = vshll.u32 %v899, 16
    %v995 = vor.u32 %v992, %v993
    %v1004 = vsel %vm434, 0, %v946
    %v1005 = vsel %vm434, 0, %v953
    %v1006 = vsel %vm434, 0, %v960
    %v1007 = vsel %vm434, 0, %v967
    %v1008 = vsel %vm434, 0, %v974
    %v1009 = vsel %vm434, 0, %v981
    %v1010 = vsel %vm434, 0, %v988
    %v1011 = vsel %vm434, 0, %v995
    %v1012 = vld [vmem:[#allocation8] sm:$0xf]
    %v1013 = vld [vmem:[#allocation8 + $0x4] sm:$0xf]
    %v1014 = vld [vmem:[#allocation8 + $0x8] sm:$0xf]
    %v1015 = vld [vmem:[#allocation8 + $0xc] sm:$0xf]
    %v1016 = vld [vmem:[#allocation8 + $0x10] sm:$0xf]
    %v1017 = vld [vmem:[#allocation8 + $0x14] sm:$0xf]
    %v1018 = vld [vmem:[#allocation8 + $0x18] sm:$0xf]
    %v1019 = vld [vmem:[#allocation8 + $0x1c] sm:$0xf]
    %v1020 = vld [vmem:[#allocation8 + $0x20] sm:$0xf]
    %v1021 = vld [vmem:[#allocation8 + $0x24] sm:$0xf]
    %v1022 = vld [vmem:[#allocation8 + $0x28] sm:$0xf]
    %v1023 = vld [vmem:[#allocation8 + $0x2c] sm:$0xf]
    %v1024 = vld [vmem:[#allocation8 + $0x30] sm:$0xf]
    %v1025 = vld [vmem:[#allocation8 + $0x34] sm:$0xf]
    %v1026 = vld [vmem:[#allocation8 + $0x38] sm:$0xf]
    %v1027 = vld [vmem:[#allocation8 + $0x3c] sm:$0xf]
    %v1028 = vld [vmem:[#allocation8 + $0x40] sm:$0xf]
    %v1029 = vld [vmem:[#allocation8 + $0x44] sm:$0xf]
    %v1030 = vld [vmem:[#allocation8 + $0x48] sm:$0xf]
    %v1031 = vld [vmem:[#allocation8 + $0x4c] sm:$0xf]
    %v1032 = vld [vmem:[#allocation8 + $0x50] sm:$0xf]
    %v1033 = vld [vmem:[#allocation8 + $0x54] sm:$0xf]
    %v1034 = vld [vmem:[#allocation8 + $0x58] sm:$0xf]
    %v1035 = vld [vmem:[#allocation8 + $0x5c] sm:$0xf]
    %v1036 = vld [vmem:[#allocation8 + $0x60] sm:$0xf]
    %v1037 = vld [vmem:[#allocation8 + $0x64] sm:$0xf]
    %v1038 = vld [vmem:[#allocation8 + $0x68] sm:$0xf]
    %v1039 = vld [vmem:[#allocation8 + $0x6c] sm:$0xf]
    %v1040 = vld [vmem:[#allocation8 + $0x70] sm:$0xf]
    %v1041 = vld [vmem:[#allocation8 + $0x74] sm:$0xf]
    %v1042 = vld [vmem:[#allocation8 + $0x78] sm:$0xf]
    %v1043 = vld [vmem:[#allocation8 + $0x7c] sm:$0xf]
    %v1044 = vld [vmem:[#allocation8 + $0x80] sm:$0xf]
    %v1045 = vld [vmem:[#allocation8 + $0x84] sm:$0xf]
    %v1046 = vld [vmem:[#allocation8 + $0x88] sm:$0xf]
    %v1047 = vld [vmem:[#allocation8 + $0x8c] sm:$0xf]
    %v1048 = vld [vmem:[#allocation8 + $0x90] sm:$0xf]
    %v1049 = vld [vmem:[#allocation8 + $0x94] sm:$0xf]
    %v1050 = vld [vmem:[#allocation8 + $0x98] sm:$0xf]
    %v1051 = vld [vmem:[#allocation8 + $0x9c] sm:$0xf]
    %v1052 = vld [vmem:[#allocation8 + $0xa0] sm:$0xf]
    %v1053 = vld [vmem:[#allocation8 + $0xa4] sm:$0xf]
    %v1054 = vld [vmem:[#allocation8 + $0xa8] sm:$0xf]
    %v1055 = vld [vmem:[#allocation8 + $0xac] sm:$0xf]
    %v1056 = vld [vmem:[#allocation8 + $0xb0] sm:$0xf]
    %v1057 = vld [vmem:[#allocation8 + $0xb4] sm:$0xf]
    %v1058 = vld [vmem:[#allocation8 + $0xb8] sm:$0xf]
    %v1059 = vld [vmem:[#allocation8 + $0xbc] sm:$0xf]
    %v1060 = vld [vmem:[#allocation10] sm:$0x1]
    %v1062 = vlaneseq
    %v1063 = vshrl.u32 %v1062, 7
    %v1064 = vsub.s32 0, %v1063
    %v1065 = vrot.slane %v1060, %v1064
    %v1115 = vunpack.c.l.b16 %v1012
    %v1116 = vunpack.c.l.b16 %v1013
    %v1117 = vunpack.c.l.b16 %v1014
    %v1118 = vunpack.c.l.b16 %v1015
    %v1119 = vunpack.c.l.b16 %v1016
    %v1120 = vunpack.c.l.b16 %v1017
    %v1121 = vunpack.c.l.b16 %v1018
    %v1122 = vunpack.c.l.b16 %v1019
    %v1123 = vunpack.c.l.b16 %v1020
    %v1124 = vunpack.c.l.b16 %v1021
    %v1125 = vunpack.c.l.b16 %v1022
    %v1126 = vunpack.c.l.b16 %v1023
    %v1127 = vunpack.c.l.b16 %v1024
    %v1128 = vunpack.c.l.b16 %v1025
    %v1129 = vunpack.c.l.b16 %v1026
    %v1130 = vunpack.c.l.b16 %v1027
    %v1131 = vunpack.c.l.b16 %v1028
    %v1132 = vunpack.c.l.b16 %v1029
    %v1133 = vunpack.c.l.b16 %v1030
    %v1134 = vunpack.c.l.b16 %v1031
    %v1135 = vunpack.c.l.b16 %v1032
    %v1136 = vunpack.c.l.b16 %v1033
    %v1137 = vunpack.c.l.b16 %v1034
    %v1138 = vunpack.c.l.b16 %v1035
    %v1139 = vunpack.c.l.b16 %v1036
    %v1140 = vunpack.c.l.b16 %v1037
    %v1141 = vunpack.c.l.b16 %v1038
    %v1142 = vunpack.c.l.b16 %v1039
    %v1143 = vunpack.c.l.b16 %v1040
    %v1144 = vunpack.c.l.b16 %v1041
    %v1145 = vunpack.c.l.b16 %v1042
    %v1146 = vunpack.c.l.b16 %v1043
    %v1147 = vunpack.c.l.b16 %v1044
    %v1148 = vunpack.c.l.b16 %v1045
    %v1149 = vunpack.c.l.b16 %v1046
    %v1150 = vunpack.c.l.b16 %v1047
    %v1151 = vunpack.c.l.b16 %v1048
    %v1152 = vunpack.c.l.b16 %v1049
    %v1153 = vunpack.c.l.b16 %v1050
    %v1154 = vunpack.c.l.b16 %v1051
    %v1155 = vunpack.c.l.b16 %v1052
    %v1156 = vunpack.c.l.b16 %v1053
    %v1157 = vunpack.c.l.b16 %v1054
    %v1158 = vunpack.c.l.b16 %v1055
    %v1159 = vunpack.c.l.b16 %v1056
    %v1160 = vunpack.c.l.b16 %v1057
    %v1161 = vunpack.c.l.b16 %v1058
    %v1162 = vunpack.c.l.b16 %v1059
    %v1163 = vpack.c.b16 %v1116, %v1115
    %v1164 = vpack.c.b16 %v1118, %v1117
    %v1165 = vpack.c.b16 %v1120, %v1119
    %v1166 = vpack.c.b16 %v1122, %v1121
    %v1167 = vpack.c.b16 %v1124, %v1123
    %v1168 = vpack.c.b16 %v1126, %v1125
    %v1169 = vpack.c.b16 %v1128, %v1127
    %v1170 = vpack.c.b16 %v1130, %v1129
    %v1171 = vpack.c.b16 %v1132, %v1131
    %v1172 = vpack.c.b16 %v1134, %v1133
    %v1173 = vpack.c.b16 %v1136, %v1135
    %v1174 = vpack.c.b16 %v1138, %v1137
    %v1175 = vpack.c.b16 %v1140, %v1139
    %v1176 = vpack.c.b16 %v1142, %v1141
    %v1177 = vpack.c.b16 %v1144, %v1143
    %v1178 = vpack.c.b16 %v1146, %v1145
    %v1179 = vpack.c.b16 %v1148, %v1147
    %v1180 = vpack.c.b16 %v1150, %v1149
    %v1181 = vpack.c.b16 %v1152, %v1151
    %v1182 = vpack.c.b16 %v1154, %v1153
    %v1183 = vpack.c.b16 %v1156, %v1155
    %v1184 = vpack.c.b16 %v1158, %v1157
    %v1185 = vpack.c.b16 %v1160, %v1159
    %v1186 = vpack.c.b16 %v1162, %v1161
    %1211 = vmatprep.subr.bf16.mxu0 0
    %1212 = vmatpush1.bf16.msra.mxu0 %v1163
    %1213 = vmatprep.subr.bf16.mxu0 0
    %1214 = vmatpush1.bf16.msra.mxu0 %v1164
    %1215 = vmatprep.subr.bf16.mxu0 0
    %1216 = vmatpush1.bf16.msra.mxu0 %v1165
    %1217 = vmatprep.subr.bf16.mxu0 0
    %1218 = vmatpush1.bf16.msra.mxu0 %v1166
    %1219 = vmatprep.subr.bf16.mxu0 0
    %1220 = vmatpush1.bf16.msra.mxu0 %v1167
    %1221 = vmatprep.subr.bf16.mxu0 0
    %1222 = vmatpush1.bf16.msra.mxu0 %v1168
    %1223 = vmatprep.subr.bf16.mxu0 0
    %1224 = vmatpush1.bf16.msra.mxu0 %v1169
    %1225 = vmatprep.subr.bf16.mxu0 0
    %1226 = vmatpush1.bf16.msra.mxu0 %v1170
    %1227 = vmatprep.subr.bf16.mxu0 0
    %1228 = vmatpush1.bf16.msra.mxu0 %v1171
    %1229 = vmatprep.subr.bf16.mxu0 0
    %1230 = vmatpush1.bf16.msra.mxu0 %v1172
    %1231 = vmatprep.subr.bf16.mxu0 0
    %1232 = vmatpush1.bf16.msra.mxu0 %v1173
    %1233 = vmatprep.subr.bf16.mxu0 0
    %1234 = vmatpush1.bf16.msra.mxu0 %v1174
    %1235 = vmatprep.subr.bf16.mxu0 0
    %1236 = vmatpush1.bf16.msra.mxu0 %v1175
    %1237 = vmatprep.subr.bf16.mxu0 0
    %1238 = vmatpush1.bf16.msra.mxu0 %v1176
    %1239 = vmatprep.subr.bf16.mxu0 0
    %1240 = vmatpush1.bf16.msra.mxu0 %v1177
    %1241 = vmatprep.subr.bf16.mxu0 0
    %1242 = vmatpush1.bf16.msra.mxu0 %v1178
    %1243 = vmatprep.mubr.bf16.mxu0 %v1004
    %1244 = vmatmul.mubr.bf16.gmra.mrb[0].mxu0 %v917
    %v1245 = vpop.f32.mrb[0].mxu0
    %v1246 = vadd.f32 %v1065, %v1245
    %v1247 = vpop.f32.mrb[0].mxu0
    %v1248 = vpop.f32.mrb[0].mxu0
    %v1249 = vadd.f32 %v1065, %v1248
    %v1250 = vpop.f32.mrb[0].mxu0
    %1251 = vmatprep.mubr.bf16.mxu0 %v1005
    %1252 = vmatmul.mubr.bf16.gmra.mrb[0].mxu0 %v920
    %v1253 = vpop.f32.mrb[0].mxu0
    %v1254 = vadd.f32 %v1065, %v1253
    %v1255 = vpop.f32.mrb[0].mxu0
    %v1256 = vpop.f32.mrb[0].mxu0
    %v1257 = vadd.f32 %v1065, %v1256
    %v1258 = vpop.f32.mrb[0].mxu0
    %1259 = vmatprep.mubr.bf16.mxu0 %v1006
    %1260 = vmatmul.mubr.bf16.gmra.mrb[0].mxu0 %v923
    %v1261 = vpop.f32.mrb[0].mxu0
    %v1262 = vadd.f32 %v1065, %v1261
    %v1263 = vpop.f32.mrb[0].mxu0
    %v1264 = vpop.f32.mrb[0].mxu0
    %v1265 = vadd.f32 %v1065, %v1264
    %v1266 = vpop.f32.mrb[0].mxu0
    %1267 = vmatprep.mubr.bf16.mxu0 %v1007
    %1268 = vmatmul.mubr.bf16.gmra.mrb[0].mxu0 %v926
    %v1269 = vpop.f32.mrb[0].mxu0
    %v1270 = vadd.f32 %v1065, %v1269
    %v1271 = vpop.f32.mrb[0].mxu0
    %v1272 = vpop.f32.mrb[0].mxu0
    %v1273 = vadd.f32 %v1065, %v1272
    %v1274 = vpop.f32.mrb[0].mxu0
    %1275 = vmatprep.mubr.bf16.mxu0 %v1008
    %1276 = vmatmul.mubr.bf16.gmra.mrb[0].mxu0 %v929
    %v1277 = vpop.f32.mrb[0].mxu0
    %v1278 = vadd.f32 %v1065, %v1277
    %v1279 = vpop.f32.mrb[0].mxu0
    %v1280 = vpop.f32.mrb[0].mxu0
    %v1281 = vadd.f32 %v1065, %v1280
    %v1282 = vpop.f32.mrb[0].mxu0
    %1283 = vmatprep.mubr.bf16.mxu0 %v1009
    %1284 = vmatmul.mubr.bf16.gmra.mrb[0].mxu0 %v932
    %v1285 = vpop.f32.mrb[0].mxu0
    %v1286 = vadd.f32 %v1065, %v1285
    %v1287 = vpop.f32.mrb[0].mxu0
    %v1288 = vpop.f32.mrb[0].mxu0
    %v1289 = vadd.f32 %v1065, %v1288
    %v1290 = vpop.f32.mrb[0].mxu0
    %1291 = vmatprep.mubr.bf16.mxu0 %v1010
    %1292 = vmatmul.mubr.bf16.gmra.mrb[0].mxu0 %v935
    %v1293 = vpop.f32.mrb[0].mxu0
    %v1294 = vadd.f32 %v1065, %v1293
    %v1295 = vpop.f32.mrb[0].mxu0
    %v1296 = vpop.f32.mrb[0].mxu0
    %v1297 = vadd.f32 %v1065, %v1296
    %v1298 = vpop.f32.mrb[0].mxu0
    %1299 = vmatprep.mubr.bf16.mxu0 %v1011
    %1300 = vmatmul.mubr.bf16.gmra.mrb[0].mxu0 %v938
    %v1301 = vpop.f32.mrb[0].mxu0
    %v1302 = vadd.f32 %v1065, %v1301
    %v1303 = vpop.f32.mrb[0].mxu0
    %v1304 = vpop.f32.mrb[0].mxu0
    %v1305 = vadd.f32 %v1065, %v1304
    %v1306 = vpop.f32.mrb[0].mxu0
    %1307 = vdwg.mxu0
    %1308 = vmatprep.subr.bf16.mxu0 0
    %1309 = vmatpush1.bf16.msra.mxu0 %v1179
    %1310 = vmatprep.subr.bf16.mxu0 0
    %1311 = vmatpush1.bf16.msra.mxu0 %v1180
    %1312 = vmatprep.subr.bf16.mxu0 0
    %1313 = vmatpush1.bf16.msra.mxu0 %v1181
    %1314 = vmatprep.subr.bf16.mxu0 0
    %1315 = vmatpush1.bf16.msra.mxu0 %v1182
    %1316 = vmatprep.subr.bf16.mxu0 0
    %1317 = vmatpush1.bf16.msra.mxu0 %v1183
    %1318 = vmatprep.subr.bf16.mxu0 0
    %1319 = vmatpush1.bf16.msra.mxu0 %v1184
    %1320 = vmatprep.subr.bf16.mxu0 0
    %1321 = vmatpush1.bf16.msra.mxu0 %v1185
    %1322 = vmatprep.subr.bf16.mxu0 0
    %1323 = vmatpush1.bf16.msra.mxu0 %v1186
    %1324 = vmatprep.subr.bf16.mxu0 0
    %1325 = vmatpush1.bf16.msra.mxu0 0
    %1326 = vmatprep.subr.bf16.mxu0 0
    %1327 = vmatpush1.bf16.msra.mxu0 0
    %1328 = vmatprep.subr.bf16.mxu0 0
    %1329 = vmatpush1.bf16.msra.mxu0 0
    %1330 = vmatprep.subr.bf16.mxu0 0
    %1331 = vmatpush1.bf16.msra.mxu0 0
    %1332 = vmatprep.subr.bf16.mxu0 0
    %1333 = vmatpush1.bf16.msra.mxu0 0
    %1334 = vmatprep.subr.bf16.mxu0 0
    %1335 = vmatpush1.bf16.msra.mxu0 0
    %1336 = vmatprep.subr.bf16.mxu0 0
    %1337 = vmatpush1.bf16.msra.mxu0 0
    %1338 = vmatprep.subr.bf16.mxu0 0
    %1339 = vmatpush1.bf16.msra.mxu0 0
    %1340 = vmatprep.mubr.bf16.mxu0 0
    %1341 = vmatmul.mubr.bf16.gmra.mrb[0].mxu0 %v892
    %v1342 = vpop.f32.mrb[0].mxu0
    %v1343 = vadd.f32 %v1246, %v1342
    %v1344 = vpop.f32.mrb[0].mxu0
    %v1345 = vpop.f32.mrb[0].mxu0
    %v1346 = vadd.f32 %v1249, %v1345
    %v1347 = vpop.f32.mrb[0].mxu0
    %1348 = vmatprep.mubr.bf16.mxu0 0
    %1349 = vmatmul.mubr.bf16.gmra.mrb[0].mxu0 %v893
    %v1350 = vpop.f32.mrb[0].mxu0
    %v1351 = vadd.f32 %v1254, %v1350
    %v1352 = vpop.f32.mrb[0].mxu0
    %v1353 = vpop.f32.mrb[0].mxu0
    %v1354 = vadd.f32 %v1257, %v1353
    %v1355 = vpop.f32.mrb[0].mxu0
    %1356 = vmatprep.mubr.bf16.mxu0 0
    %1357 = vmatmul.mubr.bf16.gmra.mrb[0].mxu0 %v894
    %v1358 = vpop.f32.mrb[0].mxu0
    %v1359 = vadd.f32 %v1262, %v1358
    %v1360 = vpop.f32.mrb[0].mxu0
    %v1361 = vpop.f32.mrb[0].mxu0
    %v1362 = vadd.f32 %v1265, %v1361
    %v1363 = vpop.f32.mrb[0].mxu0
    %1364 = vmatprep.mubr.bf16.mxu0 0
    %1365 = vmatmul.mubr.bf16.gmra.mrb[0].mxu0 %v895
    %v1366 = vpop.f32.mrb[0].mxu0
    %v1367 = vadd.f32 %v1270, %v1366
    %v1368 = vpop.f32.mrb[0].mxu0
    %v1369 = vpop.f32.mrb[0].mxu0
    %v1370 = vadd.f32 %v1273, %v1369
    %v1371 = vpop.f32.mrb[0].mxu0
    %1372 = vmatprep.mubr.bf16.mxu0 0
    %1373 = vmatmul.mubr.bf16.gmra.mrb[0].mxu0 %v896
    %v1374 = vpop.f32.mrb[0].mxu0
    %v1375 = vadd.f32 %v1278, %v1374
    %v1376 = vpop.f32.mrb[0].mxu0
    %v1377 = vpop.f32.mrb[0].mxu0
    %v1378 = vadd.f32 %v1281, %v1377
    %v1379 = vpop.f32.mrb[0].mxu0
    %1380 = vmatprep.mubr.bf16.mxu0 0
    %1381 = vmatmul.mubr.bf16.gmra.mrb[0].mxu0 %v897
    %v1382 = vpop.f32.mrb[0].mxu0
    %v1383 = vadd.f32 %v1286, %v1382
    %v1384 = vpop.f32.mrb[0].mxu0
    %v1385 = vpop.f32.mrb[0].mxu0
    %v1386 = vadd.f32 %v1289, %v1385
    %v1387 = vpop.f32.mrb[0].mxu0
    %1388 = vmatprep.mubr.bf16.mxu0 0
    %1389 = vmatmul.mubr.bf16.gmra.mrb[0].mxu0 %v898
    %v1390 = vpop.f32.mrb[0].mxu0
    %v1391 = vadd.f32 %v1294, %v1390
    %v1392 = vpop.f32.mrb[0].mxu0
    %v1393 = vpop.f32.mrb[0].mxu0
    %v1394 = vadd.f32 %v1297, %v1393
    %v1395 = vpop.f32.mrb[0].mxu0
    %1396 = vmatprep.mubr.bf16.mxu0 0
    %1397 = vmatmul.mubr.bf16.gmra.mrb[0].mxu0 %v899
    %v1398 = vpop.f32.mrb[0].mxu0
    %v1399 = vadd.f32 %v1302, %v1398
    %v1400 = vpop.f32.mrb[0].mxu0
    %v1401 = vpop.f32.mrb[0].mxu0
    %v1402 = vadd.f32 %v1305, %v1401
    %v1403 = vpop.f32.mrb[0].mxu0
    %1404 = vdwg.mxu0
    %vm1405 = vcmp.ge.f32.partialorder %v1343, 0.0
    %vm1406 = vcmp.ge.f32.partialorder %v1346, 0.0
    %vm1407 = vcmp.ge.f32.partialorder %v1351, 0.0
    %vm1408 = vcmp.ge.f32.partialorder %v1354, 0.0
    %vm1409 = vcmp.ge.f32.partialorder %v1359, 0.0
    %vm1410 = vcmp.ge.f32.partialorder %v1362, 0.0
    %vm1411 = vcmp.ge.f32.partialorder %v1367, 0.0
    %vm1412 = vcmp.ge.f32.partialorder %v1370, 0.0
    %vm1413 = vcmp.ge.f32.partialorder %v1375, 0.0
    %vm1414 = vcmp.ge.f32.partialorder %v1378, 0.0
    %vm1415 = vcmp.ge.f32.partialorder %v1383, 0.0
    %vm1416 = vcmp.ge.f32.partialorder %v1386, 0.0
    %vm1417 = vcmp.ge.f32.partialorder %v1391, 0.0
    %vm1418 = vcmp.ge.f32.partialorder %v1394, 0.0
    %vm1419 = vcmp.ge.f32.partialorder %v1399, 0.0
    %vm1420 = vcmp.ge.f32.partialorder %v1402, 0.0
    %v1421 = vmul.f32 %v1343, 0.01
    %v1422 = vmul.f32 %v1346, 0.01
    %v1423 = vmul.f32 %v1351, 0.01
    %v1424 = vmul.f32 %v1354, 0.01
    %v1425 = vmul.f32 %v1359, 0.01
    %v1426 = vmul.f32 %v1362, 0.01
    %v1427 = vmul.f32 %v1367, 0.01
    %v1428 = vmul.f32 %v1370, 0.01
    %v1429 = vmul.f32 %v1375, 0.01
    %v1430 = vmul.f32 %v1378, 0.01
    %v1431 = vmul.f32 %v1383, 0.01
    %v1432 = vmul.f32 %v1386, 0.01
    %v1433 = vmul.f32 %v1391, 0.01
    %v1434 = vmul.f32 %v1394, 0.01
    %v1435 = vmul.f32 %v1399, 0.01
    %v1436 = vmul.f32 %v1402, 0.01
    %v1437 = vsel %vm1405, %v1343, %v1421
    %v1438 = vsel %vm1406, %v1346, %v1422
    %v1439 = vsel %vm1407, %v1351, %v1423
    %v1440 = vsel %vm1408, %v1354, %v1424
    %v1441 = vsel %vm1409, %v1359, %v1425
    %v1442 = vsel %vm1410, %v1362, %v1426
    %v1443 = vsel %vm1411, %v1367, %v1427
    %v1444 = vsel %vm1412, %v1370, %v1428
    %v1445 = vsel %vm1413, %v1375, %v1429
    %v1446 = vsel %vm1414, %v1378, %v1430
    %v1447 = vsel %vm1415, %v1383, %v1431
    %v1448 = vsel %vm1416, %v1386, %v1432
    %v1449 = vsel %vm1417, %v1391, %v1433
    %v1450 = vsel %vm1418, %v1394, %v1434
    %v1451 = vsel %vm1419, %v1399, %v1435
    %v1452 = vsel %vm1420, %v1402, %v1436
    %v1453 = vld [vmem:[#allocation11] sm:$0xf]
    %v1454 = vld [vmem:[#allocation11 + $0x4] sm:$0xf]
    %v1455 = vld [vmem:[#allocation11 + $0x8] sm:$0xf]
    %v1456 = vld [vmem:[#allocation11 + $0xc] sm:$0xf]
    %v1457 = vld [vmem:[#allocation11 + $0x10] sm:$0xf]
    %v1458 = vld [vmem:[#allocation11 + $0x14] sm:$0xf]
    %v1459 = vld [vmem:[#allocation11 + $0x18] sm:$0xf]
    %v1460 = vld [vmem:[#allocation11 + $0x1c] sm:$0xf]
    %v1461 = vld [vmem:[#allocation11 + $0x20] sm:$0xf]
    %v1462 = vld [vmem:[#allocation11 + $0x24] sm:$0xf]
    %v1463 = vld [vmem:[#allocation11 + $0x28] sm:$0xf]
    %v1464 = vld [vmem:[#allocation11 + $0x2c] sm:$0xf]
    %v1465 = vld [vmem:[#allocation11 + $0x30] sm:$0xf]
    %v1466 = vld [vmem:[#allocation11 + $0x34] sm:$0xf]
    %v1467 = vld [vmem:[#allocation11 + $0x38] sm:$0xf]
    %v1468 = vld [vmem:[#allocation11 + $0x3c] sm:$0xf]
    %v1469 = vld [vmem:[#allocation13] sm:$0x1]
    %v1471 = vlaneseq
    %v1472 = vshrl.u32 %v1471, 7
    %v1473 = vsub.s32 0, %v1472
    %v1474 = vrot.slane %v1469, %v1473
    %v1492 = vunpack.c.l.b16 %v1453
    %v1493 = vunpack.c.l.b16 %v1454
    %v1494 = vunpack.c.l.b16 %v1455
    %v1495 = vunpack.c.l.b16 %v1456
    %v1496 = vunpack.c.l.b16 %v1457
    %v1497 = vunpack.c.l.b16 %v1458
    %v1498 = vunpack.c.l.b16 %v1459
    %v1499 = vunpack.c.l.b16 %v1460
    %v1500 = vunpack.c.l.b16 %v1461
    %v1501 = vunpack.c.l.b16 %v1462
    %v1502 = vunpack.c.l.b16 %v1463
    %v1503 = vunpack.c.l.b16 %v1464
    %v1504 = vunpack.c.l.b16 %v1465
    %v1505 = vunpack.c.l.b16 %v1466
    %v1506 = vunpack.c.l.b16 %v1467
    %v1507 = vunpack.c.l.b16 %v1468
    %v1508 = vpack.c.b16 %v1493, %v1492
    %v1509 = vpack.c.b16 %v1495, %v1494
    %v1510 = vpack.c.b16 %v1497, %v1496
    %v1511 = vpack.c.b16 %v1499, %v1498
    %v1512 = vpack.c.b16 %v1501, %v1500
    %v1513 = vpack.c.b16 %v1503, %v1502
    %v1514 = vpack.c.b16 %v1505, %v1504
    %v1515 = vpack.c.b16 %v1507, %v1506
    %1524 = vmatprep.subr.bf16.mxu0 0
    %1525 = vmatpush1.bf16.msra.mxu0 %v1508
    %1526 = vmatprep.subr.bf16.mxu0 0
    %1527 = vmatpush1.bf16.msra.mxu0 %v1509
    %1528 = vmatprep.subr.bf16.mxu0 0
    %1529 = vmatpush1.bf16.msra.mxu0 %v1510
    %1530 = vmatprep.subr.bf16.mxu0 0
    %1531 = vmatpush1.bf16.msra.mxu0 %v1511
    %1532 = vmatprep.subr.bf16.mxu0 0
    %1533 = vmatpush1.bf16.msra.mxu0 %v1512
    %1534 = vmatprep.subr.bf16.mxu0 0
    %1535 = vmatpush1.bf16.msra.mxu0 %v1513
    %1536 = vmatprep.subr.bf16.mxu0 0
    %1537 = vmatpush1.bf16.msra.mxu0 %v1514
    %1538 = vmatprep.subr.bf16.mxu0 0
    %1539 = vmatpush1.bf16.msra.mxu0 %v1515
    %1540 = vmatprep.subr.bf16.mxu0 0
    %1541 = vmatpush1.bf16.msra.mxu0 0
    %1542 = vmatprep.subr.bf16.mxu0 0
    %1543 = vmatpush1.bf16.msra.mxu0 0
    %1544 = vmatprep.subr.bf16.mxu0 0
    %1545 = vmatpush1.bf16.msra.mxu0 0
    %1546 = vmatprep.subr.bf16.mxu0 0
    %1547 = vmatpush1.bf16.msra.mxu0 0
    %1548 = vmatprep.subr.bf16.mxu0 0
    %1549 = vmatpush1.bf16.msra.mxu0 0
    %1550 = vmatprep.subr.bf16.mxu0 0
    %1551 = vmatpush1.bf16.msra.mxu0 0
    %1552 = vmatprep.subr.bf16.mxu0 0
    %1553 = vmatpush1.bf16.msra.mxu0 0
    %1554 = vmatprep.subr.bf16.mxu0 0
    %1555 = vmatpush1.bf16.msra.mxu0 0
    %1556 = vmatprep.mubr.bf16.mxu0 0
    %1557 = vmatmul.mubr.bf16.gmra.mrb[0].mxu0 %v326
    %v1558 = vpop.f32.mrb[0].mxu0
    %v1559 = vadd.f32 %v1474, %v1558
    %v1560 = vpop.f32.mrb[0].mxu0
    %v1561 = vpop.f32.mrb[0].mxu0
    %v1562 = vadd.f32 %v1474, %v1561
    %v1563 = vpop.f32.mrb[0].mxu0
    %1564 = vmatprep.mubr.bf16.mxu0 0
    %1565 = vmatmul.mubr.bf16.gmra.mrb[0].mxu0 %v327
    %v1566 = vpop.f32.mrb[0].mxu0
    %v1567 = vadd.f32 %v1474, %v1566
    %v1568 = vpop.f32.mrb[0].mxu0
    %v1569 = vpop.f32.mrb[0].mxu0
    %v1570 = vadd.f32 %v1474, %v1569
    %v1571 = vpop.f32.mrb[0].mxu0
    %1572 = vmatprep.mubr.bf16.mxu0 0
    %1573 = vmatmul.mubr.bf16.gmra.mrb[0].mxu0 %v328
    %v1574 = vpop.f32.mrb[0].mxu0
    %v1575 = vadd.f32 %v1474, %v1574
    %v1576 = vpop.f32.mrb[0].mxu0
    %v1577 = vpop.f32.mrb[0].mxu0
    %v1578 = vadd.f32 %v1474, %v1577
    %v1579 = vpop.f32.mrb[0].mxu0
    %1580 = vmatprep.mubr.bf16.mxu0 0
    %1581 = vmatmul.mubr.bf16.gmra.mrb[0].mxu0 %v329
    %v1582 = vpop.f32.mrb[0].mxu0
    %v1583 = vadd.f32 %v1474, %v1582
    %v1584 = vpop.f32.mrb[0].mxu0
    %v1585 = vpop.f32.mrb[0].mxu0
    %v1586 = vadd.f32 %v1474, %v1585
    %v1587 = vpop.f32.mrb[0].mxu0
    %1588 = vmatprep.mubr.bf16.mxu0 0
    %1589 = vmatmul.mubr.bf16.gmra.mrb[0].mxu0 %v330
    %v1590 = vpop.f32.mrb[0].mxu0
    %v1591 = vadd.f32 %v1474, %v1590
    %v1592 = vpop.f32.mrb[0].mxu0
    %v1593 = vpop.f32.mrb[0].mxu0
    %v1594 = vadd.f32 %v1474, %v1593
    %v1595 = vpop.f32.mrb[0].mxu0
    %1596 = vmatprep.mubr.bf16.mxu0 0
    %1597 = vmatmul.mubr.bf16.gmra.mrb[0].mxu0 %v331
    %v1598 = vpop.f32.mrb[0].mxu0
    %v1599 = vadd.f32 %v1474, %v1598
    %v1600 = vpop.f32.mrb[0].mxu0
    %v1601 = vpop.f32.mrb[0].mxu0
    %v1602 = vadd.f32 %v1474, %v1601
    %v1603 = vpop.f32.mrb[0].mxu0
    %1604 = vmatprep.mubr.bf16.mxu0 0
    %1605 = vmatmul.mubr.bf16.gmra.mrb[0].mxu0 %v332
    %v1606 = vpop.f32.mrb[0].mxu0
    %v1607 = vadd.f32 %v1474, %v1606
    %v1608 = vpop.f32.mrb[0].mxu0
    %v1609 = vpop.f32.mrb[0].mxu0
    %v1610 = vadd.f32 %v1474, %v1609
    %v1611 = vpop.f32.mrb[0].mxu0
    %1612 = vmatprep.mubr.bf16.mxu0 0
    %1613 = vmatmul.mubr.bf16.gmra.mrb[0].mxu0 %v333
    %v1614 = vpop.f32.mrb[0].mxu0
    %v1615 = vadd.f32 %v1474, %v1614
    %v1616 = vpop.f32.mrb[0].mxu0
    %v1617 = vpop.f32.mrb[0].mxu0
    %v1618 = vadd.f32 %v1474, %v1617
    %v1619 = vpop.f32.mrb[0].mxu0
    %1620 = vdwg.mxu0
    %v1621 = vadd.f32 %v1437, %v1559
    %v1622 = vadd.f32 %v1438, %v1562
    %v1623 = vadd.f32 %v1439, %v1567
    %v1624 = vadd.f32 %v1440, %v1570
    %v1625 = vadd.f32 %v1441, %v1575
    %v1626 = vadd.f32 %v1442, %v1578
    %v1627 = vadd.f32 %v1443, %v1583
    %v1628 = vadd.f32 %v1444, %v1586
    %v1629 = vadd.f32 %v1445, %v1591
    %v1630 = vadd.f32 %v1446, %v1594
    %v1631 = vadd.f32 %v1447, %v1599
    %v1632 = vadd.f32 %v1448, %v1602
    %v1633 = vadd.f32 %v1449, %v1607
    %v1634 = vadd.f32 %v1450, %v1610
    %v1635 = vadd.f32 %v1451, %v1615
    %v1636 = vadd.f32 %v1452, %v1618
    %v1637 = vpack.c.bf16 %v1622, %v1621
    %v1638 = vpack.c.bf16 %v1624, %v1623
    %v1639 = vpack.c.bf16 %v1626, %v1625
    %v1640 = vpack.c.bf16 %v1628, %v1627
    %v1641 = vpack.c.bf16 %v1630, %v1629
    %v1642 = vpack.c.bf16 %v1632, %v1631
    %v1643 = vpack.c.bf16 %v1634, %v1633
    %v1644 = vpack.c.bf16 %v1636, %v1635
    %v1653 = vrot.slane %v1637, 6
    %v1654 = vrot.slane %v1638, 6
    %v1655 = vrot.slane %v1639, 6
    %v1656 = vrot.slane %v1640, 6
    %v1657 = vrot.slane %v1641, 6
    %v1658 = vrot.slane %v1642, 6
    %v1659 = vrot.slane %v1643, 6
    %v1660 = vrot.slane %v1644, 6
    %vm1661 = vcmask 1041408
    %v1663 = vsel %vm1661, 0, %v1653
    %v1666 = vsel %vm1661, 0, %v1654
    %v1669 = vsel %vm1661, 0, %v1655
    %v1672 = vsel %vm1661, 0, %v1656
    %v1675 = vsel %vm1661, 0, %v1657
    %v1678 = vsel %vm1661, 0, %v1658
    %v1681 = vsel %vm1661, 0, %v1659
    %v1684 = vsel %vm1661, 0, %v1660
    %v1686 = vrot.slane %v1637, 7
    %v1687 = vrot.slane %v1638, 7
    %v1688 = vrot.slane %v1639, 7
    %v1689 = vrot.slane %v1640, 7
    %v1690 = vrot.slane %v1641, 7
    %v1691 = vrot.slane %v1642, 7
    %v1692 = vrot.slane %v1643, 7
    %v1693 = vrot.slane %v1644, 7
    %v1695 = vsel %vm342, 0, %v1686
    %v1698 = vsel %vm342, 0, %v1687
    %v1701 = vsel %vm342, 0, %v1688
    %v1704 = vsel %vm342, 0, %v1689
    %v1707 = vsel %vm342, 0, %v1690
    %v1710 = vsel %vm342, 0, %v1691
    %v1713 = vsel %vm342, 0, %v1692
    %v1716 = vsel %vm342, 0, %v1693
    %v1718 = vld [vmem:[#allocation14] sm:$0xf]
    %v1719 = vld [vmem:[#allocation14 + $0x4] sm:$0xf]
    %v1720 = vld [vmem:[#allocation14 + $0x8] sm:$0xf]
    %v1721 = vld [vmem:[#allocation14 + $0xc] sm:$0xf]
    %v1722 = vld [vmem:[#allocation14 + $0x10] sm:$0xf]
    %v1723 = vld [vmem:[#allocation14 + $0x14] sm:$0xf]
    %v1724 = vld [vmem:[#allocation14 + $0x18] sm:$0xf]
    %v1725 = vld [vmem:[#allocation14 + $0x1c] sm:$0xf]
    %v1726 = vld [vmem:[#allocation14 + $0x20] sm:$0xf]
    %v1727 = vld [vmem:[#allocation14 + $0x24] sm:$0xf]
    %v1728 = vld [vmem:[#allocation14 + $0x28] sm:$0xf]
    %v1729 = vld [vmem:[#allocation14 + $0x2c] sm:$0xf]
    %v1730 = vld [vmem:[#allocation14 + $0x30] sm:$0xf]
    %v1731 = vld [vmem:[#allocation14 + $0x34] sm:$0xf]
    %v1732 = vld [vmem:[#allocation14 + $0x38] sm:$0xf]
    %v1733 = vld [vmem:[#allocation14 + $0x3c] sm:$0xf]
    %v1734 = vld [vmem:[#allocation14 + $0x40] sm:$0xf]
    %v1735 = vld [vmem:[#allocation14 + $0x44] sm:$0xf]
    %v1736 = vld [vmem:[#allocation14 + $0x48] sm:$0xf]
    %v1737 = vld [vmem:[#allocation14 + $0x4c] sm:$0xf]
    %v1738 = vld [vmem:[#allocation14 + $0x50] sm:$0xf]
    %v1739 = vld [vmem:[#allocation14 + $0x54] sm:$0xf]
    %v1740 = vld [vmem:[#allocation14 + $0x58] sm:$0xf]
    %v1741 = vld [vmem:[#allocation14 + $0x5c] sm:$0xf]
    %v1742 = vld [vmem:[#allocation14 + $0x60] sm:$0xf]
    %v1743 = vld [vmem:[#allocation14 + $0x64] sm:$0xf]
    %v1744 = vld [vmem:[#allocation14 + $0x68] sm:$0xf]
    %v1745 = vld [vmem:[#allocation14 + $0x6c] sm:$0xf]
    %v1746 = vld [vmem:[#allocation14 + $0x70] sm:$0xf]
    %v1747 = vld [vmem:[#allocation14 + $0x74] sm:$0xf]
    %v1748 = vld [vmem:[#allocation14 + $0x78] sm:$0xf]
    %v1749 = vld [vmem:[#allocation14 + $0x7c] sm:$0xf]
    %v1750 = vld [vmem:[#allocation14 + $0x80] sm:$0xf]
    %v1751 = vld [vmem:[#allocation14 + $0x84] sm:$0xf]
    %v1752 = vld [vmem:[#allocation14 + $0x88] sm:$0xf]
    %v1753 = vld [vmem:[#allocation14 + $0x8c] sm:$0xf]
    %v1754 = vld [vmem:[#allocation14 + $0x90] sm:$0xf]
    %v1755 = vld [vmem:[#allocation14 + $0x94] sm:$0xf]
    %v1756 = vld [vmem:[#allocation14 + $0x98] sm:$0xf]
    %v1757 = vld [vmem:[#allocation14 + $0x9c] sm:$0xf]
    %v1758 = vld [vmem:[#allocation14 + $0xa0] sm:$0xf]
    %v1759 = vld [vmem:[#allocation14 + $0xa4] sm:$0xf]
    %v1760 = vld [vmem:[#allocation14 + $0xa8] sm:$0xf]
    %v1761 = vld [vmem:[#allocation14 + $0xac] sm:$0xf]
    %v1762 = vld [vmem:[#allocation14 + $0xb0] sm:$0xf]
    %v1763 = vld [vmem:[#allocation14 + $0xb4] sm:$0xf]
    %v1764 = vld [vmem:[#allocation14 + $0xb8] sm:$0xf]
    %v1765 = vld [vmem:[#allocation14 + $0xbc] sm:$0xf]
    %v1766 = vld [vmem:[#allocation16] sm:$0x1]
    %v1768 = vlaneseq
    %v1769 = vshrl.u32 %v1768, 7
    %v1770 = vsub.s32 0, %v1769
    %v1771 = vrot.slane %v1766, %v1770
    %v1821 = vunpack.c.l.b16 %v1718
    %v1822 = vunpack.c.l.b16 %v1719
    %v1823 = vunpack.c.l.b16 %v1720
    %v1824 = vunpack.c.l.b16 %v1721
    %v1825 = vunpack.c.l.b16 %v1722
    %v1826 = vunpack.c.l.b16 %v1723
    %v1827 = vunpack.c.l.b16 %v1724
    %v1828 = vunpack.c.l.b16 %v1725
    %v1829 = vunpack.c.l.b16 %v1726
    %v1830 = vunpack.c.l.b16 %v1727
    %v1831 = vunpack.c.l.b16 %v1728
    %v1832 = vunpack.c.l.b16 %v1729
    %v1833 = vunpack.c.l.b16 %v1730
    %v1834 = vunpack.c.l.b16 %v1731
    %v1835 = vunpack.c.l.b16 %v1732
    %v1836 = vunpack.c.l.b16 %v1733
    %v1837 = vunpack.c.l.b16 %v1734
    %v1838 = vunpack.c.l.b16 %v1735
    %v1839 = vunpack.c.l.b16 %v1736
    %v1840 = vunpack.c.l.b16 %v1737
    %v1841 = vunpack.c.l.b16 %v1738
    %v1842 = vunpack.c.l.b16 %v1739
    %v1843 = vunpack.c.l.b16 %v1740
    %v1844 = vunpack.c.l.b16 %v1741
    %v1845 = vunpack.c.l.b16 %v1742
    %v1846 = vunpack.c.l.b16 %v1743
    %v1847 = vunpack.c.l.b16 %v1744
    %v1848 = vunpack.c.l.b16 %v1745
    %v1849 = vunpack.c.l.b16 %v1746
    %v1850 = vunpack.c.l.b16 %v1747
    %v1851 = vunpack.c.l.b16 %v1748
    %v1852 = vunpack.c.l.b16 %v1749
    %v1853 = vunpack.c.l.b16 %v1750
    %v1854 = vunpack.c.l.b16 %v1751
    %v1855 = vunpack.c.l.b16 %v1752
    %v1856 = vunpack.c.l.b16 %v1753
    %v1857 = vunpack.c.l.b16 %v1754
    %v1858 = vunpack.c.l.b16 %v1755
    %v1859 = vunpack.c.l.b16 %v1756
    %v1860 = vunpack.c.l.b16 %v1757
    %v1861 = vunpack.c.l.b16 %v1758
    %v1862 = vunpack.c.l.b16 %v1759
    %v1863 = vunpack.c.l.b16 %v1760
    %v1864 = vunpack.c.l.b16 %v1761
    %v1865 = vunpack.c.l.b16 %v1762
    %v1866 = vunpack.c.l.b16 %v1763
    %v1867 = vunpack.c.l.b16 %v1764
    %v1868 = vunpack.c.l.b16 %v1765
    %v1869 = vpack.c.b16 %v1822, %v1821
    %v1870 = vpack.c.b16 %v1824, %v1823
    %v1871 = vpack.c.b16 %v1826, %v1825
    %v1872 = vpack.c.b16 %v1828, %v1827
    %v1873 = vpack.c.b16 %v1830, %v1829
    %v1874 = vpack.c.b16 %v1832, %v1831
    %v1875 = vpack.c.b16 %v1834, %v1833
    %v1876 = vpack.c.b16 %v1836, %v1835
    %v1877 = vpack.c.b16 %v1838, %v1837
    %v1878 = vpack.c.b16 %v1840, %v1839
    %v1879 = vpack.c.b16 %v1842, %v1841
    %v1880 = vpack.c.b16 %v1844, %v1843
    %v1881 = vpack.c.b16 %v1846, %v1845
    %v1882 = vpack.c.b16 %v1848, %v1847
    %v1883 = vpack.c.b16 %v1850, %v1849
    %v1884 = vpack.c.b16 %v1852, %v1851
    %v1885 = vpack.c.b16 %v1854, %v1853
    %v1886 = vpack.c.b16 %v1856, %v1855
    %v1887 = vpack.c.b16 %v1858, %v1857
    %v1888 = vpack.c.b16 %v1860, %v1859
    %v1889 = vpack.c.b16 %v1862, %v1861
    %v1890 = vpack.c.b16 %v1864, %v1863
    %v1891 = vpack.c.b16 %v1866, %v1865
    %v1892 = vpack.c.b16 %v1868, %v1867
    %1917 = vmatprep.subr.bf16.mxu0 0
    %1918 = vmatpush1.bf16.msra.mxu0 %v1869
    %1919 = vmatprep.subr.bf16.mxu0 0
    %1920 = vmatpush1.bf16.msra.mxu0 %v1870
    %1921 = vmatprep.subr.bf16.mxu0 0
    %1922 = vmatpush1.bf16.msra.mxu0 %v1871
    %1923 = vmatprep.subr.bf16.mxu0 0
    %1924 = vmatpush1.bf16.msra.mxu0 %v1872
    %1925 = vmatprep.subr.bf16.mxu0 0
    %1926 = vmatpush1.bf16.msra.mxu0 %v1873
    %1927 = vmatprep.subr.bf16.mxu0 0
    %1928 = vmatpush1.bf16.msra.mxu0 %v1874
    %1929 = vmatprep.subr.bf16.mxu0 0
    %1930 = vmatpush1.bf16.msra.mxu0 %v1875
    %1931 = vmatprep.subr.bf16.mxu0 0
    %1932 = vmatpush1.bf16.msra.mxu0 %v1876
    %1933 = vmatprep.subr.bf16.mxu0 0
    %1934 = vmatpush1.bf16.msra.mxu0 %v1877
    %1935 = vmatprep.subr.bf16.mxu0 0
    %1936 = vmatpush1.bf16.msra.mxu0 %v1878
    %1937 = vmatprep.subr.bf16.mxu0 0
    %1938 = vmatpush1.bf16.msra.mxu0 %v1879
    %1939 = vmatprep.subr.bf16.mxu0 0
    %1940 = vmatpush1.bf16.msra.mxu0 %v1880
    %1941 = vmatprep.subr.bf16.mxu0 0
    %1942 = vmatpush1.bf16.msra.mxu0 %v1881
    %1943 = vmatprep.subr.bf16.mxu0 0
    %1944 = vmatpush1.bf16.msra.mxu0 %v1882
    %1945 = vmatprep.subr.bf16.mxu0 0
    %1946 = vmatpush1.bf16.msra.mxu0 %v1883
    %1947 = vmatprep.subr.bf16.mxu0 0
    %1948 = vmatpush1.bf16.msra.mxu0 %v1884
    %1949 = vmatprep.mubr.bf16.mxu0 %v1695
    %1950 = vmatmul.mubr.bf16.gmra.mrb[0].mxu0 %v1663
    %v1951 = vpop.f32.mrb[0].mxu0
    %v1952 = vadd.f32 %v1771, %v1951
    %v1953 = vpop.f32.mrb[0].mxu0
    %v1954 = vpop.f32.mrb[0].mxu0
    %v1955 = vadd.f32 %v1771, %v1954
    %v1956 = vpop.f32.mrb[0].mxu0
    %1957 = vmatprep.mubr.bf16.mxu0 %v1698
    %1958 = vmatmul.mubr.bf16.gmra.mrb[0].mxu0 %v1666
    %v1959 = vpop.f32.mrb[0].mxu0
    %v1960 = vadd.f32 %v1771, %v1959
    %v1961 = vpop.f32.mrb[0].mxu0
    %v1962 = vpop.f32.mrb[0].mxu0
    %v1963 = vadd.f32 %v1771, %v1962
    %v1964 = vpop.f32.mrb[0].mxu0
    %1965 = vmatprep.mubr.bf16.mxu0 %v1701
    %1966 = vmatmul.mubr.bf16.gmra.mrb[0].mxu0 %v1669
    %v1967 = vpop.f32.mrb[0].mxu0
    %v1968 = vadd.f32 %v1771, %v1967
    %v1969 = vpop.f32.mrb[0].mxu0
    %v1970 = vpop.f32.mrb[0].mxu0
    %v1971 = vadd.f32 %v1771, %v1970
    %v1972 = vpop.f32.mrb[0].mxu0
    %1973 = vmatprep.mubr.bf16.mxu0 %v1704
    %1974 = vmatmul.mubr.bf16.gmra.mrb[0].mxu0 %v1672
    %v1975 = vpop.f32.mrb[0].mxu0
    %v1976 = vadd.f32 %v1771, %v1975
    %v1977 = vpop.f32.mrb[0].mxu0
    %v1978 = vpop.f32.mrb[0].mxu0
    %v1979 = vadd.f32 %v1771, %v1978
    %v1980 = vpop.f32.mrb[0].mxu0
    %1981 = vmatprep.mubr.bf16.mxu0 %v1707
    %1982 = vmatmul.mubr.bf16.gmra.mrb[0].mxu0 %v1675
    %v1983 = vpop.f32.mrb[0].mxu0
    %v1984 = vadd.f32 %v1771, %v1983
    %v1985 = vpop.f32.mrb[0].mxu0
    %v1986 = vpop.f32.mrb[0].mxu0
    %v1987 = vadd.f32 %v1771, %v1986
    %v1988 = vpop.f32.mrb[0].mxu0
    %1989 = vmatprep.mubr.bf16.mxu0 %v1710
    %1990 = vmatmul.mubr.bf16.gmra.mrb[0].mxu0 %v1678
    %v1991 = vpop.f32.mrb[0].mxu0
    %v1992 = vadd.f32 %v1771, %v1991
    %v1993 = vpop.f32.mrb[0].mxu0
    %v1994 = vpop.f32.mrb[0].mxu0
    %v1995 = vadd.f32 %v1771, %v1994
    %v1996 = vpop.f32.mrb[0].mxu0
    %1997 = vmatprep.mubr.bf16.mxu0 %v1713
    %1998 = vmatmul.mubr.bf16.gmra.mrb[0].mxu0 %v1681
    %v1999 = vpop.f32.mrb[0].mxu0
    %v2000 = vadd.f32 %v1771, %v1999
    %v2001 = vpop.f32.mrb[0].mxu0
    %v2002 = vpop.f32.mrb[0].mxu0
    %v2003 = vadd.f32 %v1771, %v2002
    %v2004 = vpop.f32.mrb[0].mxu0
    %2005 = vmatprep.mubr.bf16.mxu0 %v1716
    %2006 = vmatmul.mubr.bf16.gmra.mrb[0].mxu0 %v1684
    %v2007 = vpop.f32.mrb[0].mxu0
    %v2008 = vadd.f32 %v1771, %v2007
    %v2009 = vpop.f32.mrb[0].mxu0
    %v2010 = vpop.f32.mrb[0].mxu0
    %v2011 = vadd.f32 %v1771, %v2010
    %v2012 = vpop.f32.mrb[0].mxu0
    %2013 = vdwg.mxu0
    %2014 = vmatprep.subr.bf16.mxu0 0
    %2015 = vmatpush1.bf16.msra.mxu0 %v1885
    %2016 = vmatprep.subr.bf16.mxu0 0
    %2017 = vmatpush1.bf16.msra.mxu0 %v1886
    %2018 = vmatprep.subr.bf16.mxu0 0
    %2019 = vmatpush1.bf16.msra.mxu0 %v1887
    %2020 = vmatprep.subr.bf16.mxu0 0
    %2021 = vmatpush1.bf16.msra.mxu0 %v1888
    %2022 = vmatprep.subr.bf16.mxu0 0
    %2023 = vmatpush1.bf16.msra.mxu0 %v1889
    %2024 = vmatprep.subr.bf16.mxu0 0
    %2025 = vmatpush1.bf16.msra.mxu0 %v1890
    %2026 = vmatprep.subr.bf16.mxu0 0
    %2027 = vmatpush1.bf16.msra.mxu0 %v1891
    %2028 = vmatprep.subr.bf16.mxu0 0
    %2029 = vmatpush1.bf16.msra.mxu0 %v1892
    %2030 = vmatprep.subr.bf16.mxu0 0
    %2031 = vmatpush1.bf16.msra.mxu0 0
    %2032 = vmatprep.subr.bf16.mxu0 0
    %2033 = vmatpush1.bf16.msra.mxu0 0
    %2034 = vmatprep.subr.bf16.mxu0 0
    %2035 = vmatpush1.bf16.msra.mxu0 0
    %2036 = vmatprep.subr.bf16.mxu0 0
    %2037 = vmatpush1.bf16.msra.mxu0 0
    %2038 = vmatprep.subr.bf16.mxu0 0
    %2039 = vmatpush1.bf16.msra.mxu0 0
    %2040 = vmatprep.subr.bf16.mxu0 0
    %2041 = vmatpush1.bf16.msra.mxu0 0
    %2042 = vmatprep.subr.bf16.mxu0 0
    %2043 = vmatpush1.bf16.msra.mxu0 0
    %2044 = vmatprep.subr.bf16.mxu0 0
    %2045 = vmatpush1.bf16.msra.mxu0 0
    %2046 = vmatprep.mubr.bf16.mxu0 0
    %2047 = vmatmul.mubr.bf16.gmra.mrb[0].mxu0 %v1637
    %v2048 = vpop.f32.mrb[0].mxu0
    %v2049 = vadd.f32 %v1952, %v2048
    %v2050 = vpop.f32.mrb[0].mxu0
    %v2051 = vpop.f32.mrb[0].mxu0
    %v2052 = vadd.f32 %v1955, %v2051
    %v2053 = vpop.f32.mrb[0].mxu0
    %2054 = vmatprep.mubr.bf16.mxu0 0
    %2055 = vmatmul.mubr.bf16.gmra.mrb[0].mxu0 %v1638
    %v2056 = vpop.f32.mrb[0].mxu0
    %v2057 = vadd.f32 %v1960, %v2056
    %v2058 = vpop.f32.mrb[0].mxu0
    %v2059 = vpop.f32.mrb[0].mxu0
    %v2060 = vadd.f32 %v1963, %v2059
    %v2061 = vpop.f32.mrb[0].mxu0
    %2062 = vmatprep.mubr.bf16.mxu0 0
    %2063 = vmatmul.mubr.bf16.gmra.mrb[0].mxu0 %v1639
    %v2064 = vpop.f32.mrb[0].mxu0
    %v2065 = vadd.f32 %v1968, %v2064
    %v2066 = vpop.f32.mrb[0].mxu0
    %v2067 = vpop.f32.mrb[0].mxu0
    %v2068 = vadd.f32 %v1971, %v2067
    %v2069 = vpop.f32.mrb[0].mxu0
    %2070 = vmatprep.mubr.bf16.mxu0 0
    %2071 = vmatmul.mubr.bf16.gmra.mrb[0].mxu0 %v1640
    %v2072 = vpop.f32.mrb[0].mxu0
    %v2073 = vadd.f32 %v1976, %v2072
    %v2074 = vpop.f32.mrb[0].mxu0
    %v2075 = vpop.f32.mrb[0].mxu0
    %v2076 = vadd.f32 %v1979, %v2075
    %v2077 = vpop.f32.mrb[0].mxu0
    %2078 = vmatprep.mubr.bf16.mxu0 0
    %2079 = vmatmul.mubr.bf16.gmra.mrb[0].mxu0 %v1641
    %v2080 = vpop.f32.mrb[0].mxu0
    %v2081 = vadd.f32 %v1984, %v2080
    %v2082 = vpop.f32.mrb[0].mxu0
    %v2083 = vpop.f32.mrb[0].mxu0
    %v2084 = vadd.f32 %v1987, %v2083
    %v2085 = vpop.f32.mrb[0].mxu0
    %2086 = vmatprep.mubr.bf16.mxu0 0
    %2087 = vmatmul.mubr.bf16.gmra.mrb[0].mxu0 %v1642
    %v2088 = vpop.f32.mrb[0].mxu0
    %v2089 = vadd.f32 %v1992, %v2088
    %v2090 = vpop.f32.mrb[0].mxu0
    %v2091 = vpop.f32.mrb[0].mxu0
    %v2092 = vadd.f32 %v1995, %v2091
    %v2093 = vpop.f32.mrb[0].mxu0
    %2094 = vmatprep.mubr.bf16.mxu0 0
    %2095 = vmatmul.mubr.bf16.gmra.mrb[0].mxu0 %v1643
    %v2096 = vpop.f32.mrb[0].mxu0
    %v2097 = vadd.f32 %v2000, %v2096
    %v2098 = vpop.f32.mrb[0].mxu0
    %v2099 = vpop.f32.mrb[0].mxu0
    %v2100 = vadd.f32 %v2003, %v2099
    %v2101 = vpop.f32.mrb[0].mxu0
    %2102 = vmatprep.mubr.bf16.mxu0 0
    %2103 = vmatmul.mubr.bf16.gmra.mrb[0].mxu0 %v1644
    %v2104 = vpop.f32.mrb[0].mxu0
    %v2105 = vadd.f32 %v2008, %v2104
    %v2106 = vpop.f32.mrb[0].mxu0
    %v2107 = vpop.f32.mrb[0].mxu0
    %v2108 = vadd.f32 %v2011, %v2107
    %v2109 = vpop.f32.mrb[0].mxu0
    %2110 = vdwg.mxu0
    %vm2111 = vcmp.ge.f32.partialorder %v2049, 0.0
    %vm2112 = vcmp.ge.f32.partialorder %v2052, 0.0
    %vm2113 = vcmp.ge.f32.partialorder %v2057, 0.0
    %vm2114 = vcmp.ge.f32.partialorder %v2060, 0.0
    %vm2115 = vcmp.ge.f32.partialorder %v2065, 0.0
    %vm2116 = vcmp.ge.f32.partialorder %v2068, 0.0
    %vm2117 = vcmp.ge.f32.partialorder %v2073, 0.0
    %vm2118 = vcmp.ge.f32.partialorder %v2076, 0.0
    %vm2119 = vcmp.ge.f32.partialorder %v2081, 0.0
    %vm2120 = vcmp.ge.f32.partialorder %v2084, 0.0
    %vm2121 = vcmp.ge.f32.partialorder %v2089, 0.0
    %vm2122 = vcmp.ge.f32.partialorder %v2092, 0.0
    %vm2123 = vcmp.ge.f32.partialorder %v2097, 0.0
    %vm2124 = vcmp.ge.f32.partialorder %v2100, 0.0
    %vm2125 = vcmp.ge.f32.partialorder %v2105, 0.0
    %vm2126 = vcmp.ge.f32.partialorder %v2108, 0.0
    %v2127 = vmul.f32 %v2049, 0.01
    %v2128 = vmul.f32 %v2052, 0.01
    %v2129 = vmul.f32 %v2057, 0.01
    %v2130 = vmul.f32 %v2060, 0.01
    %v2131 = vmul.f32 %v2065, 0.01
    %v2132 = vmul.f32 %v2068, 0.01
    %v2133 = vmul.f32 %v2073, 0.01
    %v2134 = vmul.f32 %v2076, 0.01
    %v2135 = vmul.f32 %v2081, 0.01
    %v2136 = vmul.f32 %v2084, 0.01
    %v2137 = vmul.f32 %v2089, 0.01
    %v2138 = vmul.f32 %v2092, 0.01
    %v2139 = vmul.f32 %v2097, 0.01
    %v2140 = vmul.f32 %v2100, 0.01
    %v2141 = vmul.f32 %v2105, 0.01
    %v2142 = vmul.f32 %v2108, 0.01
    %v2143 = vsel %vm2111, %v2049, %v2127
    %v2144 = vsel %vm2112, %v2052, %v2128
    %v2145 = vsel %vm2113, %v2057, %v2129
    %v2146 = vsel %vm2114, %v2060, %v2130
    %v2147 = vsel %vm2115, %v2065, %v2131
    %v2148 = vsel %vm2116, %v2068, %v2132
    %v2149 = vsel %vm2117, %v2073, %v2133
    %v2150 = vsel %vm2118, %v2076, %v2134
    %v2151 = vsel %vm2119, %v2081, %v2135
    %v2152 = vsel %vm2120, %v2084, %v2136
    %v2153 = vsel %vm2121, %v2089, %v2137
    %v2154 = vsel %vm2122, %v2092, %v2138
    %v2155 = vsel %vm2123, %v2097, %v2139
    %v2156 = vsel %vm2124, %v2100, %v2140
    %v2157 = vsel %vm2125, %v2105, %v2141
    %v2158 = vsel %vm2126, %v2108, %v2142
    %v2159 = vpack.c.bf16 %v2144, %v2143
    %v2160 = vpack.c.bf16 %v2146, %v2145
    %v2161 = vpack.c.bf16 %v2148, %v2147
    %v2162 = vpack.c.bf16 %v2150, %v2149
    %v2163 = vpack.c.bf16 %v2152, %v2151
    %v2164 = vpack.c.bf16 %v2154, %v2153
    %v2165 = vpack.c.bf16 %v2156, %v2155
    %v2166 = vpack.c.bf16 %v2158, %v2157
    %v2175 = vrot.slane %v2159, 6
    %v2176 = vrot.slane %v2160, 6
    %v2177 = vrot.slane %v2161, 6
    %v2178 = vrot.slane %v2162, 6
    %v2179 = vrot.slane %v2163, 6
    %v2180 = vrot.slane %v2164, 6
    %v2181 = vrot.slane %v2165, 6
    %v2182 = vrot.slane %v2166, 6
    %v2184 = vsel %vm1661, 0, %v2175
    %v2187 = vsel %vm1661, 0, %v2176
    %v2190 = vsel %vm1661, 0, %v2177
    %v2193 = vsel %vm1661, 0, %v2178
    %v2196 = vsel %vm1661, 0, %v2179
    %v2199 = vsel %vm1661, 0, %v2180
    %v2202 = vsel %vm1661, 0, %v2181
    %v2205 = vsel %vm1661, 0, %v2182
    %v2207 = vrot.slane %v2159, 7
    %v2208 = vrot.slane %v2160, 7
    %v2209 = vrot.slane %v2161, 7
    %v2210 = vrot.slane %v2162, 7
    %v2211 = vrot.slane %v2163, 7
    %v2212 = vrot.slane %v2164, 7
    %v2213 = vrot.slane %v2165, 7
    %v2214 = vrot.slane %v2166, 7
    %v2216 = vsel %vm342, 0, %v2207
    %v2219 = vsel %vm342, 0, %v2208
    %v2222 = vsel %vm342, 0, %v2209
    %v2225 = vsel %vm342, 0, %v2210
    %v2228 = vsel %vm342, 0, %v2211
    %v2231 = vsel %vm342, 0, %v2212
    %v2234 = vsel %vm342, 0, %v2213
    %v2237 = vsel %vm342, 0, %v2214
    %v2239 = vld [vmem:[#allocation17] sm:$0xf]
    %v2240 = vld [vmem:[#allocation17 + $0x4] sm:$0xf]
    %v2241 = vld [vmem:[#allocation17 + $0x8] sm:$0xf]
    %v2242 = vld [vmem:[#allocation17 + $0xc] sm:$0xf]
    %v2243 = vld [vmem:[#allocation17 + $0x10] sm:$0xf]
    %v2244 = vld [vmem:[#allocation17 + $0x14] sm:$0xf]
    %v2245 = vld [vmem:[#allocation17 + $0x18] sm:$0xf]
    %v2246 = vld [vmem:[#allocation17 + $0x1c] sm:$0xf]
    %v2247 = vld [vmem:[#allocation17 + $0x20] sm:$0xf]
    %v2248 = vld [vmem:[#allocation17 + $0x24] sm:$0xf]
    %v2249 = vld [vmem:[#allocation17 + $0x28] sm:$0xf]
    %v2250 = vld [vmem:[#allocation17 + $0x2c] sm:$0xf]
    %v2251 = vld [vmem:[#allocation17 + $0x30] sm:$0xf]
    %v2252 = vld [vmem:[#allocation17 + $0x34] sm:$0xf]
    %v2253 = vld [vmem:[#allocation17 + $0x38] sm:$0xf]
    %v2254 = vld [vmem:[#allocation17 + $0x3c] sm:$0xf]
    %v2255 = vld [vmem:[#allocation17 + $0x40] sm:$0xf]
    %v2256 = vld [vmem:[#allocation17 + $0x44] sm:$0xf]
    %v2257 = vld [vmem:[#allocation17 + $0x48] sm:$0xf]
    %v2258 = vld [vmem:[#allocation17 + $0x4c] sm:$0xf]
    %v2259 = vld [vmem:[#allocation17 + $0x50] sm:$0xf]
    %v2260 = vld [vmem:[#allocation17 + $0x54] sm:$0xf]
    %v2261 = vld [vmem:[#allocation17 + $0x58] sm:$0xf]
    %v2262 = vld [vmem:[#allocation17 + $0x5c] sm:$0xf]
    %v2263 = vld [vmem:[#allocation17 + $0x60] sm:$0xf]
    %v2264 = vld [vmem:[#allocation17 + $0x64] sm:$0xf]
    %v2265 = vld [vmem:[#allocation17 + $0x68] sm:$0xf]
    %v2266 = vld [vmem:[#allocation17 + $0x6c] sm:$0xf]
    %v2267 = vld [vmem:[#allocation17 + $0x70] sm:$0xf]
    %v2268 = vld [vmem:[#allocation17 + $0x74] sm:$0xf]
    %v2269 = vld [vmem:[#allocation17 + $0x78] sm:$0xf]
    %v2270 = vld [vmem:[#allocation17 + $0x7c] sm:$0xf]
    %v2271 = vld [vmem:[#allocation17 + $0x80] sm:$0xf]
    %v2272 = vld [vmem:[#allocation17 + $0x84] sm:$0xf]
    %v2273 = vld [vmem:[#allocation17 + $0x88] sm:$0xf]
    %v2274 = vld [vmem:[#allocation17 + $0x8c] sm:$0xf]
    %v2275 = vld [vmem:[#allocation17 + $0x90] sm:$0xf]
    %v2276 = vld [vmem:[#allocation17 + $0x94] sm:$0xf]
    %v2277 = vld [vmem:[#allocation17 + $0x98] sm:$0xf]
    %v2278 = vld [vmem:[#allocation17 + $0x9c] sm:$0xf]
    %v2279 = vld [vmem:[#allocation17 + $0xa0] sm:$0xf]
    %v2280 = vld [vmem:[#allocation17 + $0xa4] sm:$0xf]
    %v2281 = vld [vmem:[#allocation17 + $0xa8] sm:$0xf]
    %v2282 = vld [vmem:[#allocation17 + $0xac] sm:$0xf]
    %v2283 = vld [vmem:[#allocation17 + $0xb0] sm:$0xf]
    %v2284 = vld [vmem:[#allocation17 + $0xb4] sm:$0xf]
    %v2285 = vld [vmem:[#allocation17 + $0xb8] sm:$0xf]
    %v2286 = vld [vmem:[#allocation17 + $0xbc] sm:$0xf]
    %v2287 = vld [vmem:[#allocation19] sm:$0x1]
    %v2289 = vlaneseq
    %v2290 = vshrl.u32 %v2289, 7
    %v2291 = vsub.s32 0, %v2290
    %v2292 = vrot.slane %v2287, %v2291
    %v2342 = vunpack.c.l.b16 %v2239
    %v2343 = vunpack.c.l.b16 %v2240
    %v2344 = vunpack.c.l.b16 %v2241
    %v2345 = vunpack.c.l.b16 %v2242
    %v2346 = vunpack.c.l.b16 %v2243
    %v2347 = vunpack.c.l.b16 %v2244
    %v2348 = vunpack.c.l.b16 %v2245
    %v2349 = vunpack.c.l.b16 %v2246
    %v2350 = vunpack.c.l.b16 %v2247
    %v2351 = vunpack.c.l.b16 %v2248
    %v2352 = vunpack.c.l.b16 %v2249
    %v2353 = vunpack.c.l.b16 %v2250
    %v2354 = vunpack.c.l.b16 %v2251
    %v2355 = vunpack.c.l.b16 %v2252
    %v2356 = vunpack.c.l.b16 %v2253
    %v2357 = vunpack.c.l.b16 %v2254
    %v2358 = vunpack.c.l.b16 %v2255
    %v2359 = vunpack.c.l.b16 %v2256
    %v2360 = vunpack.c.l.b16 %v2257
    %v2361 = vunpack.c.l.b16 %v2258
    %v2362 = vunpack.c.l.b16 %v2259
    %v2363 = vunpack.c.l.b16 %v2260
    %v2364 = vunpack.c.l.b16 %v2261
    %v2365 = vunpack.c.l.b16 %v2262
    %v2366 = vunpack.c.l.b16 %v2263
    %v2367 = vunpack.c.l.b16 %v2264
    %v2368 = vunpack.c.l.b16 %v2265
    %v2369 = vunpack.c.l.b16 %v2266
    %v2370 = vunpack.c.l.b16 %v2267
    %v2371 = vunpack.c.l.b16 %v2268
    %v2372 = vunpack.c.l.b16 %v2269
    %v2373 = vunpack.c.l.b16 %v2270
    %v2374 = vunpack.c.l.b16 %v2271
    %v2375 = vunpack.c.l.b16 %v2272
    %v2376 = vunpack.c.l.b16 %v2273
    %v2377 = vunpack.c.l.b16 %v2274
    %v2378 = vunpack.c.l.b16 %v2275
    %v2379 = vunpack.c.l.b16 %v2276
    %v2380 = vunpack.c.l.b16 %v2277
    %v2381 = vunpack.c.l.b16 %v2278
    %v2382 = vunpack.c.l.b16 %v2279
    %v2383 = vunpack.c.l.b16 %v2280
    %v2384 = vunpack.c.l.b16 %v2281
    %v2385 = vunpack.c.l.b16 %v2282
    %v2386 = vunpack.c.l.b16 %v2283
    %v2387 = vunpack.c.l.b16 %v2284
    %v2388 = vunpack.c.l.b16 %v2285
    %v2389 = vunpack.c.l.b16 %v2286
    %v2390 = vpack.c.b16 %v2343, %v2342
    %v2391 = vpack.c.b16 %v2345, %v2344
    %v2392 = vpack.c.b16 %v2347, %v2346
    %v2393 = vpack.c.b16 %v2349, %v2348
    %v2394 = vpack.c.b16 %v2351, %v2350
    %v2395 = vpack.c.b16 %v2353, %v2352
    %v2396 = vpack.c.b16 %v2355, %v2354
    %v2397 = vpack.c.b16 %v2357, %v2356
    %v2398 = vpack.c.b16 %v2359, %v2358
    %v2399 = vpack.c.b16 %v2361, %v2360
    %v2400 = vpack.c.b16 %v2363, %v2362
    %v2401 = vpack.c.b16 %v2365, %v2364
    %v2402 = vpack.c.b16 %v2367, %v2366
    %v2403 = vpack.c.b16 %v2369, %v2368
    %v2404 = vpack.c.b16 %v2371, %v2370
    %v2405 = vpack.c.b16 %v2373, %v2372
    %v2406 = vpack.c.b16 %v2375, %v2374
    %v2407 = vpack.c.b16 %v2377, %v2376
    %v2408 = vpack.c.b16 %v2379, %v2378
    %v2409 = vpack.c.b16 %v2381, %v2380
    %v2410 = vpack.c.b16 %v2383, %v2382
    %v2411 = vpack.c.b16 %v2385, %v2384
    %v2412 = vpack.c.b16 %v2387, %v2386
    %v2413 = vpack.c.b16 %v2389, %v2388
    %2438 = vmatprep.subr.bf16.mxu0 0
    %2439 = vmatpush1.bf16.msra.mxu0 %v2390
    %2440 = vmatprep.subr.bf16.mxu0 0
    %2441 = vmatpush1.bf16.msra.mxu0 %v2391
    %2442 = vmatprep.subr.bf16.mxu0 0
    %2443 = vmatpush1.bf16.msra.mxu0 %v2392
    %2444 = vmatprep.subr.bf16.mxu0 0
    %2445 = vmatpush1.bf16.msra.mxu0 %v2393
    %2446 = vmatprep.subr.bf16.mxu0 0
    %2447 = vmatpush1.bf16.msra.mxu0 %v2394
    %2448 = vmatprep.subr.bf16.mxu0 0
    %2449 = vmatpush1.bf16.msra.mxu0 %v2395
    %2450 = vmatprep.subr.bf16.mxu0 0
    %2451 = vmatpush1.bf16.msra.mxu0 %v2396
    %2452 = vmatprep.subr.bf16.mxu0 0
    %2453 = vmatpush1.bf16.msra.mxu0 %v2397
    %2454 = vmatprep.subr.bf16.mxu0 0
    %2455 = vmatpush1.bf16.msra.mxu0 %v2398
    %2456 = vmatprep.subr.bf16.mxu0 0
    %2457 = vmatpush1.bf16.msra.mxu0 %v2399
    %2458 = vmatprep.subr.bf16.mxu0 0
    %2459 = vmatpush1.bf16.msra.mxu0 %v2400
    %2460 = vmatprep.subr.bf16.mxu0 0
    %2461 = vmatpush1.bf16.msra.mxu0 %v2401
    %2462 = vmatprep.subr.bf16.mxu0 0
    %2463 = vmatpush1.bf16.msra.mxu0 %v2402
    %2464 = vmatprep.subr.bf16.mxu0 0
    %2465 = vmatpush1.bf16.msra.mxu0 %v2403
    %2466 = vmatprep.subr.bf16.mxu0 0
    %2467 = vmatpush1.bf16.msra.mxu0 %v2404
    %2468 = vmatprep.subr.bf16.mxu0 0
    %2469 = vmatpush1.bf16.msra.mxu0 %v2405
    %2470 = vmatprep.mubr.bf16.mxu0 %v2216
    %2471 = vmatmul.mubr.bf16.gmra.mrb[0].mxu0 %v2184
    %v2472 = vpop.f32.mrb[0].mxu0
    %v2473 = vadd.f32 %v2292, %v2472
    %v2474 = vpop.f32.mrb[0].mxu0
    %v2475 = vpop.f32.mrb[0].mxu0
    %v2476 = vadd.f32 %v2292, %v2475
    %v2477 = vpop.f32.mrb[0].mxu0
    %2478 = vmatprep.mubr.bf16.mxu0 %v2219
    %2479 = vmatmul.mubr.bf16.gmra.mrb[0].mxu0 %v2187
    %v2480 = vpop.f32.mrb[0].mxu0
    %v2481 = vadd.f32 %v2292, %v2480
    %v2482 = vpop.f32.mrb[0].mxu0
    %v2483 = vpop.f32.mrb[0].mxu0
    %v2484 = vadd.f32 %v2292, %v2483
    %v2485 = vpop.f32.mrb[0].mxu0
    %2486 = vmatprep.mubr.bf16.mxu0 %v2222
    %2487 = vmatmul.mubr.bf16.gmra.mrb[0].mxu0 %v2190
    %v2488 = vpop.f32.mrb[0].mxu0
    %v2489 = vadd.f32 %v2292, %v2488
    %v2490 = vpop.f32.mrb[0].mxu0
    %v2491 = vpop.f32.mrb[0].mxu0
    %v2492 = vadd.f32 %v2292, %v2491
    %v2493 = vpop.f32.mrb[0].mxu0
    %2494 = vmatprep.mubr.bf16.mxu0 %v2225
    %2495 = vmatmul.mubr.bf16.gmra.mrb[0].mxu0 %v2193
    %v2496 = vpop.f32.mrb[0].mxu0
    %v2497 = vadd.f32 %v2292, %v2496
    %v2498 = vpop.f32.mrb[0].mxu0
    %v2499 = vpop.f32.mrb[0].mxu0
    %v2500 = vadd.f32 %v2292, %v2499
    %v2501 = vpop.f32.mrb[0].mxu0
    %2502 = vmatprep.mubr.bf16.mxu0 %v2228
    %2503 = vmatmul.mubr.bf16.gmra.mrb[0].mxu0 %v2196
    %v2504 = vpop.f32.mrb[0].mxu0
    %v2505 = vadd.f32 %v2292, %v2504
    %v2506 = vpop.f32.mrb[0].mxu0
    %v2507 = vpop.f32.mrb[0].mxu0
    %v2508 = vadd.f32 %v2292, %v2507
    %v2509 = vpop.f32.mrb[0].mxu0
    %2510 = vmatprep.mubr.bf16.mxu0 %v2231
    %2511 = vmatmul.mubr.bf16.gmra.mrb[0].mxu0 %v2199
    %v2512 = vpop.f32.mrb[0].mxu0
    %v2513 = vadd.f32 %v2292, %v2512
    %v2514 = vpop.f32.mrb[0].mxu0
    %v2515 = vpop.f32.mrb[0].mxu0
    %v2516 = vadd.f32 %v2292, %v2515
    %v2517 = vpop.f32.mrb[0].mxu0
    %2518 = vmatprep.mubr.bf16.mxu0 %v2234
    %2519 = vmatmul.mubr.bf16.gmra.mrb[0].mxu0 %v2202
    %v2520 = vpop.f32.mrb[0].mxu0
    %v2521 = vadd.f32 %v2292, %v2520
    %v2522 = vpop.f32.mrb[0].mxu0
    %v2523 = vpop.f32.mrb[0].mxu0
    %v2524 = vadd.f32 %v2292, %v2523
    %v2525 = vpop.f32.mrb[0].mxu0
    %2526 = vmatprep.mubr.bf16.mxu0 %v2237
    %2527 = vmatmul.mubr.bf16.gmra.mrb[0].mxu0 %v2205
    %v2528 = vpop.f32.mrb[0].mxu0
    %v2529 = vadd.f32 %v2292, %v2528
    %v2530 = vpop.f32.mrb[0].mxu0
    %v2531 = vpop.f32.mrb[0].mxu0
    %v2532 = vadd.f32 %v2292, %v2531
    %v2533 = vpop.f32.mrb[0].mxu0
    %2534 = vdwg.mxu0
    %2535 = vmatprep.subr.bf16.mxu0 0
    %2536 = vmatpush1.bf16.msra.mxu0 %v2406
    %2537 = vmatprep.subr.bf16.mxu0 0
    %2538 = vmatpush1.bf16.msra.mxu0 %v2407
    %2539 = vmatprep.subr.bf16.mxu0 0
    %2540 = vmatpush1.bf16.msra.mxu0 %v2408
    %2541 = vmatprep.subr.bf16.mxu0 0
    %2542 = vmatpush1.bf16.msra.mxu0 %v2409
    %2543 = vmatprep.subr.bf16.mxu0 0
    %2544 = vmatpush1.bf16.msra.mxu0 %v2410
    %2545 = vmatprep.subr.bf16.mxu0 0
    %2546 = vmatpush1.bf16.msra.mxu0 %v2411
    %2547 = vmatprep.subr.bf16.mxu0 0
    %2548 = vmatpush1.bf16.msra.mxu0 %v2412
    %2549 = vmatprep.subr.bf16.mxu0 0
    %2550 = vmatpush1.bf16.msra.mxu0 %v2413
    %2551 = vmatprep.subr.bf16.mxu0 0
    %2552 = vmatpush1.bf16.msra.mxu0 0
    %2553 = vmatprep.subr.bf16.mxu0 0
    %2554 = vmatpush1.bf16.msra.mxu0 0
    %2555 = vmatprep.subr.bf16.mxu0 0
    %2556 = vmatpush1.bf16.msra.mxu0 0
    %2557 = vmatprep.subr.bf16.mxu0 0
    %2558 = vmatpush1.bf16.msra.mxu0 0
    %2559 = vmatprep.subr.bf16.mxu0 0
    %2560 = vmatpush1.bf16.msra.mxu0 0
    %2561 = vmatprep.subr.bf16.mxu0 0
    %2562 = vmatpush1.bf16.msra.mxu0 0
    %2563 = vmatprep.subr.bf16.mxu0 0
    %2564 = vmatpush1.bf16.msra.mxu0 0
    %2565 = vmatprep.subr.bf16.mxu0 0
    %2566 = vmatpush1.bf16.msra.mxu0 0
    %2567 = vmatprep.mubr.bf16.mxu0 0
    %2568 = vmatmul.mubr.bf16.gmra.mrb[0].mxu0 %v2159
    %v2569 = vpop.f32.mrb[0].mxu0
    %v2570 = vadd.f32 %v2473, %v2569
    %v2571 = vpop.f32.mrb[0].mxu0
    %v2572 = vpop.f32.mrb[0].mxu0
    %v2573 = vadd.f32 %v2476, %v2572
    %v2574 = vpop.f32.mrb[0].mxu0
    %2575 = vmatprep.mubr.bf16.mxu0 0
    %2576 = vmatmul.mubr.bf16.gmra.mrb[0].mxu0 %v2160
    %v2577 = vpop.f32.mrb[0].mxu0
    %v2578 = vadd.f32 %v2481, %v2577
    %v2579 = vpop.f32.mrb[0].mxu0
    %v2580 = vpop.f32.mrb[0].mxu0
    %v2581 = vadd.f32 %v2484, %v2580
    %v2582 = vpop.f32.mrb[0].mxu0
    %2583 = vmatprep.mubr.bf16.mxu0 0
    %2584 = vmatmul.mubr.bf16.gmra.mrb[0].mxu0 %v2161
    %v2585 = vpop.f32.mrb[0].mxu0
    %v2586 = vadd.f32 %v2489, %v2585
    %v2587 = vpop.f32.mrb[0].mxu0
    %v2588 = vpop.f32.mrb[0].mxu0
    %v2589 = vadd.f32 %v2492, %v2588
    %v2590 = vpop.f32.mrb[0].mxu0
    %2591 = vmatprep.mubr.bf16.mxu0 0
    %2592 = vmatmul.mubr.bf16.gmra.mrb[0].mxu0 %v2162
    %v2593 = vpop.f32.mrb[0].mxu0
    %v2594 = vadd.f32 %v2497, %v2593
    %v2595 = vpop.f32.mrb[0].mxu0
    %v2596 = vpop.f32.mrb[0].mxu0
    %v2597 = vadd.f32 %v2500, %v2596
    %v2598 = vpop.f32.mrb[0].mxu0
    %2599 = vmatprep.mubr.bf16.mxu0 0
    %2600 = vmatmul.mubr.bf16.gmra.mrb[0].mxu0 %v2163
    %v2601 = vpop.f32.mrb[0].mxu0
    %v2602 = vadd.f32 %v2505, %v2601
    %v2603 = vpop.f32.mrb[0].mxu0
    %v2604 = vpop.f32.mrb[0].mxu0
    %v2605 = vadd.f32 %v2508, %v2604
    %v2606 = vpop.f32.mrb[0].mxu0
    %2607 = vmatprep.mubr.bf16.mxu0 0
    %2608 = vmatmul.mubr.bf16.gmra.mrb[0].mxu0 %v2164
    %v2609 = vpop.f32.mrb[0].mxu0
    %v2610 = vadd.f32 %v2513, %v2609
    %v2611 = vpop.f32.mrb[0].mxu0
    %v2612 = vpop.f32.mrb[0].mxu0
    %v2613 = vadd.f32 %v2516, %v2612
    %v2614 = vpop.f32.mrb[0].mxu0
    %2615 = vmatprep.mubr.bf16.mxu0 0
    %2616 = vmatmul.mubr.bf16.gmra.mrb[0].mxu0 %v2165
    %v2617 = vpop.f32.mrb[0].mxu0
    %v2618 = vadd.f32 %v2521, %v2617
    %v2619 = vpop.f32.mrb[0].mxu0
    %v2620 = vpop.f32.mrb[0].mxu0
    %v2621 = vadd.f32 %v2524, %v2620
    %v2622 = vpop.f32.mrb[0].mxu0
    %2623 = vmatprep.mubr.bf16.mxu0 0
    %2624 = vmatmul.mubr.bf16.gmra.mrb[0].mxu0 %v2166
    %v2625 = vpop.f32.mrb[0].mxu0
    %v2626 = vadd.f32 %v2529, %v2625
    %v2627 = vpop.f32.mrb[0].mxu0
    %v2628 = vpop.f32.mrb[0].mxu0
    %v2629 = vadd.f32 %v2532, %v2628
    %v2630 = vpop.f32.mrb[0].mxu0
    %2631 = vdwg.mxu0
    %vm2632 = vcmp.ge.f32.partialorder %v2570, 0.0
    %vm2633 = vcmp.ge.f32.partialorder %v2573, 0.0
    %vm2634 = vcmp.ge.f32.partialorder %v2578, 0.0
    %vm2635 = vcmp.ge.f32.partialorder %v2581, 0.0
    %vm2636 = vcmp.ge.f32.partialorder %v2586, 0.0
    %vm2637 = vcmp.ge.f32.partialorder %v2589, 0.0
    %vm2638 = vcmp.ge.f32.partialorder %v2594, 0.0
    %vm2639 = vcmp.ge.f32.partialorder %v2597, 0.0
    %vm2640 = vcmp.ge.f32.partialorder %v2602, 0.0
    %vm2641 = vcmp.ge.f32.partialorder %v2605, 0.0
    %vm2642 = vcmp.ge.f32.partialorder %v2610, 0.0
    %vm2643 = vcmp.ge.f32.partialorder %v2613, 0.0
    %vm2644 = vcmp.ge.f32.partialorder %v2618, 0.0
    %vm2645 = vcmp.ge.f32.partialorder %v2621, 0.0
    %vm2646 = vcmp.ge.f32.partialorder %v2626, 0.0
    %vm2647 = vcmp.ge.f32.partialorder %v2629, 0.0
    %v2648 = vmul.f32 %v2570, 0.01
    %v2649 = vmul.f32 %v2573, 0.01
    %v2650 = vmul.f32 %v2578, 0.01
    %v2651 = vmul.f32 %v2581, 0.01
    %v2652 = vmul.f32 %v2586, 0.01
    %v2653 = vmul.f32 %v2589, 0.01
    %v2654 = vmul.f32 %v2594, 0.01
    %v2655 = vmul.f32 %v2597, 0.01
    %v2656 = vmul.f32 %v2602, 0.01
    %v2657 = vmul.f32 %v2605, 0.01
    %v2658 = vmul.f32 %v2610, 0.01
    %v2659 = vmul.f32 %v2613, 0.01
    %v2660 = vmul.f32 %v2618, 0.01
    %v2661 = vmul.f32 %v2621, 0.01
    %v2662 = vmul.f32 %v2626, 0.01
    %v2663 = vmul.f32 %v2629, 0.01
    %v2664 = vsel %vm2632, %v2570, %v2648
    %v2665 = vsel %vm2633, %v2573, %v2649
    %v2666 = vsel %vm2634, %v2578, %v2650
    %v2667 = vsel %vm2635, %v2581, %v2651
    %v2668 = vsel %vm2636, %v2586, %v2652
    %v2669 = vsel %vm2637, %v2589, %v2653
    %v2670 = vsel %vm2638, %v2594, %v2654
    %v2671 = vsel %vm2639, %v2597, %v2655
    %v2672 = vsel %vm2640, %v2602, %v2656
    %v2673 = vsel %vm2641, %v2605, %v2657
    %v2674 = vsel %vm2642, %v2610, %v2658
    %v2675 = vsel %vm2643, %v2613, %v2659
    %v2676 = vsel %vm2644, %v2618, %v2660
    %v2677 = vsel %vm2645, %v2621, %v2661
    %v2678 = vsel %vm2646, %v2626, %v2662
    %v2679 = vsel %vm2647, %v2629, %v2663
    %v2680 = vadd.f32 %v2664, %v1621
    %v2681 = vadd.f32 %v2665, %v1622
    %v2682 = vadd.f32 %v2666, %v1623
    %v2683 = vadd.f32 %v2667, %v1624
    %v2684 = vadd.f32 %v2668, %v1625
    %v2685 = vadd.f32 %v2669, %v1626
    %v2686 = vadd.f32 %v2670, %v1627
    %v2687 = vadd.f32 %v2671, %v1628
    %v2688 = vadd.f32 %v2672, %v1629
    %v2689 = vadd.f32 %v2673, %v1630
    %v2690 = vadd.f32 %v2674, %v1631
    %v2691 = vadd.f32 %v2675, %v1632
    %v2692 = vadd.f32 %v2676, %v1633
    %v2693 = vadd.f32 %v2677, %v1634
    %v2694 = vadd.f32 %v2678, %v1635
    %v2695 = vadd.f32 %v2679, %v1636
    %v2696 = vpack.c.bf16 %v2681, %v2680
    %v2697 = vpack.c.bf16 %v2683, %v2682
    %v2698 = vpack.c.bf16 %v2685, %v2684
    %v2699 = vpack.c.bf16 %v2687, %v2686
    %v2700 = vpack.c.bf16 %v2689, %v2688
    %v2701 = vpack.c.bf16 %v2691, %v2690
    %v2702 = vpack.c.bf16 %v2693, %v2692
    %v2703 = vpack.c.bf16 %v2695, %v2694
    %v2712 = vrot.slane %v2696, 4
    %v2713 = vrot.slane %v2697, 4
    %v2714 = vrot.slane %v2698, 4
    %v2715 = vrot.slane %v2699, 4
    %v2716 = vrot.slane %v2700, 4
    %v2717 = vrot.slane %v2701, 4
    %v2718 = vrot.slane %v2702, 4
    %v2719 = vrot.slane %v2703, 4
    %vm2720 = vcmask 1043456
    %v2722 = vsel %vm2720, 0, %v2712
    %v2725 = vsel %vm2720, 0, %v2713
    %v2728 = vsel %vm2720, 0, %v2714
    %v2731 = vsel %vm2720, 0, %v2715
    %v2734 = vsel %vm2720, 0, %v2716
    %v2737 = vsel %vm2720, 0, %v2717
    %v2740 = vsel %vm2720, 0, %v2718
    %v2743 = vsel %vm2720, 0, %v2719
    %v2745 = vrot.slane %v2696, 6
    %v2746 = vrot.slane %v2697, 6
    %v2747 = vrot.slane %v2698, 6
    %v2748 = vrot.slane %v2699, 6
    %v2749 = vrot.slane %v2700, 6
    %v2750 = vrot.slane %v2701, 6
    %v2751 = vrot.slane %v2702, 6
    %v2752 = vrot.slane %v2703, 6
    %v2754 = vsel %vm1661, 0, %v2745
    %v2757 = vsel %vm1661, 0, %v2746
    %v2760 = vsel %vm1661, 0, %v2747
    %v2763 = vsel %vm1661, 0, %v2748
    %v2766 = vsel %vm1661, 0, %v2749
    %v2769 = vsel %vm1661, 0, %v2750
    %v2772 = vsel %vm1661, 0, %v2751
    %v2775 = vsel %vm1661, 0, %v2752
    %v2777 = vld [vmem:[#allocation20] sm:$0xf]
    %v2778 = vld [vmem:[#allocation20 + $0x4] sm:$0xf]
    %v2779 = vld [vmem:[#allocation20 + $0x8] sm:$0xf]
    %v2780 = vld [vmem:[#allocation20 + $0xc] sm:$0xf]
    %v2781 = vld [vmem:[#allocation20 + $0x10] sm:$0xf]
    %v2782 = vld [vmem:[#allocation20 + $0x14] sm:$0xf]
    %v2783 = vld [vmem:[#allocation20 + $0x18] sm:$0xf]
    %v2784 = vld [vmem:[#allocation20 + $0x1c] sm:$0xf]
    %v2785 = vld [vmem:[#allocation20 + $0x20] sm:$0xf]
    %v2786 = vld [vmem:[#allocation20 + $0x24] sm:$0xf]
    %v2787 = vld [vmem:[#allocation20 + $0x28] sm:$0xf]
    %v2788 = vld [vmem:[#allocation20 + $0x2c] sm:$0xf]
    %v2789 = vld [vmem:[#allocation20 + $0x30] sm:$0xf]
    %v2790 = vld [vmem:[#allocation20 + $0x34] sm:$0xf]
    %v2791 = vld [vmem:[#allocation20 + $0x38] sm:$0xf]
    %v2792 = vld [vmem:[#allocation20 + $0x3c] sm:$0xf]
    %v2793 = vld [vmem:[#allocation20 + $0x40] sm:$0xf]
    %v2794 = vld [vmem:[#allocation20 + $0x44] sm:$0xf]
    %v2795 = vld [vmem:[#allocation20 + $0x48] sm:$0xf]
    %v2796 = vld [vmem:[#allocation20 + $0x4c] sm:$0xf]
    %v2797 = vld [vmem:[#allocation20 + $0x50] sm:$0xf]
    %v2798 = vld [vmem:[#allocation20 + $0x54] sm:$0xf]
    %v2799 = vld [vmem:[#allocation20 + $0x58] sm:$0xf]
    %v2800 = vld [vmem:[#allocation20 + $0x5c] sm:$0xf]
    %v2801 = vld [vmem:[#allocation20 + $0x60] sm:$0xf]
    %v2802 = vld [vmem:[#allocation20 + $0x64] sm:$0xf]
    %v2803 = vld [vmem:[#allocation20 + $0x68] sm:$0xf]
    %v2804 = vld [vmem:[#allocation20 + $0x6c] sm:$0xf]
    %v2805 = vld [vmem:[#allocation20 + $0x70] sm:$0xf]
    %v2806 = vld [vmem:[#allocation20 + $0x74] sm:$0xf]
    %v2807 = vld [vmem:[#allocation20 + $0x78] sm:$0xf]
    %v2808 = vld [vmem:[#allocation20 + $0x7c] sm:$0xf]
    %v2809 = vld [vmem:[#allocation20 + $0x80] sm:$0xf]
    %v2810 = vld [vmem:[#allocation20 + $0x84] sm:$0xf]
    %v2811 = vld [vmem:[#allocation20 + $0x88] sm:$0xf]
    %v2812 = vld [vmem:[#allocation20 + $0x8c] sm:$0xf]
    %v2813 = vld [vmem:[#allocation20 + $0x90] sm:$0xf]
    %v2814 = vld [vmem:[#allocation20 + $0x94] sm:$0xf]
    %v2815 = vld [vmem:[#allocation20 + $0x98] sm:$0xf]
    %v2816 = vld [vmem:[#allocation20 + $0x9c] sm:$0xf]
    %v2817 = vld [vmem:[#allocation20 + $0xa0] sm:$0xf]
    %v2818 = vld [vmem:[#allocation20 + $0xa4] sm:$0xf]
    %v2819 = vld [vmem:[#allocation20 + $0xa8] sm:$0xf]
    %v2820 = vld [vmem:[#allocation20 + $0xac] sm:$0xf]
    %v2821 = vld [vmem:[#allocation20 + $0xb0] sm:$0xf]
    %v2822 = vld [vmem:[#allocation20 + $0xb4] sm:$0xf]
    %v2823 = vld [vmem:[#allocation20 + $0xb8] sm:$0xf]
    %v2824 = vld [vmem:[#allocation20 + $0xbc] sm:$0xf]
    %v2825 = vld [vmem:[#allocation22] sm:$0x1]
    %v2827 = vlaneseq
    %v2828 = vshrl.u32 %v2827, 7
    %v2829 = vsub.s32 0, %v2828
    %v2830 = vrot.slane %v2825, %v2829
    %v2880 = vunpack.c.l.b16 %v2777
    %v2881 = vunpack.c.l.b16 %v2778
    %v2882 = vunpack.c.l.b16 %v2779
    %v2883 = vunpack.c.l.b16 %v2780
    %v2884 = vunpack.c.l.b16 %v2781
    %v2885 = vunpack.c.l.b16 %v2782
    %v2886 = vunpack.c.l.b16 %v2783
    %v2887 = vunpack.c.l.b16 %v2784
    %v2888 = vunpack.c.l.b16 %v2785
    %v2889 = vunpack.c.l.b16 %v2786
    %v2890 = vunpack.c.l.b16 %v2787
    %v2891 = vunpack.c.l.b16 %v2788
    %v2892 = vunpack.c.l.b16 %v2789
    %v2893 = vunpack.c.l.b16 %v2790
    %v2894 = vunpack.c.l.b16 %v2791
    %v2895 = vunpack.c.l.b16 %v2792
    %v2896 = vunpack.c.l.b16 %v2793
    %v2897 = vunpack.c.l.b16 %v2794
    %v2898 = vunpack.c.l.b16 %v2795
    %v2899 = vunpack.c.l.b16 %v2796
    %v2900 = vunpack.c.l.b16 %v2797
    %v2901 = vunpack.c.l.b16 %v2798
    %v2902 = vunpack.c.l.b16 %v2799
    %v2903 = vunpack.c.l.b16 %v2800
    %v2904 = vunpack.c.l.b16 %v2801
    %v2905 = vunpack.c.l.b16 %v2802
    %v2906 = vunpack.c.l.b16 %v2803
    %v2907 = vunpack.c.l.b16 %v2804
    %v2908 = vunpack.c.l.b16 %v2805
    %v2909 = vunpack.c.l.b16 %v2806
    %v2910 = vunpack.c.l.b16 %v2807
    %v2911 = vunpack.c.l.b16 %v2808
    %v2912 = vunpack.c.l.b16 %v2809
    %v2913 = vunpack.c.l.b16 %v2810
    %v2914 = vunpack.c.l.b16 %v2811
    %v2915 = vunpack.c.l.b16 %v2812
    %v2916 = vunpack.c.l.b16 %v2813
    %v2917 = vunpack.c.l.b16 %v2814
    %v2918 = vunpack.c.l.b16 %v2815
    %v2919 = vunpack.c.l.b16 %v2816
    %v2920 = vunpack.c.l.b16 %v2817
    %v2921 = vunpack.c.l.b16 %v2818
    %v2922 = vunpack.c.l.b16 %v2819
    %v2923 = vunpack.c.l.b16 %v2820
    %v2924 = vunpack.c.l.b16 %v2821
    %v2925 = vunpack.c.l.b16 %v2822
    %v2926 = vunpack.c.l.b16 %v2823
    %v2927 = vunpack.c.l.b16 %v2824
    %v2928 = vpack.c.b16 %v2881, %v2880
    %v2929 = vpack.c.b16 %v2883, %v2882
    %v2930 = vpack.c.b16 %v2885, %v2884
    %v2931 = vpack.c.b16 %v2887, %v2886
    %v2932 = vpack.c.b16 %v2889, %v2888
    %v2933 = vpack.c.b16 %v2891, %v2890
    %v2934 = vpack.c.b16 %v2893, %v2892
    %v2935 = vpack.c.b16 %v2895, %v2894
    %v2936 = vpack.c.b16 %v2897, %v2896
    %v2937 = vpack.c.b16 %v2899, %v2898
    %v2938 = vpack.c.b16 %v2901, %v2900
    %v2939 = vpack.c.b16 %v2903, %v2902
    %v2940 = vpack.c.b16 %v2905, %v2904
    %v2941 = vpack.c.b16 %v2907, %v2906
    %v2942 = vpack.c.b16 %v2909, %v2908
    %v2943 = vpack.c.b16 %v2911, %v2910
    %v2944 = vpack.c.b16 %v2913, %v2912
    %v2945 = vpack.c.b16 %v2915, %v2914
    %v2946 = vpack.c.b16 %v2917, %v2916
    %v2947 = vpack.c.b16 %v2919, %v2918
    %v2948 = vpack.c.b16 %v2921, %v2920
    %v2949 = vpack.c.b16 %v2923, %v2922
    %v2950 = vpack.c.b16 %v2925, %v2924
    %v2951 = vpack.c.b16 %v2927, %v2926
    %2976 = vmatprep.subr.bf16.mxu0 0
    %2977 = vmatpush1.bf16.msra.mxu0 %v2928
    %2978 = vmatprep.subr.bf16.mxu0 0
    %2979 = vmatpush1.bf16.msra.mxu0 %v2929
    %2980 = vmatprep.subr.bf16.mxu0 0
    %2981 = vmatpush1.bf16.msra.mxu0 %v2930
    %2982 = vmatprep.subr.bf16.mxu0 0
    %2983 = vmatpush1.bf16.msra.mxu0 %v2931
    %2984 = vmatprep.subr.bf16.mxu0 0
    %2985 = vmatpush1.bf16.msra.mxu0 %v2932
    %2986 = vmatprep.subr.bf16.mxu0 0
    %2987 = vmatpush1.bf16.msra.mxu0 %v2933
    %2988 = vmatprep.subr.bf16.mxu0 0
    %2989 = vmatpush1.bf16.msra.mxu0 %v2934
    %2990 = vmatprep.subr.bf16.mxu0 0
    %2991 = vmatpush1.bf16.msra.mxu0 %v2935
    %2992 = vmatprep.subr.bf16.mxu0 0
    %2993 = vmatpush1.bf16.msra.mxu0 %v2936
    %2994 = vmatprep.subr.bf16.mxu0 0
    %2995 = vmatpush1.bf16.msra.mxu0 %v2937
    %2996 = vmatprep.subr.bf16.mxu0 0
    %2997 = vmatpush1.bf16.msra.mxu0 %v2938
    %2998 = vmatprep.subr.bf16.mxu0 0
    %2999 = vmatpush1.bf16.msra.mxu0 %v2939
    %3000 = vmatprep.subr.bf16.mxu0 0
    %3001 = vmatpush1.bf16.msra.mxu0 %v2940
    %3002 = vmatprep.subr.bf16.mxu0 0
    %3003 = vmatpush1.bf16.msra.mxu0 %v2941
    %3004 = vmatprep.subr.bf16.mxu0 0
    %3005 = vmatpush1.bf16.msra.mxu0 %v2942
    %3006 = vmatprep.subr.bf16.mxu0 0
    %3007 = vmatpush1.bf16.msra.mxu0 %v2943
    %3008 = vmatprep.mubr.bf16.mxu0 %v2754
    %3009 = vmatmul.mubr.bf16.gmra.mrb[0].mxu0 %v2722
    %v3010 = vpop.f32.mrb[0].mxu0
    %v3011 = vadd.f32 %v2830, %v3010
    %v3012 = vpop.f32.mrb[0].mxu0
    %v3013 = vpop.f32.mrb[0].mxu0
    %v3014 = vadd.f32 %v2830, %v3013
    %v3015 = vpop.f32.mrb[0].mxu0
    %3016 = vmatprep.mubr.bf16.mxu0 %v2757
    %3017 = vmatmul.mubr.bf16.gmra.mrb[0].mxu0 %v2725
    %v3018 = vpop.f32.mrb[0].mxu0
    %v3019 = vadd.f32 %v2830, %v3018
    %v3020 = vpop.f32.mrb[0].mxu0
    %v3021 = vpop.f32.mrb[0].mxu0
    %v3022 = vadd.f32 %v2830, %v3021
    %v3023 = vpop.f32.mrb[0].mxu0
    %3024 = vmatprep.mubr.bf16.mxu0 %v2760
    %3025 = vmatmul.mubr.bf16.gmra.mrb[0].mxu0 %v2728
    %v3026 = vpop.f32.mrb[0].mxu0
    %v3027 = vadd.f32 %v2830, %v3026
    %v3028 = vpop.f32.mrb[0].mxu0
    %v3029 = vpop.f32.mrb[0].mxu0
    %v3030 = vadd.f32 %v2830, %v3029
    %v3031 = vpop.f32.mrb[0].mxu0
    %3032 = vmatprep.mubr.bf16.mxu0 %v2763
    %3033 = vmatmul.mubr.bf16.gmra.mrb[0].mxu0 %v2731
    %v3034 = vpop.f32.mrb[0].mxu0
    %v3035 = vadd.f32 %v2830, %v3034
    %v3036 = vpop.f32.mrb[0].mxu0
    %v3037 = vpop.f32.mrb[0].mxu0
    %v3038 = vadd.f32 %v2830, %v3037
    %v3039 = vpop.f32.mrb[0].mxu0
    %3040 = vmatprep.mubr.bf16.mxu0 %v2766
    %3041 = vmatmul.mubr.bf16.gmra.mrb[0].mxu0 %v2734
    %v3042 = vpop.f32.mrb[0].mxu0
    %v3043 = vadd.f32 %v2830, %v3042
    %v3044 = vpop.f32.mrb[0].mxu0
    %v3045 = vpop.f32.mrb[0].mxu0
    %v3046 = vadd.f32 %v2830, %v3045
    %v3047 = vpop.f32.mrb[0].mxu0
    %3048 = vmatprep.mubr.bf16.mxu0 %v2769
    %3049 = vmatmul.mubr.bf16.gmra.mrb[0].mxu0 %v2737
    %v3050 = vpop.f32.mrb[0].mxu0
    %v3051 = vadd.f32 %v2830, %v3050
    %v3052 = vpop.f32.mrb[0].mxu0
    %v3053 = vpop.f32.mrb[0].mxu0
    %v3054 = vadd.f32 %v2830, %v3053
    %v3055 = vpop.f32.mrb[0].mxu0
    %3056 = vmatprep.mubr.bf16.mxu0 %v2772
    %3057 = vmatmul.mubr.bf16.gmra.mrb[0].mxu0 %v2740
    %v3058 = vpop.f32.mrb[0].mxu0
    %v3059 = vadd.f32 %v2830, %v3058
    %v3060 = vpop.f32.mrb[0].mxu0
    %v3061 = vpop.f32.mrb[0].mxu0
    %v3062 = vadd.f32 %v2830, %v3061
    %v3063 = vpop.f32.mrb[0].mxu0
    %3064 = vmatprep.mubr.bf16.mxu0 %v2775
    %3065 = vmatmul.mubr.bf16.gmra.mrb[0].mxu0 %v2743
    %v3066 = vpop.f32.mrb[0].mxu0
    %v3067 = vadd.f32 %v2830, %v3066
    %v3068 = vpop.f32.mrb[0].mxu0
    %v3069 = vpop.f32.mrb[0].mxu0
    %v3070 = vadd.f32 %v2830, %v3069
    %v3071 = vpop.f32.mrb[0].mxu0
    %3072 = vdwg.mxu0
    %3073 = vmatprep.subr.bf16.mxu0 0
    %3074 = vmatpush1.bf16.msra.mxu0 %v2944
    %3075 = vmatprep.subr.bf16.mxu0 0
    %3076 = vmatpush1.bf16.msra.mxu0 %v2945
    %3077 = vmatprep.subr.bf16.mxu0 0
    %3078 = vmatpush1.bf16.msra.mxu0 %v2946
    %3079 = vmatprep.subr.bf16.mxu0 0
    %3080 = vmatpush1.bf16.msra.mxu0 %v2947
    %3081 = vmatprep.subr.bf16.mxu0 0
    %3082 = vmatpush1.bf16.msra.mxu0 %v2948
    %3083 = vmatprep.subr.bf16.mxu0 0
    %3084 = vmatpush1.bf16.msra.mxu0 %v2949
    %3085 = vmatprep.subr.bf16.mxu0 0
    %3086 = vmatpush1.bf16.msra.mxu0 %v2950
    %3087 = vmatprep.subr.bf16.mxu0 0
    %3088 = vmatpush1.bf16.msra.mxu0 %v2951
    %3089 = vmatprep.subr.bf16.mxu0 0
    %3090 = vmatpush1.bf16.msra.mxu0 0
    %3091 = vmatprep.subr.bf16.mxu0 0
    %3092 = vmatpush1.bf16.msra.mxu0 0
    %3093 = vmatprep.subr.bf16.mxu0 0
    %3094 = vmatpush1.bf16.msra.mxu0 0
    %3095 = vmatprep.subr.bf16.mxu0 0
    %3096 = vmatpush1.bf16.msra.mxu0 0
    %3097 = vmatprep.subr.bf16.mxu0 0
    %3098 = vmatpush1.bf16.msra.mxu0 0
    %3099 = vmatprep.subr.bf16.mxu0 0
    %3100 = vmatpush1.bf16.msra.mxu0 0
    %3101 = vmatprep.subr.bf16.mxu0 0
    %3102 = vmatpush1.bf16.msra.mxu0 0
    %3103 = vmatprep.subr.bf16.mxu0 0
    %3104 = vmatpush1.bf16.msra.mxu0 0
    %3105 = vmatprep.mubr.bf16.mxu0 0
    %3106 = vmatmul.mubr.bf16.gmra.mrb[0].mxu0 %v2696
    %v3107 = vpop.f32.mrb[0].mxu0
    %v3108 = vadd.f32 %v3011, %v3107
    %v3109 = vpop.f32.mrb[0].mxu0
    %v3110 = vpop.f32.mrb[0].mxu0
    %v3111 = vadd.f32 %v3014, %v3110
    %v3112 = vpop.f32.mrb[0].mxu0
    %3113 = vmatprep.mubr.bf16.mxu0 0
    %3114 = vmatmul.mubr.bf16.gmra.mrb[0].mxu0 %v2697
    %v3115 = vpop.f32.mrb[0].mxu0
    %v3116 = vadd.f32 %v3019, %v3115
    %v3117 = vpop.f32.mrb[0].mxu0
    %v3118 = vpop.f32.mrb[0].mxu0
    %v3119 = vadd.f32 %v3022, %v3118
    %v3120 = vpop.f32.mrb[0].mxu0
    %3121 = vmatprep.mubr.bf16.mxu0 0
    %3122 = vmatmul.mubr.bf16.gmra.mrb[0].mxu0 %v2698
    %v3123 = vpop.f32.mrb[0].mxu0
    %v3124 = vadd.f32 %v3027, %v3123
    %v3125 = vpop.f32.mrb[0].mxu0
    %v3126 = vpop.f32.mrb[0].mxu0
    %v3127 = vadd.f32 %v3030, %v3126
    %v3128 = vpop.f32.mrb[0].mxu0
    %3129 = vmatprep.mubr.bf16.mxu0 0
    %3130 = vmatmul.mubr.bf16.gmra.mrb[0].mxu0 %v2699
    %v3131 = vpop.f32.mrb[0].mxu0
    %v3132 = vadd.f32 %v3035, %v3131
    %v3133 = vpop.f32.mrb[0].mxu0
    %v3134 = vpop.f32.mrb[0].mxu0
    %v3135 = vadd.f32 %v3038, %v3134
    %v3136 = vpop.f32.mrb[0].mxu0
    %3137 = vmatprep.mubr.bf16.mxu0 0
    %3138 = vmatmul.mubr.bf16.gmra.mrb[0].mxu0 %v2700
    %v3139 = vpop.f32.mrb[0].mxu0
    %v3140 = vadd.f32 %v3043, %v3139
    %v3141 = vpop.f32.mrb[0].mxu0
    %v3142 = vpop.f32.mrb[0].mxu0
    %v3143 = vadd.f32 %v3046, %v3142
    %v3144 = vpop.f32.mrb[0].mxu0
    %3145 = vmatprep.mubr.bf16.mxu0 0
    %3146 = vmatmul.mubr.bf16.gmra.mrb[0].mxu0 %v2701
    %v3147 = vpop.f32.mrb[0].mxu0
    %v3148 = vadd.f32 %v3051, %v3147
    %v3149 = vpop.f32.mrb[0].mxu0
    %v3150 = vpop.f32.mrb[0].mxu0
    %v3151 = vadd.f32 %v3054, %v3150
    %v3152 = vpop.f32.mrb[0].mxu0
    %3153 = vmatprep.mubr.bf16.mxu0 0
    %3154 = vmatmul.mubr.bf16.gmra.mrb[0].mxu0 %v2702
    %v3155 = vpop.f32.mrb[0].mxu0
    %v3156 = vadd.f32 %v3059, %v3155
    %v3157 = vpop.f32.mrb[0].mxu0
    %v3158 = vpop.f32.mrb[0].mxu0
    %v3159 = vadd.f32 %v3062, %v3158
    %v3160 = vpop.f32.mrb[0].mxu0
    %3161 = vmatprep.mubr.bf16.mxu0 0
    %3162 = vmatmul.mubr.bf16.gmra.mrb[0].mxu0 %v2703
    %v3163 = vpop.f32.mrb[0].mxu0
    %v3164 = vadd.f32 %v3067, %v3163
    %v3165 = vpop.f32.mrb[0].mxu0
    %v3166 = vpop.f32.mrb[0].mxu0
    %v3167 = vadd.f32 %v3070, %v3166
    %v3168 = vpop.f32.mrb[0].mxu0
    %3169 = vdwg.mxu0
    %vm3170 = vcmp.ge.f32.partialorder %v3108, 0.0
    %vm3171 = vcmp.ge.f32.partialorder %v3111, 0.0
    %vm3172 = vcmp.ge.f32.partialorder %v3116, 0.0
    %vm3173 = vcmp.ge.f32.partialorder %v3119, 0.0
    %vm3174 = vcmp.ge.f32.partialorder %v3124, 0.0
    %vm3175 = vcmp.ge.f32.partialorder %v3127, 0.0
    %vm3176 = vcmp.ge.f32.partialorder %v3132, 0.0
    %vm3177 = vcmp.ge.f32.partialorder %v3135, 0.0
    %vm3178 = vcmp.ge.f32.partialorder %v3140, 0.0
    %vm3179 = vcmp.ge.f32.partialorder %v3143, 0.0
    %vm3180 = vcmp.ge.f32.partialorder %v3148, 0.0
    %vm3181 = vcmp.ge.f32.partialorder %v3151, 0.0
    %vm3182 = vcmp.ge.f32.partialorder %v3156, 0.0
    %vm3183 = vcmp.ge.f32.partialorder %v3159, 0.0
    %vm3184 = vcmp.ge.f32.partialorder %v3164, 0.0
    %vm3185 = vcmp.ge.f32.partialorder %v3167, 0.0
    %v3186 = vmul.f32 %v3108, 0.01
    %v3187 = vmul.f32 %v3111, 0.01
    %v3188 = vmul.f32 %v3116, 0.01
    %v3189 = vmul.f32 %v3119, 0.01
    %v3190 = vmul.f32 %v3124, 0.01
    %v3191 = vmul.f32 %v3127, 0.01
    %v3192 = vmul.f32 %v3132, 0.01
    %v3193 = vmul.f32 %v3135, 0.01
    %v3194 = vmul.f32 %v3140, 0.01
    %v3195 = vmul.f32 %v3143, 0.01
    %v3196 = vmul.f32 %v3148, 0.01
    %v3197 = vmul.f32 %v3151, 0.01
    %v3198 = vmul.f32 %v3156, 0.01
    %v3199 = vmul.f32 %v3159, 0.01
    %v3200 = vmul.f32 %v3164, 0.01
    %v3201 = vmul.f32 %v3167, 0.01
    %v3202 = vsel %vm3170, %v3108, %v3186
    %v3203 = vsel %vm3171, %v3111, %v3187
    %v3204 = vsel %vm3172, %v3116, %v3188
    %v3205 = vsel %vm3173, %v3119, %v3189
    %v3206 = vsel %vm3174, %v3124, %v3190
    %v3207 = vsel %vm3175, %v3127, %v3191
    %v3208 = vsel %vm3176, %v3132, %v3192
    %v3209 = vsel %vm3177, %v3135, %v3193
    %v3210 = vsel %vm3178, %v3140, %v3194
    %v3211 = vsel %vm3179, %v3143, %v3195
    %v3212 = vsel %vm3180, %v3148, %v3196
    %v3213 = vsel %vm3181, %v3151, %v3197
    %v3214 = vsel %vm3182, %v3156, %v3198
    %v3215 = vsel %vm3183, %v3159, %v3199
    %v3216 = vsel %vm3184, %v3164, %v3200
    %v3217 = vsel %vm3185, %v3167, %v3201
    %v3218 = vpack.c.bf16 %v3203, %v3202
    %v3219 = vpack.c.bf16 %v3205, %v3204
    %v3220 = vpack.c.bf16 %v3207, %v3206
    %v3221 = vpack.c.bf16 %v3209, %v3208
    %v3222 = vpack.c.bf16 %v3211, %v3210
    %v3223 = vpack.c.bf16 %v3213, %v3212
    %v3224 = vpack.c.bf16 %v3215, %v3214
    %v3225 = vpack.c.bf16 %v3217, %v3216
    %v3234 = vrot.slane %v3218, 4
    %v3235 = vrot.slane %v3219, 4
    %v3236 = vrot.slane %v3220, 4
    %v3237 = vrot.slane %v3221, 4
    %v3238 = vrot.slane %v3222, 4
    %v3239 = vrot.slane %v3223, 4
    %v3240 = vrot.slane %v3224, 4
    %v3241 = vrot.slane %v3225, 4
    %v3243 = vsel %vm2720, 0, %v3234
    %v3246 = vsel %vm2720, 0, %v3235
    %v3249 = vsel %vm2720, 0, %v3236
    %v3252 = vsel %vm2720, 0, %v3237
    %v3255 = vsel %vm2720, 0, %v3238
    %v3258 = vsel %vm2720, 0, %v3239
    %v3261 = vsel %vm2720, 0, %v3240
    %v3264 = vsel %vm2720, 0, %v3241
    %v3266 = vrot.slane %v3218, 6
    %v3267 = vrot.slane %v3219, 6
    %v3268 = vrot.slane %v3220, 6
    %v3269 = vrot.slane %v3221, 6
    %v3270 = vrot.slane %v3222, 6
    %v3271 = vrot.slane %v3223, 6
    %v3272 = vrot.slane %v3224, 6
    %v3273 = vrot.slane %v3225, 6
    %v3275 = vsel %vm1661, 0, %v3266
    %v3278 = vsel %vm1661, 0, %v3267
    %v3281 = vsel %vm1661, 0, %v3268
    %v3284 = vsel %vm1661, 0, %v3269
    %v3287 = vsel %vm1661, 0, %v3270
    %v3290 = vsel %vm1661, 0, %v3271
    %v3293 = vsel %vm1661, 0, %v3272
    %v3296 = vsel %vm1661, 0, %v3273
    %v3298 = vld [vmem:[#allocation23] sm:$0xf]
    %v3299 = vld [vmem:[#allocation23 + $0x4] sm:$0xf]
    %v3300 = vld [vmem:[#allocation23 + $0x8] sm:$0xf]
    %v3301 = vld [vmem:[#allocation23 + $0xc] sm:$0xf]
    %v3302 = vld [vmem:[#allocation23 + $0x10] sm:$0xf]
    %v3303 = vld [vmem:[#allocation23 + $0x14] sm:$0xf]
    %v3304 = vld [vmem:[#allocation23 + $0x18] sm:$0xf]
    %v3305 = vld [vmem:[#allocation23 + $0x1c] sm:$0xf]
    %v3306 = vld [vmem:[#allocation23 + $0x20] sm:$0xf]
    %v3307 = vld [vmem:[#allocation23 + $0x24] sm:$0xf]
    %v3308 = vld [vmem:[#allocation23 + $0x28] sm:$0xf]
    %v3309 = vld [vmem:[#allocation23 + $0x2c] sm:$0xf]
    %v3310 = vld [vmem:[#allocation23 + $0x30] sm:$0xf]
    %v3311 = vld [vmem:[#allocation23 + $0x34] sm:$0xf]
    %v3312 = vld [vmem:[#allocation23 + $0x38] sm:$0xf]
    %v3313 = vld [vmem:[#allocation23 + $0x3c] sm:$0xf]
    %v3314 = vld [vmem:[#allocation23 + $0x40] sm:$0xf]
    %v3315 = vld [vmem:[#allocation23 + $0x44] sm:$0xf]
    %v3316 = vld [vmem:[#allocation23 + $0x48] sm:$0xf]
    %v3317 = vld [vmem:[#allocation23 + $0x4c] sm:$0xf]
    %v3318 = vld [vmem:[#allocation23 + $0x50] sm:$0xf]
    %v3319 = vld [vmem:[#allocation23 + $0x54] sm:$0xf]
    %v3320 = vld [vmem:[#allocation23 + $0x58] sm:$0xf]
    %v3321 = vld [vmem:[#allocation23 + $0x5c] sm:$0xf]
    %v3322 = vld [vmem:[#allocation23 + $0x60] sm:$0xf]
    %v3323 = vld [vmem:[#allocation23 + $0x64] sm:$0xf]
    %v3324 = vld [vmem:[#allocation23 + $0x68] sm:$0xf]
    %v3325 = vld [vmem:[#allocation23 + $0x6c] sm:$0xf]
    %v3326 = vld [vmem:[#allocation23 + $0x70] sm:$0xf]
    %v3327 = vld [vmem:[#allocation23 + $0x74] sm:$0xf]
    %v3328 = vld [vmem:[#allocation23 + $0x78] sm:$0xf]
    %v3329 = vld [vmem:[#allocation23 + $0x7c] sm:$0xf]
    %v3330 = vld [vmem:[#allocation23 + $0x80] sm:$0xf]
    %v3331 = vld [vmem:[#allocation23 + $0x84] sm:$0xf]
    %v3332 = vld [vmem:[#allocation23 + $0x88] sm:$0xf]
    %v3333 = vld [vmem:[#allocation23 + $0x8c] sm:$0xf]
    %v3334 = vld [vmem:[#allocation23 + $0x90] sm:$0xf]
    %v3335 = vld [vmem:[#allocation23 + $0x94] sm:$0xf]
    %v3336 = vld [vmem:[#allocation23 + $0x98] sm:$0xf]
    %v3337 = vld [vmem:[#allocation23 + $0x9c] sm:$0xf]
    %v3338 = vld [vmem:[#allocation23 + $0xa0] sm:$0xf]
    %v3339 = vld [vmem:[#allocation23 + $0xa4] sm:$0xf]
    %v3340 = vld [vmem:[#allocation23 + $0xa8] sm:$0xf]
    %v3341 = vld [vmem:[#allocation23 + $0xac] sm:$0xf]
    %v3342 = vld [vmem:[#allocation23 + $0xb0] sm:$0xf]
    %v3343 = vld [vmem:[#allocation23 + $0xb4] sm:$0xf]
    %v3344 = vld [vmem:[#allocation23 + $0xb8] sm:$0xf]
    %v3345 = vld [vmem:[#allocation23 + $0xbc] sm:$0xf]
    %v3346 = vld [vmem:[#allocation25] sm:$0x1]
    %v3348 = vlaneseq
    %v3349 = vshrl.u32 %v3348, 7
    %v3350 = vsub.s32 0, %v3349
    %v3351 = vrot.slane %v3346, %v3350
    %v3401 = vunpack.c.l.b16 %v3298
    %v3402 = vunpack.c.l.b16 %v3299
    %v3403 = vunpack.c.l.b16 %v3300
    %v3404 = vunpack.c.l.b16 %v3301
    %v3405 = vunpack.c.l.b16 %v3302
    %v3406 = vunpack.c.l.b16 %v3303
    %v3407 = vunpack.c.l.b16 %v3304
    %v3408 = vunpack.c.l.b16 %v3305
    %v3409 = vunpack.c.l.b16 %v3306
    %v3410 = vunpack.c.l.b16 %v3307
    %v3411 = vunpack.c.l.b16 %v3308
    %v3412 = vunpack.c.l.b16 %v3309
    %v3413 = vunpack.c.l.b16 %v3310
    %v3414 = vunpack.c.l.b16 %v3311
    %v3415 = vunpack.c.l.b16 %v3312
    %v3416 = vunpack.c.l.b16 %v3313
    %v3417 = vunpack.c.l.b16 %v3314
    %v3418 = vunpack.c.l.b16 %v3315
    %v3419 = vunpack.c.l.b16 %v3316
    %v3420 = vunpack.c.l.b16 %v3317
    %v3421 = vunpack.c.l.b16 %v3318
    %v3422 = vunpack.c.l.b16 %v3319
    %v3423 = vunpack.c.l.b16 %v3320
    %v3424 = vunpack.c.l.b16 %v3321
    %v3425 = vunpack.c.l.b16 %v3322
    %v3426 = vunpack.c.l.b16 %v3323
    %v3427 = vunpack.c.l.b16 %v3324
    %v3428 = vunpack.c.l.b16 %v3325
    %v3429 = vunpack.c.l.b16 %v3326
    %v3430 = vunpack.c.l.b16 %v3327
    %v3431 = vunpack.c.l.b16 %v3328
    %v3432 = vunpack.c.l.b16 %v3329
    %v3433 = vunpack.c.l.b16 %v3330
    %v3434 = vunpack.c.l.b16 %v3331
    %v3435 = vunpack.c.l.b16 %v3332
    %v3436 = vunpack.c.l.b16 %v3333
    %v3437 = vunpack.c.l.b16 %v3334
    %v3438 = vunpack.c.l.b16 %v3335
    %v3439 = vunpack.c.l.b16 %v3336
    %v3440 = vunpack.c.l.b16 %v3337
    %v3441 = vunpack.c.l.b16 %v3338
    %v3442 = vunpack.c.l.b16 %v3339
    %v3443 = vunpack.c.l.b16 %v3340
    %v3444 = vunpack.c.l.b16 %v3341
    %v3445 = vunpack.c.l.b16 %v3342
    %v3446 = vunpack.c.l.b16 %v3343
    %v3447 = vunpack.c.l.b16 %v3344
    %v3448 = vunpack.c.l.b16 %v3345
    %v3449 = vpack.c.b16 %v3402, %v3401
    %v3450 = vpack.c.b16 %v3404, %v3403
    %v3451 = vpack.c.b16 %v3406, %v3405
    %v3452 = vpack.c.b16 %v3408, %v3407
    %v3453 = vpack.c.b16 %v3410, %v3409
    %v3454 = vpack.c.b16 %v3412, %v3411
    %v3455 = vpack.c.b16 %v3414, %v3413
    %v3456 = vpack.c.b16 %v3416, %v3415
    %v3457 = vpack.c.b16 %v3418, %v3417
    %v3458 = vpack.c.b16 %v3420, %v3419
    %v3459 = vpack.c.b16 %v3422, %v3421
    %v3460 = vpack.c.b16 %v3424, %v3423
    %v3461 = vpack.c.b16 %v3426, %v3425
    %v3462 = vpack.c.b16 %v3428, %v3427
    %v3463 = vpack.c.b16 %v3430, %v3429
    %v3464 = vpack.c.b16 %v3432, %v3431
    %v3465 = vpack.c.b16 %v3434, %v3433
    %v3466 = vpack.c.b16 %v3436, %v3435
    %v3467 = vpack.c.b16 %v3438, %v3437
    %v3468 = vpack.c.b16 %v3440, %v3439
    %v3469 = vpack.c.b16 %v3442, %v3441
    %v3470 = vpack.c.b16 %v3444, %v3443
    %v3471 = vpack.c.b16 %v3446, %v3445
    %v3472 = vpack.c.b16 %v3448, %v3447
    %3497 = vmatprep.subr.bf16.mxu0 0
    %3498 = vmatpush1.bf16.msra.mxu0 %v3449
    %3499 = vmatprep.subr.bf16.mxu0 0
    %3500 = vmatpush1.bf16.msra.mxu0 %v3450
    %3501 = vmatprep.subr.bf16.mxu0 0
    %3502 = vmatpush1.bf16.msra.mxu0 %v3451
    %3503 = vmatprep.subr.bf16.mxu0 0
    %3504 = vmatpush1.bf16.msra.mxu0 %v3452
    %3505 = vmatprep.subr.bf16.mxu0 0
    %3506 = vmatpush1.bf16.msra.mxu0 %v3453
    %3507 = vmatprep.subr.bf16.mxu0 0
    %3508 = vmatpush1.bf16.msra.mxu0 %v3454
    %3509 = vmatprep.subr.bf16.mxu0 0
    %3510 = vmatpush1.bf16.msra.mxu0 %v3455
    %3511 = vmatprep.subr.bf16.mxu0 0
    %3512 = vmatpush1.bf16.msra.mxu0 %v3456
    %3513 = vmatprep.subr.bf16.mxu0 0
    %3514 = vmatpush1.bf16.msra.mxu0 %v3457
    %3515 = vmatprep.subr.bf16.mxu0 0
    %3516 = vmatpush1.bf16.msra.mxu0 %v3458
    %3517 = vmatprep.subr.bf16.mxu0 0
    %3518 = vmatpush1.bf16.msra.mxu0 %v3459
    %3519 = vmatprep.subr.bf16.mxu0 0
    %3520 = vmatpush1.bf16.msra.mxu0 %v3460
    %3521 = vmatprep.subr.bf16.mxu0 0
    %3522 = vmatpush1.bf16.msra.mxu0 %v3461
    %3523 = vmatprep.subr.bf16.mxu0 0
    %3524 = vmatpush1.bf16.msra.mxu0 %v3462
    %3525 = vmatprep.subr.bf16.mxu0 0
    %3526 = vmatpush1.bf16.msra.mxu0 %v3463
    %3527 = vmatprep.subr.bf16.mxu0 0
    %3528 = vmatpush1.bf16.msra.mxu0 %v3464
    %3529 = vmatprep.mubr.bf16.mxu0 %v3275
    %3530 = vmatmul.mubr.bf16.gmra.mrb[0].mxu0 %v3243
    %v3531 = vpop.f32.mrb[0].mxu0
    %v3532 = vadd.f32 %v3351, %v3531
    %v3533 = vpop.f32.mrb[0].mxu0
    %v3534 = vpop.f32.mrb[0].mxu0
    %v3535 = vadd.f32 %v3351, %v3534
    %v3536 = vpop.f32.mrb[0].mxu0
    %3537 = vmatprep.mubr.bf16.mxu0 %v3278
    %3538 = vmatmul.mubr.bf16.gmra.mrb[0].mxu0 %v3246
    %v3539 = vpop.f32.mrb[0].mxu0
    %v3540 = vadd.f32 %v3351, %v3539
    %v3541 = vpop.f32.mrb[0].mxu0
    %v3542 = vpop.f32.mrb[0].mxu0
    %v3543 = vadd.f32 %v3351, %v3542
    %v3544 = vpop.f32.mrb[0].mxu0
    %3545 = vmatprep.mubr.bf16.mxu0 %v3281
    %3546 = vmatmul.mubr.bf16.gmra.mrb[0].mxu0 %v3249
    %v3547 = vpop.f32.mrb[0].mxu0
    %v3548 = vadd.f32 %v3351, %v3547
    %v3549 = vpop.f32.mrb[0].mxu0
    %v3550 = vpop.f32.mrb[0].mxu0
    %v3551 = vadd.f32 %v3351, %v3550
    %v3552 = vpop.f32.mrb[0].mxu0
    %3553 = vmatprep.mubr.bf16.mxu0 %v3284
    %3554 = vmatmul.mubr.bf16.gmra.mrb[0].mxu0 %v3252
    %v3555 = vpop.f32.mrb[0].mxu0
    %v3556 = vadd.f32 %v3351, %v3555
    %v3557 = vpop.f32.mrb[0].mxu0
    %v3558 = vpop.f32.mrb[0].mxu0
    %v3559 = vadd.f32 %v3351, %v3558
    %v3560 = vpop.f32.mrb[0].mxu0
    %3561 = vmatprep.mubr.bf16.mxu0 %v3287
    %3562 = vmatmul.mubr.bf16.gmra.mrb[0].mxu0 %v3255
    %v3563 = vpop.f32.mrb[0].mxu0
    %v3564 = vadd.f32 %v3351, %v3563
    %v3565 = vpop.f32.mrb[0].mxu0
    %v3566 = vpop.f32.mrb[0].mxu0
    %v3567 = vadd.f32 %v3351, %v3566
    %v3568 = vpop.f32.mrb[0].mxu0
    %3569 = vmatprep.mubr.bf16.mxu0 %v3290
    %3570 = vmatmul.mubr.bf16.gmra.mrb[0].mxu0 %v3258
    %v3571 = vpop.f32.mrb[0].mxu0
    %v3572 = vadd.f32 %v3351, %v3571
    %v3573 = vpop.f32.mrb[0].mxu0
    %v3574 = vpop.f32.mrb[0].mxu0
    %v3575 = vadd.f32 %v3351, %v3574
    %v3576 = vpop.f32.mrb[0].mxu0
    %3577 = vmatprep.mubr.bf16.mxu0 %v3293
    %3578 = vmatmul.mubr.bf16.gmra.mrb[0].mxu0 %v3261
    %v3579 = vpop.f32.mrb[0].mxu0
    %v3580 = vadd.f32 %v3351, %v3579
    %v3581 = vpop.f32.mrb[0].mxu0
    %v3582 = vpop.f32.mrb[0].mxu0
    %v3583 = vadd.f32 %v3351, %v3582
    %v3584 = vpop.f32.mrb[0].mxu0
    %3585 = vmatprep.mubr.bf16.mxu0 %v3296
    %3586 = vmatmul.mubr.bf16.gmra.mrb[0].mxu0 %v3264
    %v3587 = vpop.f32.mrb[0].mxu0
    %v3588 = vadd.f32 %v3351, %v3587
    %v3589 = vpop.f32.mrb[0].mxu0
    %v3590 = vpop.f32.mrb[0].mxu0
    %v3591 = vadd.f32 %v3351, %v3590
    %v3592 = vpop.f32.mrb[0].mxu0
    %3593 = vdwg.mxu0
    %3594 = vmatprep.subr.bf16.mxu0 0
    %3595 = vmatpush1.bf16.msra.mxu0 %v3465
    %3596 = vmatprep.subr.bf16.mxu0 0
    %3597 = vmatpush1.bf16.msra.mxu0 %v3466
    %3598 = vmatprep.subr.bf16.mxu0 0
    %3599 = vmatpush1.bf16.msra.mxu0 %v3467
    %3600 = vmatprep.subr.bf16.mxu0 0
    %3601 = vmatpush1.bf16.msra.mxu0 %v3468
    %3602 = vmatprep.subr.bf16.mxu0 0
    %3603 = vmatpush1.bf16.msra.mxu0 %v3469
    %3604 = vmatprep.subr.bf16.mxu0 0
    %3605 = vmatpush1.bf16.msra.mxu0 %v3470
    %3606 = vmatprep.subr.bf16.mxu0 0
    %3607 = vmatpush1.bf16.msra.mxu0 %v3471
    %3608 = vmatprep.subr.bf16.mxu0 0
    %3609 = vmatpush1.bf16.msra.mxu0 %v3472
    %3610 = vmatprep.subr.bf16.mxu0 0
    %3611 = vmatpush1.bf16.msra.mxu0 0
    %3612 = vmatprep.subr.bf16.mxu0 0
    %3613 = vmatpush1.bf16.msra.mxu0 0
    %3614 = vmatprep.subr.bf16.mxu0 0
    %3615 = vmatpush1.bf16.msra.mxu0 0
    %3616 = vmatprep.subr.bf16.mxu0 0
    %3617 = vmatpush1.bf16.msra.mxu0 0
    %3618 = vmatprep.subr.bf16.mxu0 0
    %3619 = vmatpush1.bf16.msra.mxu0 0
    %3620 = vmatprep.subr.bf16.mxu0 0
    %3621 = vmatpush1.bf16.msra.mxu0 0
    %3622 = vmatprep.subr.bf16.mxu0 0
    %3623 = vmatpush1.bf16.msra.mxu0 0
    %3624 = vmatprep.subr.bf16.mxu0 0
    %3625 = vmatpush1.bf16.msra.mxu0 0
    %3626 = vmatprep.mubr.bf16.mxu0 0
    %3627 = vmatmul.mubr.bf16.gmra.mrb[0].mxu0 %v3218
    %v3628 = vpop.f32.mrb[0].mxu0
    %v3629 = vadd.f32 %v3532, %v3628
    %v3630 = vpop.f32.mrb[0].mxu0
    %v3631 = vpop.f32.mrb[0].mxu0
    %v3632 = vadd.f32 %v3535, %v3631
    %v3633 = vpop.f32.mrb[0].mxu0
    %3634 = vmatprep.mubr.bf16.mxu0 0
    %3635 = vmatmul.mubr.bf16.gmra.mrb[0].mxu0 %v3219
    %v3636 = vpop.f32.mrb[0].mxu0
    %v3637 = vadd.f32 %v3540, %v3636
    %v3638 = vpop.f32.mrb[0].mxu0
    %v3639 = vpop.f32.mrb[0].mxu0
    %v3640 = vadd.f32 %v3543, %v3639
    %v3641 = vpop.f32.mrb[0].mxu0
    %3642 = vmatprep.mubr.bf16.mxu0 0
    %3643 = vmatmul.mubr.bf16.gmra.mrb[0].mxu0 %v3220
    %v3644 = vpop.f32.mrb[0].mxu0
    %v3645 = vadd.f32 %v3548, %v3644
    %v3646 = vpop.f32.mrb[0].mxu0
    %v3647 = vpop.f32.mrb[0].mxu0
    %v3648 = vadd.f32 %v3551, %v3647
    %v3649 = vpop.f32.mrb[0].mxu0
    %3650 = vmatprep.mubr.bf16.mxu0 0
    %3651 = vmatmul.mubr.bf16.gmra.mrb[0].mxu0 %v3221
    %v3652 = vpop.f32.mrb[0].mxu0
    %v3653 = vadd.f32 %v3556, %v3652
    %v3654 = vpop.f32.mrb[0].mxu0
    %v3655 = vpop.f32.mrb[0].mxu0
    %v3656 = vadd.f32 %v3559, %v3655
    %v3657 = vpop.f32.mrb[0].mxu0
    %3658 = vmatprep.mubr.bf16.mxu0 0
    %3659 = vmatmul.mubr.bf16.gmra.mrb[0].mxu0 %v3222
    %v3660 = vpop.f32.mrb[0].mxu0
    %v3661 = vadd.f32 %v3564, %v3660
    %v3662 = vpop.f32.mrb[0].mxu0
    %v3663 = vpop.f32.mrb[0].mxu0
    %v3664 = vadd.f32 %v3567, %v3663
    %v3665 = vpop.f32.mrb[0].mxu0
    %3666 = vmatprep.mubr.bf16.mxu0 0
    %3667 = vmatmul.mubr.bf16.gmra.mrb[0].mxu0 %v3223
    %v3668 = vpop.f32.mrb[0].mxu0
    %v3669 = vadd.f32 %v3572, %v3668
    %v3670 = vpop.f32.mrb[0].mxu0
    %v3671 = vpop.f32.mrb[0].mxu0
    %v3672 = vadd.f32 %v3575, %v3671
    %v3673 = vpop.f32.mrb[0].mxu0
    %3674 = vmatprep.mubr.bf16.mxu0 0
    %3675 = vmatmul.mubr.bf16.gmra.mrb[0].mxu0 %v3224
    %v3676 = vpop.f32.mrb[0].mxu0
    %v3677 = vadd.f32 %v3580, %v3676
    %v3678 = vpop.f32.mrb[0].mxu0
    %v3679 = vpop.f32.mrb[0].mxu0
    %v3680 = vadd.f32 %v3583, %v3679
    %v3681 = vpop.f32.mrb[0].mxu0
    %3682 = vmatprep.mubr.bf16.mxu0 0
    %3683 = vmatmul.mubr.bf16.gmra.mrb[0].mxu0 %v3225
    %v3684 = vpop.f32.mrb[0].mxu0
    %v3685 = vadd.f32 %v3588, %v3684
    %v3686 = vpop.f32.mrb[0].mxu0
    %v3687 = vpop.f32.mrb[0].mxu0
    %v3688 = vadd.f32 %v3591, %v3687
    %v3689 = vpop.f32.mrb[0].mxu0
    %3690 = vdwg.mxu0
    %vm3691 = vcmp.ge.f32.partialorder %v3629, 0.0
    %vm3692 = vcmp.ge.f32.partialorder %v3632, 0.0
    %vm3693 = vcmp.ge.f32.partialorder %v3637, 0.0
    %vm3694 = vcmp.ge.f32.partialorder %v3640, 0.0
    %vm3695 = vcmp.ge.f32.partialorder %v3645, 0.0
    %vm3696 = vcmp.ge.f32.partialorder %v3648, 0.0
    %vm3697 = vcmp.ge.f32.partialorder %v3653, 0.0
    %vm3698 = vcmp.ge.f32.partialorder %v3656, 0.0
    %vm3699 = vcmp.ge.f32.partialorder %v3661, 0.0
    %vm3700 = vcmp.ge.f32.partialorder %v3664, 0.0
    %vm3701 = vcmp.ge.f32.partialorder %v3669, 0.0
    %vm3702 = vcmp.ge.f32.partialorder %v3672, 0.0
    %vm3703 = vcmp.ge.f32.partialorder %v3677, 0.0
    %vm3704 = vcmp.ge.f32.partialorder %v3680, 0.0
    %vm3705 = vcmp.ge.f32.partialorder %v3685, 0.0
    %vm3706 = vcmp.ge.f32.partialorder %v3688, 0.0
    %v3707 = vmul.f32 %v3629, 0.01
    %v3708 = vmul.f32 %v3632, 0.01
    %v3709 = vmul.f32 %v3637, 0.01
    %v3710 = vmul.f32 %v3640, 0.01
    %v3711 = vmul.f32 %v3645, 0.01
    %v3712 = vmul.f32 %v3648, 0.01
    %v3713 = vmul.f32 %v3653, 0.01
    %v3714 = vmul.f32 %v3656, 0.01
    %v3715 = vmul.f32 %v3661, 0.01
    %v3716 = vmul.f32 %v3664, 0.01
    %v3717 = vmul.f32 %v3669, 0.01
    %v3718 = vmul.f32 %v3672, 0.01
    %v3719 = vmul.f32 %v3677, 0.01
    %v3720 = vmul.f32 %v3680, 0.01
    %v3721 = vmul.f32 %v3685, 0.01
    %v3722 = vmul.f32 %v3688, 0.01
    %v3723 = vsel %vm3691, %v3629, %v3707
    %v3724 = vsel %vm3692, %v3632, %v3708
    %v3725 = vsel %vm3693, %v3637, %v3709
    %v3726 = vsel %vm3694, %v3640, %v3710
    %v3727 = vsel %vm3695, %v3645, %v3711
    %v3728 = vsel %vm3696, %v3648, %v3712
    %v3729 = vsel %vm3697, %v3653, %v3713
    %v3730 = vsel %vm3698, %v3656, %v3714
    %v3731 = vsel %vm3699, %v3661, %v3715
    %v3732 = vsel %vm3700, %v3664, %v3716
    %v3733 = vsel %vm3701, %v3669, %v3717
    %v3734 = vsel %vm3702, %v3672, %v3718
    %v3735 = vsel %vm3703, %v3677, %v3719
    %v3736 = vsel %vm3704, %v3680, %v3720
    %v3737 = vsel %vm3705, %v3685, %v3721
    %v3738 = vsel %vm3706, %v3688, %v3722
    %v3739 = vld [vmem:[#allocation26] sm:$0xf]
    %v3740 = vld [vmem:[#allocation26 + $0x4] sm:$0xf]
    %v3741 = vld [vmem:[#allocation26 + $0x8] sm:$0xf]
    %v3742 = vld [vmem:[#allocation26 + $0xc] sm:$0xf]
    %v3743 = vld [vmem:[#allocation26 + $0x10] sm:$0xf]
    %v3744 = vld [vmem:[#allocation26 + $0x14] sm:$0xf]
    %v3745 = vld [vmem:[#allocation26 + $0x18] sm:$0xf]
    %v3746 = vld [vmem:[#allocation26 + $0x1c] sm:$0xf]
    %v3747 = vld [vmem:[#allocation26 + $0x20] sm:$0xf]
    %v3748 = vld [vmem:[#allocation26 + $0x24] sm:$0xf]
    %v3749 = vld [vmem:[#allocation26 + $0x28] sm:$0xf]
    %v3750 = vld [vmem:[#allocation26 + $0x2c] sm:$0xf]
    %v3751 = vld [vmem:[#allocation26 + $0x30] sm:$0xf]
    %v3752 = vld [vmem:[#allocation26 + $0x34] sm:$0xf]
    %v3753 = vld [vmem:[#allocation26 + $0x38] sm:$0xf]
    %v3754 = vld [vmem:[#allocation26 + $0x3c] sm:$0xf]
    %v3755 = vld [vmem:[#allocation28] sm:$0x1]
    %v3757 = vlaneseq
    %v3758 = vshrl.u32 %v3757, 7
    %v3759 = vsub.s32 0, %v3758
    %v3760 = vrot.slane %v3755, %v3759
    %v3778 = vunpack.c.l.b16 %v3739
    %v3779 = vunpack.c.l.b16 %v3740
    %v3780 = vunpack.c.l.b16 %v3741
    %v3781 = vunpack.c.l.b16 %v3742
    %v3782 = vunpack.c.l.b16 %v3743
    %v3783 = vunpack.c.l.b16 %v3744
    %v3784 = vunpack.c.l.b16 %v3745
    %v3785 = vunpack.c.l.b16 %v3746
    %v3786 = vunpack.c.l.b16 %v3747
    %v3787 = vunpack.c.l.b16 %v3748
    %v3788 = vunpack.c.l.b16 %v3749
    %v3789 = vunpack.c.l.b16 %v3750
    %v3790 = vunpack.c.l.b16 %v3751
    %v3791 = vunpack.c.l.b16 %v3752
    %v3792 = vunpack.c.l.b16 %v3753
    %v3793 = vunpack.c.l.b16 %v3754
    %v3794 = vpack.c.b16 %v3779, %v3778
    %v3795 = vpack.c.b16 %v3781, %v3780
    %v3796 = vpack.c.b16 %v3783, %v3782
    %v3797 = vpack.c.b16 %v3785, %v3784
    %v3798 = vpack.c.b16 %v3787, %v3786
    %v3799 = vpack.c.b16 %v3789, %v3788
    %v3800 = vpack.c.b16 %v3791, %v3790
    %v3801 = vpack.c.b16 %v3793, %v3792
    %3810 = vmatprep.subr.bf16.mxu0 0
    %3811 = vmatpush1.bf16.msra.mxu0 %v3794
    %3812 = vmatprep.subr.bf16.mxu0 0
    %3813 = vmatpush1.bf16.msra.mxu0 %v3795
    %3814 = vmatprep.subr.bf16.mxu0 0
    %3815 = vmatpush1.bf16.msra.mxu0 %v3796
    %3816 = vmatprep.subr.bf16.mxu0 0
    %3817 = vmatpush1.bf16.msra.mxu0 %v3797
    %3818 = vmatprep.subr.bf16.mxu0 0
    %3819 = vmatpush1.bf16.msra.mxu0 %v3798
    %3820 = vmatprep.subr.bf16.mxu0 0
    %3821 = vmatpush1.bf16.msra.mxu0 %v3799
    %3822 = vmatprep.subr.bf16.mxu0 0
    %3823 = vmatpush1.bf16.msra.mxu0 %v3800
    %3824 = vmatprep.subr.bf16.mxu0 0
    %3825 = vmatpush1.bf16.msra.mxu0 %v3801
    %3826 = vmatprep.subr.bf16.mxu0 0
    %3827 = vmatpush1.bf16.msra.mxu0 0
    %3828 = vmatprep.subr.bf16.mxu0 0
    %3829 = vmatpush1.bf16.msra.mxu0 0
    %3830 = vmatprep.subr.bf16.mxu0 0
    %3831 = vmatpush1.bf16.msra.mxu0 0
    %3832 = vmatprep.subr.bf16.mxu0 0
    %3833 = vmatpush1.bf16.msra.mxu0 0
    %3834 = vmatprep.subr.bf16.mxu0 0
    %3835 = vmatpush1.bf16.msra.mxu0 0
    %3836 = vmatprep.subr.bf16.mxu0 0
    %3837 = vmatpush1.bf16.msra.mxu0 0
    %3838 = vmatprep.subr.bf16.mxu0 0
    %3839 = vmatpush1.bf16.msra.mxu0 0
    %3840 = vmatprep.subr.bf16.mxu0 0
    %3841 = vmatpush1.bf16.msra.mxu0 0
    %3842 = vmatprep.mubr.bf16.mxu0 0
    %3843 = vmatmul.mubr.bf16.gmra.mrb[0].mxu0 %v2696
    %v3844 = vpop.f32.mrb[0].mxu0
    %v3845 = vadd.f32 %v3760, %v3844
    %v3846 = vpop.f32.mrb[0].mxu0
    %v3847 = vpop.f32.mrb[0].mxu0
    %v3848 = vadd.f32 %v3760, %v3847
    %v3849 = vpop.f32.mrb[0].mxu0
    %3850 = vmatprep.mubr.bf16.mxu0 0
    %3851 = vmatmul.mubr.bf16.gmra.mrb[0].mxu0 %v2697
    %v3852 = vpop.f32.mrb[0].mxu0
    %v3853 = vadd.f32 %v3760, %v3852
    %v3854 = vpop.f32.mrb[0].mxu0
    %v3855 = vpop.f32.mrb[0].mxu0
    %v3856 = vadd.f32 %v3760, %v3855
    %v3857 = vpop.f32.mrb[0].mxu0
    %3858 = vmatprep.mubr.bf16.mxu0 0
    %3859 = vmatmul.mubr.bf16.gmra.mrb[0].mxu0 %v2698
    %v3860 = vpop.f32.mrb[0].mxu0
    %v3861 = vadd.f32 %v3760, %v3860
    %v3862 = vpop.f32.mrb[0].mxu0
    %v3863 = vpop.f32.mrb[0].mxu0
    %v3864 = vadd.f32 %v3760, %v3863
    %v3865 = vpop.f32.mrb[0].mxu0
    %3866 = vmatprep.mubr.bf16.mxu0 0
    %3867 = vmatmul.mubr.bf16.gmra.mrb[0].mxu0 %v2699
    %v3868 = vpop.f32.mrb[0].mxu0
    %v3869 = vadd.f32 %v3760, %v3868
    %v3870 = vpop.f32.mrb[0].mxu0
    %v3871 = vpop.f32.mrb[0].mxu0
    %v3872 = vadd.f32 %v3760, %v3871
    %v3873 = vpop.f32.mrb[0].mxu0
    %3874 = vmatprep.mubr.bf16.mxu0 0
    %3875 = vmatmul.mubr.bf16.gmra.mrb[0].mxu0 %v2700
    %v3876 = vpop.f32.mrb[0].mxu0
    %v3877 = vadd.f32 %v3760, %v3876
    %v3878 = vpop.f32.mrb[0].mxu0
    %v3879 = vpop.f32.mrb[0].mxu0
    %v3880 = vadd.f32 %v3760, %v3879
    %v3881 = vpop.f32.mrb[0].mxu0
    %3882 = vmatprep.mubr.bf16.mxu0 0
    %3883 = vmatmul.mubr.bf16.gmra.mrb[0].mxu0 %v2701
    %v3884 = vpop.f32.mrb[0].mxu0
    %v3885 = vadd.f32 %v3760, %v3884
    %v3886 = vpop.f32.mrb[0].mxu0
    %v3887 = vpop.f32.mrb[0].mxu0
    %v3888 = vadd.f32 %v3760, %v3887
    %v3889 = vpop.f32.mrb[0].mxu0
    %3890 = vmatprep.mubr.bf16.mxu0 0
    %3891 = vmatmul.mubr.bf16.gmra.mrb[0].mxu0 %v2702
    %v3892 = vpop.f32.mrb[0].mxu0
    %v3893 = vadd.f32 %v3760, %v3892
    %v3894 = vpop.f32.mrb[0].mxu0
    %v3895 = vpop.f32.mrb[0].mxu0
    %v3896 = vadd.f32 %v3760, %v3895
    %v3897 = vpop.f32.mrb[0].mxu0
    %3898 = vmatprep.mubr.bf16.mxu0 0
    %3899 = vmatmul.mubr.bf16.gmra.mrb[0].mxu0 %v2703
    %v3900 = vpop.f32.mrb[0].mxu0
    %v3901 = vadd.f32 %v3760, %v3900
    %v3902 = vpop.f32.mrb[0].mxu0
    %v3903 = vpop.f32.mrb[0].mxu0
    %v3904 = vadd.f32 %v3760, %v3903
    %v3905 = vpop.f32.mrb[0].mxu0
    %3906 = vdwg.mxu0
    %v3907 = vadd.f32 %v3723, %v3845
    %v3908 = vadd.f32 %v3724, %v3848
    %v3909 = vadd.f32 %v3725, %v3853
    %v3910 = vadd.f32 %v3726, %v3856
    %v3911 = vadd.f32 %v3727, %v3861
    %v3912 = vadd.f32 %v3728, %v3864
    %v3913 = vadd.f32 %v3729, %v3869
    %v3914 = vadd.f32 %v3730, %v3872
    %v3915 = vadd.f32 %v3731, %v3877
    %v3916 = vadd.f32 %v3732, %v3880
    %v3917 = vadd.f32 %v3733, %v3885
    %v3918 = vadd.f32 %v3734, %v3888
    %v3919 = vadd.f32 %v3735, %v3893
    %v3920 = vadd.f32 %v3736, %v3896
    %v3921 = vadd.f32 %v3737, %v3901
    %v3922 = vadd.f32 %v3738, %v3904
    %v3923 = vmax.f32 %v3907, %v3908
    %v3924 = vrot.slane %v3923, 4
    %v3925 = vmax.f32 %v3923, %v3924
    %v3926 = vrot.slane %v3925, 2
    %v3927 = vmax.f32 %v3925, %v3926
    %v3928 = vrot.slane %v3927, 1
    %v3929 = vmax.f32 %v3927, %v3928
    %v3930 = vmax.f32 %v3909, %v3910
    %v3931 = vrot.slane %v3930, 4
    %v3932 = vmax.f32 %v3930, %v3931
    %v3933 = vrot.slane %v3932, 2
    %v3934 = vmax.f32 %v3932, %v3933
    %v3935 = vrot.slane %v3934, 1
    %v3936 = vmax.f32 %v3934, %v3935
    %v3937 = vmax.f32 %v3911, %v3912
    %v3938 = vrot.slane %v3937, 4
    %v3939 = vmax.f32 %v3937, %v3938
    %v3940 = vrot.slane %v3939, 2
    %v3941 = vmax.f32 %v3939, %v3940
    %v3942 = vrot.slane %v3941, 1
    %v3943 = vmax.f32 %v3941, %v3942
    %v3944 = vmax.f32 %v3913, %v3914
    %v3945 = vrot.slane %v3944, 4
    %v3946 = vmax.f32 %v3944, %v3945
    %v3947 = vrot.slane %v3946, 2
    %v3948 = vmax.f32 %v3946, %v3947
    %v3949 = vrot.slane %v3948, 1
    %v3950 = vmax.f32 %v3948, %v3949
    %v3951 = vmax.f32 %v3915, %v3916
    %v3952 = vrot.slane %v3951, 4
    %v3953 = vmax.f32 %v3951, %v3952
    %v3954 = vrot.slane %v3953, 2
    %v3955 = vmax.f32 %v3953, %v3954
    %v3956 = vrot.slane %v3955, 1
    %v3957 = vmax.f32 %v3955, %v3956
    %v3958 = vmax.f32 %v3917, %v3918
    %v3959 = vrot.slane %v3958, 4
    %v3960 = vmax.f32 %v3958, %v3959
    %v3961 = vrot.slane %v3960, 2
    %v3962 = vmax.f32 %v3960, %v3961
    %v3963 = vrot.slane %v3962, 1
    %v3964 = vmax.f32 %v3962, %v3963
    %v3965 = vmax.f32 %v3919, %v3920
    %v3966 = vrot.slane %v3965, 4
    %v3967 = vmax.f32 %v3965, %v3966
    %v3968 = vrot.slane %v3967, 2
    %v3969 = vmax.f32 %v3967, %v3968
    %v3970 = vrot.slane %v3969, 1
    %v3971 = vmax.f32 %v3969, %v3970
    %v3972 = vmax.f32 %v3921, %v3922
    %v3973 = vrot.slane %v3972, 4
    %v3974 = vmax.f32 %v3972, %v3973
    %v3975 = vrot.slane %v3974, 2
    %v3976 = vmax.f32 %v3974, %v3975
    %v3977 = vrot.slane %v3976, 1
    %v3978 = vmax.f32 %v3976, %v3977
    %v3979 = vpack.c.bf16 %v3929, %v3929
    %v3980 = vpack.c.bf16 %v3936, %v3936
    %v3981 = vpack.c.bf16 %v3943, %v3943
    %v3982 = vpack.c.bf16 %v3950, %v3950
    %v3983 = vpack.c.bf16 %v3957, %v3957
    %v3984 = vpack.c.bf16 %v3964, %v3964
    %v3985 = vpack.c.bf16 %v3971, %v3971
    %v3986 = vpack.c.bf16 %v3978, %v3978
    %v3987 = vld [vmem:[%s17] sm:$0xf]
    %v3988 = vld [vmem:[%s17 + $0x4] sm:$0xf]
    %v3989 = vld [vmem:[%s17 + $0x8] sm:$0xf]
    %v3990 = vld [vmem:[%s17 + $0xc] sm:$0xf]
    %v3991 = vld [vmem:[%s17 + $0x10] sm:$0xf]
    %v3992 = vld [vmem:[%s17 + $0x14] sm:$0xf]
    %v3993 = vld [vmem:[%s17 + $0x18] sm:$0xf]
    %v3994 = vld [vmem:[%s17 + $0x1c] sm:$0xf]
    %v3995 = vld [vmem:[%s17 + $0x20] sm:$0xf]
    %v3996 = vld [vmem:[%s17 + $0x24] sm:$0xf]
    %v3997 = vld [vmem:[%s17 + $0x28] sm:$0xf]
    %v3998 = vld [vmem:[%s17 + $0x2c] sm:$0xf]
    %v3999 = vld [vmem:[%s17 + $0x30] sm:$0xf]
    %v4000 = vld [vmem:[%s17 + $0x34] sm:$0xf]
    %v4001 = vld [vmem:[%s17 + $0x38] sm:$0xf]
    %v4002 = vld [vmem:[%s17 + $0x3c] sm:$0xf]
    %v4003 = vld [vmem:[%s18] sm:$0x1]
    %v4005 = vlaneseq
    %v4006 = vshrl.u32 %v4005, 7
    %v4007 = vsub.s32 0, %v4006
    %v4008 = vrot.slane %v4003, %v4007
    %v4018 = vunpack.c.l.b16 %v3979
    %v4019 = vunpack.c.l.b16 %v3980
    %v4020 = vunpack.c.l.b16 %v3981
    %v4021 = vunpack.c.l.b16 %v3982
    %v4022 = vunpack.c.l.b16 %v3983
    %v4023 = vunpack.c.l.b16 %v3984
    %v4024 = vunpack.c.l.b16 %v3985
    %v4025 = vunpack.c.l.b16 %v3986
    %vm4026 = vcmask 1041409
    %v4027 = vsel %vm4026, %v4019, %v4018
    %vm4028 = vcmask 1042434
    %v4029 = vsel %vm4028, %v4020, %v4027
    %vm4030 = vcmask 1043459
    %v4031 = vsel %vm4030, %v4021, %v4029
    %vm4032 = vcmask 1044484
    %v4033 = vsel %vm4032, %v4022, %v4031
    %vm4034 = vcmask 1045509
    %v4035 = vsel %vm4034, %v4023, %v4033
    %vm4036 = vcmask 1046534
    %v4037 = vsel %vm4036, %v4024, %v4035
    %vm4038 = vcmask 1047559
    %v4039 = vsel %vm4038, %v4025, %v4037
    %v4040 = vpack.c.b16 %v4039, %v4039
    %v4058 = vunpack.c.l.b16 %v3987
    %v4059 = vunpack.c.l.b16 %v3988
    %v4060 = vunpack.c.l.b16 %v3989
    %v4061 = vunpack.c.l.b16 %v3990
    %v4062 = vunpack.c.l.b16 %v3991
    %v4063 = vunpack.c.l.b16 %v3992
    %v4064 = vunpack.c.l.b16 %v3993
    %v4065 = vunpack.c.l.b16 %v3994
    %v4066 = vunpack.c.l.b16 %v3995
    %v4067 = vunpack.c.l.b16 %v3996
    %v4068 = vunpack.c.l.b16 %v3997
    %v4069 = vunpack.c.l.b16 %v3998
    %v4070 = vunpack.c.l.b16 %v3999
    %v4071 = vunpack.c.l.b16 %v4000
    %v4072 = vunpack.c.l.b16 %v4001
    %v4073 = vunpack.c.l.b16 %v4002
    %v4074 = vpack.c.b16 %v4059, %v4058
    %v4075 = vpack.c.b16 %v4061, %v4060
    %v4076 = vpack.c.b16 %v4063, %v4062
    %v4077 = vpack.c.b16 %v4065, %v4064
    %v4078 = vpack.c.b16 %v4067, %v4066
    %v4079 = vpack.c.b16 %v4069, %v4068
    %v4080 = vpack.c.b16 %v4071, %v4070
    %v4081 = vpack.c.b16 %v4073, %v4072
    %4090 = vmatprep.subr.bf16.mxu0 0
    %4091 = vmatpush1.bf16.msra.mxu0 %v4074
    %4092 = vmatprep.subr.bf16.mxu0 0
    %4093 = vmatpush1.bf16.msra.mxu0 %v4075
    %4094 = vmatprep.subr.bf16.mxu0 0
    %4095 = vmatpush1.bf16.msra.mxu0 %v4076
    %4096 = vmatprep.subr.bf16.mxu0 0
    %4097 = vmatpush1.bf16.msra.mxu0 %v4077
    %4098 = vmatprep.subr.bf16.mxu0 0
    %4099 = vmatpush1.bf16.msra.mxu0 %v4078
    %4100 = vmatprep.subr.bf16.mxu0 0
    %4101 = vmatpush1.bf16.msra.mxu0 %v4079
    %4102 = vmatprep.subr.bf16.mxu0 0
    %4103 = vmatpush1.bf16.msra.mxu0 %v4080
    %4104 = vmatprep.subr.bf16.mxu0 0
    %4105 = vmatpush1.bf16.msra.mxu0 %v4081
    %4106 = vmatprep.subr.bf16.mxu0 0
    %4107 = vmatpush1.bf16.msra.mxu0 0
    %4108 = vmatprep.subr.bf16.mxu0 0
    %4109 = vmatpush1.bf16.msra.mxu0 0
    %4110 = vmatprep.subr.bf16.mxu0 0
    %4111 = vmatpush1.bf16.msra.mxu0 0
    %4112 = vmatprep.subr.bf16.mxu0 0
    %4113 = vmatpush1.bf16.msra.mxu0 0
    %4114 = vmatprep.subr.bf16.mxu0 0
    %4115 = vmatpush1.bf16.msra.mxu0 0
    %4116 = vmatprep.subr.bf16.mxu0 0
    %4117 = vmatpush1.bf16.msra.mxu0 0
    %4118 = vmatprep.subr.bf16.mxu0 0
    %4119 = vmatpush1.bf16.msra.mxu0 0
    %4120 = vmatprep.subr.bf16.mxu0 0
    %4121 = vmatpush1.bf16.msra.mxu0 0
    %4122 = vmatprep.mubr.bf16.mxu0 0
    %4123 = vmatmul.mubr.bf16.gmra.mrb[0].mxu0 %v4040
    %v4124 = vpop.f32.mrb[0].mxu0
    %v4125 = vadd.f32 %v4008, %v4124
    %v4126 = vpop.f32.mrb[0].mxu0
    %v4127 = vpop.f32.mrb[0].mxu0
    %v4128 = vpop.f32.mrb[0].mxu0
    %4129 = vdwg.mxu0
    %4130 = vst [vmem:[#allocation29] sm:$0xff] %v4125
    // Predicated region
    $region146: #{tpu_custom_call.1} parent=1 // pred_check
      _
    $region147: #{tpu_custom_call.1} parent=1 // pred_check_branch
      %4132 = sbr.rel (0) target = $region149
    $region148: #{tpu_custom_call.1} parent=1 // pred_region
      %s4134 = ssub.s32 128, 128
      %4135 = vsyncadd [#allocation4], %s4134
      %s4137 = sshll.u32 [#allocation29], 4
      %s4138 = int_to_ptr.vmem [resolvable:$true] %s4137
      %4140 = dma.vmem_to_hbm [thread:$0]  %s4138, 128, %s19, [#allocation4]
    $region149: #{tpu_custom_call.1} parent=1 // pred_fallthru
      _
    // Predicated region
    $region150: #{tpu_custom_call.1} parent=1 // pred_check
      _
    $region151: #{tpu_custom_call.1} parent=1 // pred_check_branch
      %4142 = sbr.rel (0) target = $region153
    $region152: #{tpu_custom_call.1} parent=1 // pred_region
      %4143 = dma.done [#allocation4], 128
    $region153: #{tpu_custom_call.1} parent=1 // pred_fallthru
      _
    %4144 = vsyncpa [#allocation3], 1
    %4145 = vsyncpa [#allocation6], 1
    %4146 = vsyncpa [#allocation9], 1
    %4147 = vsyncpa [#allocation12], 1
    %4148 = vsyncpa [#allocation15], 1
    %4149 = vsyncpa [#allocation18], 1
    %4150 = vsyncpa [#allocation21], 1
    %4151 = vsyncpa [#allocation24], 1
    %4152 = vsyncpa [#allocation27], 1
    %4153 = vsyncpa [#allocation4], 1

</llo_original>
